<compile_context>
chip_gen: v6e
topology: v6e:2x2x1
jax: 0.10.0
libtpu: 0.0.40
codegen_flags: <defaults>
</compile_context>

<pallas_src>
import jax
import jax.numpy as jnp
from jax import lax
from jax.experimental import pallas as pl
from jax.experimental.pallas import tpu as pltpu


def _gelu(x):
    # tanh-approximate GELU (PyTorch nn.GELU() default is exact erf; diff < ~1e-3)
    c = jnp.float32(0.7978845608028654)  # sqrt(2/pi)
    return 0.5 * x * (1.0 + jnp.tanh(c * (x + 0.044715 * x * x * x)))


# --------------------------------------------------------------------------- #
# Fused kernel: proj+GELU (rsa folded into lane 127), graph-major attention    #
# pooling, global predictor, context gather (VPU select), node classifier.     #
# The [h, context] concat is folded into a split matmul (wn1 = [wn1h; wn1c]).  #
# --------------------------------------------------------------------------- #
def _robep_kernel(x_ref, rsa_ref, batch_col_ref, batch_row_ref,
                  wp_ref, bp_ref,
                  wa1_ref, ba1_ref, wa2r_ref, ba2_ref,
                  wg1_ref, bg1_ref, wg2r_ref, bg2_ref,
                  wn1h_ref, wn1c_ref, bn1_ref, wn2r_ref, bn2_ref,
                  gpred_ref, npred_ref):
    f32 = jnp.float32
    bf16 = jnp.bfloat16
    n = x_ref.shape[0]
    dh = wp_ref.shape[1]            # 128 (lane-dense; rsa goes into lane dh-1)
    g = gpred_ref.shape[0]          # num_graphs (static)

    # --- proj_layer: Linear(in_dim, 127) + GELU, zero-padded to 128 lanes;
    #     rsa blended into lane 127 (lane-dense h, no concat needed) ---
    h_lin = jnp.dot(x_ref[...], wp_ref[...], preferred_element_type=f32) + bp_ref[...]
    h_act = _gelu(h_lin)
    lane = lax.broadcasted_iota(jnp.int32, (n, dh), 1)
    h = jnp.where(lane == dh - 1, rsa_ref[...], h_act)              # [N, 128] f32
    h_bf = h.astype(bf16)

    # --- AttentionPooling scores: score MLP (bf16 MXU) + VPU lane reduce ---
    sh = _gelu(jnp.dot(h_bf, wa1_ref[...], preferred_element_type=f32) + ba1_ref[...])
    scores_col = jnp.sum(sh * wa2r_ref[...], axis=-1, keepdims=True) + ba2_ref[...]  # [N,1]
    scores_row = jnp.transpose(scores_col)                          # [1, N] (single XLU transpose)

    # --- graph-major softmax: [G, N], graphs on sublanes, nodes on lanes ---
    gid = lax.broadcasted_iota(jnp.int32, (g, n), 0)
    mask_gn = (batch_row_ref[...] == gid).astype(f32)               # [G, N]
    s = jnp.where(mask_gn > 0.5, scores_row, jnp.float32(-1e30))    # [G, N]
    m = jnp.max(s, axis=-1, keepdims=True)                          # [G, 1] lane reduce
    e = jnp.exp(s - m) * mask_gn
    denom = jnp.maximum(jnp.sum(e, axis=-1, keepdims=True), jnp.float32(1e-20))
    w_gn = e * pl.reciprocal(denom, approx=True)                    # [G, N]
    graph_feats = jnp.dot(w_gn.astype(bf16), h_bf,
                          preferred_element_type=f32)               # [G, 128] single bf16 MXU pass

    # --- global_predictor: Linear -> GELU -> (Dropout=id) -> Linear(., 1) ---
    gz = _gelu(jnp.dot(graph_feats.astype(bf16), wg1_ref[...],
                       preferred_element_type=f32) + bg1_ref[...])
    gpred_ref[...] = jnp.sum(gz * wg2r_ref[...], axis=-1, keepdims=True) + bg2_ref[...]

    # --- context = graph_feats[batch]: G-way unrolled VPU broadcast+select ---
    context = jnp.zeros((n, dh), f32)
    for gi in range(g):                                             # static unroll
        row = graph_feats[gi:gi + 1, :]                             # [1, 128]
        context = jnp.where(batch_col_ref[...] == gi, row, context)  # [N, 128]

    # --- node_classifier on concat([h, context]) (split bf16 matmuls) ---
    nz = _gelu(jnp.dot(h_bf, wn1h_ref[...], preferred_element_type=f32)
               + jnp.dot(context.astype(bf16), wn1c_ref[...], preferred_element_type=f32)
               + bn1_ref[...])
    npred_col = jnp.sum(nz * wn2r_ref[...], axis=-1, keepdims=True) + bn2_ref[...]   # [N,1]
    npred_ref[...] = jnp.transpose(npred_col)                       # [1, N] lane-dense store


def robep_forward(x, rsa, batch, params, num_graphs):
    n = x.shape[0]
    d0 = params['wp'].shape[1]          # 127 (base_node_dim)
    dh = d0 + 1                         # 128, lane-dense h width
    bf16 = jnp.bfloat16
    f32 = jnp.float32

    # pad proj weight/bias to a lane-dense 128-wide output; rsa fills lane 127
    wp = jnp.pad(params['wp'], ((0, 0), (0, dh - d0))).astype(bf16)
    bp = jnp.pad(params['bp'], (0, dh - d0)).reshape(1, dh).astype(f32)

    args = (
        x.astype(bf16),                                   # bf16 MXU operand (half DMA)
        rsa.reshape(n, 1).astype(f32),
        batch.reshape(n, 1).astype(jnp.int32),            # node-major (context select)
        batch.reshape(1, n).astype(jnp.int32),            # graph-major row (mask build)
        wp, bp,
        params['wa1'].astype(bf16), params['ba1'].astype(f32),
        params['wa2'].reshape(1, -1).astype(f32), params['ba2'].astype(f32),
        params['wg1'].astype(bf16), params['bg1'].astype(f32),
        params['wg2'].reshape(1, -1).astype(f32), params['bg2'].astype(f32),
        params['wn1h'].astype(bf16), params['wn1c'].astype(bf16),
        params['bn1'].astype(f32),
        params['wn2'].reshape(1, -1).astype(f32), params['bn2'].astype(f32),
    )
    vmem = pl.BlockSpec(memory_space=pltpu.MemorySpace.VMEM)
    gpred, npred = pl.pallas_call(
        _robep_kernel,
        out_shape=(jax.ShapeDtypeStruct((num_graphs, 1), f32),
                   jax.ShapeDtypeStruct((1, n), f32)),
        in_specs=[vmem] * len(args),
        out_specs=(vmem, vmem),
        compiler_params=pltpu.CompilerParams(
            # explicit headroom; v5e's scoped default is only 16 MiB and this
            # kernel uses full-array VMEM residency (no grid).
            vmem_limit_bytes=32 * 1024 * 1024),
    )(*args)
    return {'global_pred': gpred[:, 0], 'node_preds': npred[0, :]}


# --------------------------------------------------------------------------- #
# Pure-JAX reference (module semantics).  mm_dtype=bfloat16 mirrors the        #
# kernel's reduced-precision MXU operands; mm_dtype=float32 is full precision. #
# --------------------------------------------------------------------------- #
def reference_forward(x, rsa, batch, params, num_graphs, mm_dtype=jnp.float32):
    f32 = jnp.float32

    def mm(a, b):
        return jnp.dot(a.astype(mm_dtype), b.astype(mm_dtype),
                       preferred_element_type=f32)

    h0 = _gelu(mm(x, params['wp']) + params['bp'])
    h = jnp.concatenate([h0, rsa[:, None]], axis=-1)
    maskT = jax.nn.one_hot(batch, num_graphs, dtype=f32)
    sh = _gelu(mm(h, params['wa1']) + params['ba1'])
    scores = jnp.dot(sh, params['wa2']) + params['ba2']
    s = jnp.where(maskT > 0, scores, -1e30)
    m = s.max(axis=0, keepdims=True)
    e = jnp.exp(s - m) * maskT
    w = e / jnp.maximum(e.sum(axis=0, keepdims=True), 1e-20)
    graph_feats = mm(w.T, h)
    gz = _gelu(mm(graph_feats, params['wg1']) + params['bg1'])
    gpred = (jnp.dot(gz, params['wg2']) + params['bg2'])[:, 0]
    context = graph_feats[batch]
    nz = _gelu(mm(h, params['wn1h']) + mm(context, params['wn1c']) + params['bn1'])
    npred = (jnp.dot(nz, params['wn2']) + params['bn2'])[:, 0]
    return gpred, npred


def xavier_normal(key, fan_in, fan_out):
    std = (2.0 / (fan_in + fan_out)) ** 0.5
    return std * jax.random.normal(key, (fan_in, fan_out), jnp.float32)


if __name__ == "__main__":
    # ---- small shapes consistent with the module; N>=256 so the MXU M
    #      dimension is actually filled (per v6e feedback), G=4 graphs ----
    N, G = 256, 4           # nodes, graphs in the batch
    IN_DIM = 512            # encoder='custom' small embedding (esmc would be 2560)
    D0 = 127                # base_node_dim; +1 rsa feature -> Dh = 128 (lane-dense)
    DH = D0 + 1
    H_ATT = DH // 2         # AttentionPooling hidden
    H_GLOB = DH // 2        # global_predictor hidden (final_node_dim // 2)
    H_NODE = max((2 * DH) // 2, 32)   # node_classifier first-layer output

    key = jax.random.PRNGKey(0)
    keys = jax.random.split(key, 12)

    # deterministic parameter init matching _init_weights (xavier-normal weights,
    # bias = 0.01 except out_features == 1 -> 0.0)
    wn1 = xavier_normal(keys[5], 2 * DH, H_NODE)
    params = {
        'wp':  xavier_normal(keys[0], IN_DIM, D0),
        'bp':  jnp.full((D0,), 0.01, jnp.float32),
        'wa1': xavier_normal(keys[1], DH, H_ATT),
        'ba1': jnp.full((1, H_ATT), 0.01, jnp.float32),
        'wa2': xavier_normal(keys[2], H_ATT, 1),
        'ba2': jnp.zeros((1, 1), jnp.float32),
        'wg1': xavier_normal(keys[3], DH, H_GLOB),
        'bg1': jnp.full((1, H_GLOB), 0.01, jnp.float32),
        'wg2': xavier_normal(keys[4], H_GLOB, 1),
        'bg2': jnp.zeros((1, 1), jnp.float32),
        'wn1h': wn1[:DH],
        'wn1c': wn1[DH:],
        'bn1': jnp.full((1, H_NODE), 0.01, jnp.float32),
        'wn2': xavier_normal(keys[6], H_NODE, 1),
        'bn2': jnp.zeros((1, 1), jnp.float32),
    }

    # inputs (Batch fields used in this config: x, rsa, batch).  pos / edge_index /
    # edge_attr are unused because use_egnn=False and dihedral is skipped.
    x = jax.random.normal(keys[7], (N, IN_DIM), jnp.float32)
    rsa = jax.random.uniform(keys[8], (N,), jnp.float32)
    batch = jnp.repeat(jnp.arange(G, dtype=jnp.int32), N // G)

    out = robep_forward(x, rsa, batch, params, G)
    jax.block_until_ready(out)

    assert out['global_pred'].shape == (G,)
    assert out['node_preds'].shape == (N,)

    # Tight check vs a reference mirroring the kernel's bf16-MXU math
    # (residual diff comes only from approx reciprocal / accumulation order).
    rg_bf, rn_bf = reference_forward(x, rsa, batch, params, G, mm_dtype=jnp.bfloat16)
    assert jnp.allclose(out['global_pred'], rg_bf, atol=1e-2, rtol=1e-2)
    assert jnp.allclose(out['node_preds'], rn_bf, atol=1e-2, rtol=1e-2)

    # Looser check vs pure-f32 module semantics (headroom for bf16 MXU operands
    # + approx reciprocal drift).
    rg, rn = reference_forward(x, rsa, batch, params, G, mm_dtype=jnp.float32)
    assert jnp.allclose(out['global_pred'], rg, atol=5e-2, rtol=5e-2)
    assert jnp.allclose(out['node_preds'], rn, atol=5e-2, rtol=5e-2)

    print("KERNEL_OK")
</pallas_src>

<mosaic_0001>
module attributes {stable_mosaic.version = 11 : i64} {
  func.func @_robep_kernel(%arg0: memref<256x512xbf16, #tpu.memory_space<vmem>>, %arg1: memref<256x1xf32, #tpu.memory_space<vmem>>, %arg2: memref<256x1xi32, #tpu.memory_space<vmem>>, %arg3: memref<1x256xi32, #tpu.memory_space<vmem>>, %arg4: memref<512x128xbf16, #tpu.memory_space<vmem>>, %arg5: memref<1x128xf32, #tpu.memory_space<vmem>>, %arg6: memref<128x64xbf16, #tpu.memory_space<vmem>>, %arg7: memref<1x64xf32, #tpu.memory_space<vmem>>, %arg8: memref<1x64xf32, #tpu.memory_space<vmem>>, %arg9: memref<1x1xf32, #tpu.memory_space<vmem>>, %arg10: memref<128x64xbf16, #tpu.memory_space<vmem>>, %arg11: memref<1x64xf32, #tpu.memory_space<vmem>>, %arg12: memref<1x64xf32, #tpu.memory_space<vmem>>, %arg13: memref<1x1xf32, #tpu.memory_space<vmem>>, %arg14: memref<128x128xbf16, #tpu.memory_space<vmem>>, %arg15: memref<128x128xbf16, #tpu.memory_space<vmem>>, %arg16: memref<1x128xf32, #tpu.memory_space<vmem>>, %arg17: memref<1x128xf32, #tpu.memory_space<vmem>>, %arg18: memref<1x1xf32, #tpu.memory_space<vmem>>, %arg19: memref<4x1xf32, #tpu.memory_space<vmem>>, %arg20: memref<1x256xf32, #tpu.memory_space<vmem>>) attributes {dimension_semantics = [], scalar_prefetch = 0 : i64, scratch_operands = 0 : i64, tpu.core_type = #tpu.core_type<tc>} {
    %c0 = arith.constant 0 : index
    %c0_0 = arith.constant 0 : index
    %0 = vector.load %arg0[%c0, %c0_0] : memref<256x512xbf16, #tpu.memory_space<vmem>>, vector<256x512xbf16>
    %c0_1 = arith.constant 0 : index
    %c0_2 = arith.constant 0 : index
    %1 = vector.load %arg4[%c0_1, %c0_2] : memref<512x128xbf16, #tpu.memory_space<vmem>>, vector<512x128xbf16>
    %cst = arith.constant dense<0.000000e+00> : vector<256x128xf32>
    %2 = tpu.matmul %0, %1, %cst {dimension_numbers = #tpu.dot_dimension_numbers<[1], [0], [0], [1], [0, 0, 1, 1], [], []>} : vector<256x512xbf16>, vector<512x128xbf16>, vector<256x128xf32> -> vector<256x128xf32>
    %c0_3 = arith.constant 0 : index
    %c0_4 = arith.constant 0 : index
    %3 = vector.load %arg5[%c0_3, %c0_4] : memref<1x128xf32, #tpu.memory_space<vmem>>, vector<1x128xf32>
    %4 = vector.broadcast %3 : vector<1x128xf32> to vector<256x128xf32>
    %5 = arith.addf %2, %4 : vector<256x128xf32>
    %cst_5 = arith.constant 5.000000e-01 : f32
    %6 = vector.broadcast %cst_5 : f32 to vector<256x128xf32>
    %7 = arith.mulf %6, %5 : vector<256x128xf32>
    %cst_6 = arith.constant 4.471500e-02 : f32
    %8 = vector.broadcast %cst_6 : f32 to vector<256x128xf32>
    %9 = arith.mulf %8, %5 : vector<256x128xf32>
    %10 = arith.mulf %9, %5 : vector<256x128xf32>
    %11 = arith.mulf %10, %5 : vector<256x128xf32>
    %12 = arith.addf %5, %11 : vector<256x128xf32>
    %cst_7 = arith.constant 0.797884583 : f32
    %13 = vector.broadcast %cst_7 : f32 to vector<256x128xf32>
    %14 = arith.mulf %13, %12 : vector<256x128xf32>
    %15 = math.tanh %14 : vector<256x128xf32>
    %cst_8 = arith.constant 1.000000e+00 : f32
    %16 = vector.broadcast %cst_8 : f32 to vector<256x128xf32>
    %17 = arith.addf %16, %15 : vector<256x128xf32>
    %18 = arith.mulf %7, %17 : vector<256x128xf32>
    %19 = tpu.iota {dimensions = array<i32: 1>} : vector<256x128xi32>
    %c127_i32 = arith.constant 127 : i32
    %20 = vector.broadcast %c127_i32 : i32 to vector<256x128xi32>
    %21 = arith.cmpi eq, %19, %20 : vector<256x128xi32>
    %c0_9 = arith.constant 0 : index
    %c0_10 = arith.constant 0 : index
    %22 = vector.load %arg1[%c0_9, %c0_10] : memref<256x1xf32, #tpu.memory_space<vmem>>, vector<256x1xf32>
    %23 = vector.shape_cast %22 : vector<256x1xf32> to vector<256x1xf32>
    %24 = vector.broadcast %23 : vector<256x1xf32> to vector<256x128xf32>
    %25 = arith.select %21, %24, %18 : vector<256x128xi1>, vector<256x128xf32>
    %26 = arith.truncf %25 : vector<256x128xf32> to vector<256x128xbf16>
    %c0_11 = arith.constant 0 : index
    %c0_12 = arith.constant 0 : index
    %27 = vector.load %arg6[%c0_11, %c0_12] : memref<128x64xbf16, #tpu.memory_space<vmem>>, vector<128x64xbf16>
    %cst_13 = arith.constant dense<0.000000e+00> : vector<256x64xf32>
    %28 = tpu.matmul %26, %27, %cst_13 {dimension_numbers = #tpu.dot_dimension_numbers<[1], [0], [0], [1], [0, 0, 1, 1], [], []>} : vector<256x128xbf16>, vector<128x64xbf16>, vector<256x64xf32> -> vector<256x64xf32>
    %c0_14 = arith.constant 0 : index
    %c0_15 = arith.constant 0 : index
    %29 = vector.load %arg7[%c0_14, %c0_15] : memref<1x64xf32, #tpu.memory_space<vmem>>, vector<1x64xf32>
    %30 = vector.broadcast %29 : vector<1x64xf32> to vector<256x64xf32>
    %31 = arith.addf %28, %30 : vector<256x64xf32>
    %cst_16 = arith.constant 5.000000e-01 : f32
    %32 = vector.broadcast %cst_16 : f32 to vector<256x64xf32>
    %33 = arith.mulf %32, %31 : vector<256x64xf32>
    %cst_17 = arith.constant 4.471500e-02 : f32
    %34 = vector.broadcast %cst_17 : f32 to vector<256x64xf32>
    %35 = arith.mulf %34, %31 : vector<256x64xf32>
    %36 = arith.mulf %35, %31 : vector<256x64xf32>
    %37 = arith.mulf %36, %31 : vector<256x64xf32>
    %38 = arith.addf %31, %37 : vector<256x64xf32>
    %cst_18 = arith.constant 0.797884583 : f32
    %39 = vector.broadcast %cst_18 : f32 to vector<256x64xf32>
    %40 = arith.mulf %39, %38 : vector<256x64xf32>
    %41 = math.tanh %40 : vector<256x64xf32>
    %cst_19 = arith.constant 1.000000e+00 : f32
    %42 = vector.broadcast %cst_19 : f32 to vector<256x64xf32>
    %43 = arith.addf %42, %41 : vector<256x64xf32>
    %44 = arith.mulf %33, %43 : vector<256x64xf32>
    %c0_20 = arith.constant 0 : index
    %c0_21 = arith.constant 0 : index
    %45 = vector.load %arg8[%c0_20, %c0_21] : memref<1x64xf32, #tpu.memory_space<vmem>>, vector<1x64xf32>
    %46 = vector.broadcast %45 : vector<1x64xf32> to vector<256x64xf32>
    %47 = arith.mulf %44, %46 : vector<256x64xf32>
    %cst_22 = arith.constant dense<0.000000e+00> : vector<256xf32>
    %48 = vector.multi_reduction <add>, %47, %cst_22 [1] : vector<256x64xf32> to vector<256xf32>
    %49 = vector.shape_cast %48 : vector<256xf32> to vector<256x1xf32>
    %c0_23 = arith.constant 0 : index
    %c0_24 = arith.constant 0 : index
    %50 = vector.load %arg9[%c0_23, %c0_24] : memref<1x1xf32, #tpu.memory_space<vmem>>, vector<1x1xf32>
    %51 = vector.broadcast %50 : vector<1x1xf32> to vector<256x1xf32>
    %52 = arith.addf %49, %51 : vector<256x1xf32>
    %53 = tpu.transpose %52, [1, 0] : vector<256x1xf32> -> vector<1x256xf32>
    %54 = tpu.iota {dimensions = array<i32: 0>} : vector<4x256xi32>
    %c0_25 = arith.constant 0 : index
    %c0_26 = arith.constant 0 : index
    %55 = vector.load %arg3[%c0_25, %c0_26] : memref<1x256xi32, #tpu.memory_space<vmem>>, vector<1x256xi32>
    %56 = vector.broadcast %55 : vector<1x256xi32> to vector<4x256xi32>
    %57 = arith.cmpi eq, %56, %54 : vector<4x256xi32>
    %58 = arith.extui %57 : vector<4x256xi1> to vector<4x256xi32>
    %59 = arith.sitofp %58 : vector<4x256xi32> to vector<4x256xf32>
    %cst_27 = arith.constant 5.000000e-01 : f32
    %60 = vector.broadcast %cst_27 : f32 to vector<4x256xf32>
    %61 = arith.cmpf ogt, %59, %60 : vector<4x256xf32>
    %cst_28 = arith.constant -1.000000e+30 : f32
    %62 = vector.shape_cast %53 : vector<1x256xf32> to vector<1x256xf32>
    %63 = vector.broadcast %62 : vector<1x256xf32> to vector<4x256xf32>
    %64 = vector.broadcast %cst_28 : f32 to vector<4x256xf32>
    %65 = arith.select %61, %63, %64 : vector<4x256xi1>, vector<4x256xf32>
    %cst_29 = arith.constant dense<0xFF800000> : vector<4xf32>
    %66 = vector.multi_reduction <maximumf>, %65, %cst_29 [1] : vector<4x256xf32> to vector<4xf32>
    %67 = vector.shape_cast %66 : vector<4xf32> to vector<4x1xf32>
    %68 = vector.broadcast %67 : vector<4x1xf32> to vector<4x256xf32>
    %69 = arith.subf %65, %68 : vector<4x256xf32>
    %70 = math.exp %69 : vector<4x256xf32>
    %71 = arith.mulf %70, %59 : vector<4x256xf32>
    %cst_30 = arith.constant dense<0.000000e+00> : vector<4xf32>
    %72 = vector.multi_reduction <add>, %71, %cst_30 [1] : vector<4x256xf32> to vector<4xf32>
    %73 = vector.shape_cast %72 : vector<4xf32> to vector<4x1xf32>
    %cst_31 = arith.constant 9.99999968E-21 : f32
    %74 = vector.broadcast %cst_31 : f32 to vector<4x1xf32>
    %75 = arith.maximumf %73, %74 : vector<4x1xf32>
    %76 = tpu.reciprocal %75 {approx = true} : vector<4x1xf32> -> vector<4x1xf32>
    %77 = vector.broadcast %76 : vector<4x1xf32> to vector<4x256xf32>
    %78 = arith.mulf %71, %77 : vector<4x256xf32>
    %79 = arith.truncf %78 : vector<4x256xf32> to vector<4x256xbf16>
    %cst_32 = arith.constant dense<0.000000e+00> : vector<4x128xf32>
    %80 = tpu.matmul %79, %26, %cst_32 {dimension_numbers = #tpu.dot_dimension_numbers<[1], [0], [0], [1], [0, 0, 1, 1], [], []>} : vector<4x256xbf16>, vector<256x128xbf16>, vector<4x128xf32> -> vector<4x128xf32>
    %81 = arith.truncf %80 : vector<4x128xf32> to vector<4x128xbf16>
    %c0_33 = arith.constant 0 : index
    %c0_34 = arith.constant 0 : index
    %82 = vector.load %arg10[%c0_33, %c0_34] : memref<128x64xbf16, #tpu.memory_space<vmem>>, vector<128x64xbf16>
    %cst_35 = arith.constant dense<0.000000e+00> : vector<4x64xf32>
    %83 = tpu.matmul %81, %82, %cst_35 {dimension_numbers = #tpu.dot_dimension_numbers<[1], [0], [0], [1], [0, 0, 1, 1], [], []>} : vector<4x128xbf16>, vector<128x64xbf16>, vector<4x64xf32> -> vector<4x64xf32>
    %c0_36 = arith.constant 0 : index
    %c0_37 = arith.constant 0 : index
    %84 = vector.load %arg11[%c0_36, %c0_37] : memref<1x64xf32, #tpu.memory_space<vmem>>, vector<1x64xf32>
    %85 = vector.broadcast %84 : vector<1x64xf32> to vector<4x64xf32>
    %86 = arith.addf %83, %85 : vector<4x64xf32>
    %cst_38 = arith.constant 5.000000e-01 : f32
    %87 = vector.broadcast %cst_38 : f32 to vector<4x64xf32>
    %88 = arith.mulf %87, %86 : vector<4x64xf32>
    %cst_39 = arith.constant 4.471500e-02 : f32
    %89 = vector.broadcast %cst_39 : f32 to vector<4x64xf32>
    %90 = arith.mulf %89, %86 : vector<4x64xf32>
    %91 = arith.mulf %90, %86 : vector<4x64xf32>
    %92 = arith.mulf %91, %86 : vector<4x64xf32>
    %93 = arith.addf %86, %92 : vector<4x64xf32>
    %cst_40 = arith.constant 0.797884583 : f32
    %94 = vector.broadcast %cst_40 : f32 to vector<4x64xf32>
    %95 = arith.mulf %94, %93 : vector<4x64xf32>
    %96 = math.tanh %95 : vector<4x64xf32>
    %cst_41 = arith.constant 1.000000e+00 : f32
    %97 = vector.broadcast %cst_41 : f32 to vector<4x64xf32>
    %98 = arith.addf %97, %96 : vector<4x64xf32>
    %99 = arith.mulf %88, %98 : vector<4x64xf32>
    %c0_42 = arith.constant 0 : index
    %c0_43 = arith.constant 0 : index
    %100 = vector.load %arg12[%c0_42, %c0_43] : memref<1x64xf32, #tpu.memory_space<vmem>>, vector<1x64xf32>
    %101 = vector.broadcast %100 : vector<1x64xf32> to vector<4x64xf32>
    %102 = arith.mulf %99, %101 : vector<4x64xf32>
    %cst_44 = arith.constant dense<0.000000e+00> : vector<4xf32>
    %103 = vector.multi_reduction <add>, %102, %cst_44 [1] : vector<4x64xf32> to vector<4xf32>
    %104 = vector.shape_cast %103 : vector<4xf32> to vector<4x1xf32>
    %c0_45 = arith.constant 0 : index
    %c0_46 = arith.constant 0 : index
    %105 = vector.load %arg13[%c0_45, %c0_46] : memref<1x1xf32, #tpu.memory_space<vmem>>, vector<1x1xf32>
    %106 = vector.broadcast %105 : vector<1x1xf32> to vector<4x1xf32>
    %107 = arith.addf %104, %106 : vector<4x1xf32>
    %c0_47 = arith.constant 0 : index
    %c0_48 = arith.constant 0 : index
    %108 = vector.load %arg19[%c0_47, %c0_48] : memref<4x1xf32, #tpu.memory_space<vmem>>, vector<4x1xf32>
    tpu.vector_store %arg19[%c0_47, %c0_48], %107 {strides = array<i32>} : memref<4x1xf32, #tpu.memory_space<vmem>>, vector<4x1xf32>,
    %cst_49 = arith.constant 0.000000e+00 : f32
    %109 = vector.broadcast %cst_49 : f32 to vector<256x128xf32>
    %110 = vector.extract_strided_slice %80 {offsets = [0, 0], sizes = [1, 128], strides = [1, 1]} : vector<4x128xf32> to vector<1x128xf32>
    %c0_50 = arith.constant 0 : index
    %c0_51 = arith.constant 0 : index
    %111 = vector.load %arg2[%c0_50, %c0_51] : memref<256x1xi32, #tpu.memory_space<vmem>>, vector<256x1xi32>
    %c0_i32 = arith.constant 0 : i32
    %112 = vector.broadcast %c0_i32 : i32 to vector<256x1xi32>
    %113 = arith.cmpi eq, %111, %112 : vector<256x1xi32>
    %114 = vector.shape_cast %113 : vector<256x1xi1> to vector<256x1xi1>
    %115 = vector.broadcast %114 : vector<256x1xi1> to vector<256x128xi1>
    %116 = vector.shape_cast %110 : vector<1x128xf32> to vector<1x128xf32>
    %117 = vector.broadcast %116 : vector<1x128xf32> to vector<256x128xf32>
    %118 = arith.select %115, %117, %109 : vector<256x128xi1>, vector<256x128xf32>
    %119 = vector.extract_strided_slice %80 {offsets = [1, 0], sizes = [1, 128], strides = [1, 1]} : vector<4x128xf32> to vector<1x128xf32>
    %c0_52 = arith.constant 0 : index
    %c0_53 = arith.constant 0 : index
    %120 = vector.load %arg2[%c0_52, %c0_53] : memref<256x1xi32, #tpu.memory_space<vmem>>, vector<256x1xi32>
    %c1_i32 = arith.constant 1 : i32
    %121 = vector.broadcast %c1_i32 : i32 to vector<256x1xi32>
    %122 = arith.cmpi eq, %120, %121 : vector<256x1xi32>
    %123 = vector.shape_cast %122 : vector<256x1xi1> to vector<256x1xi1>
    %124 = vector.broadcast %123 : vector<256x1xi1> to vector<256x128xi1>
    %125 = vector.shape_cast %119 : vector<1x128xf32> to vector<1x128xf32>
    %126 = vector.broadcast %125 : vector<1x128xf32> to vector<256x128xf32>
    %127 = arith.select %124, %126, %118 : vector<256x128xi1>, vector<256x128xf32>
    %128 = vector.extract_strided_slice %80 {offsets = [2, 0], sizes = [1, 128], strides = [1, 1]} : vector<4x128xf32> to vector<1x128xf32>
    %c0_54 = arith.constant 0 : index
    %c0_55 = arith.constant 0 : index
    %129 = vector.load %arg2[%c0_54, %c0_55] : memref<256x1xi32, #tpu.memory_space<vmem>>, vector<256x1xi32>
    %c2_i32 = arith.constant 2 : i32
    %130 = vector.broadcast %c2_i32 : i32 to vector<256x1xi32>
    %131 = arith.cmpi eq, %129, %130 : vector<256x1xi32>
    %132 = vector.shape_cast %131 : vector<256x1xi1> to vector<256x1xi1>
    %133 = vector.broadcast %132 : vector<256x1xi1> to vector<256x128xi1>
    %134 = vector.shape_cast %128 : vector<1x128xf32> to vector<1x128xf32>
    %135 = vector.broadcast %134 : vector<1x128xf32> to vector<256x128xf32>
    %136 = arith.select %133, %135, %127 : vector<256x128xi1>, vector<256x128xf32>
    %137 = vector.extract_strided_slice %80 {offsets = [3, 0], sizes = [1, 128], strides = [1, 1]} : vector<4x128xf32> to vector<1x128xf32>
    %c0_56 = arith.constant 0 : index
    %c0_57 = arith.constant 0 : index
    %138 = vector.load %arg2[%c0_56, %c0_57] : memref<256x1xi32, #tpu.memory_space<vmem>>, vector<256x1xi32>
    %c3_i32 = arith.constant 3 : i32
    %139 = vector.broadcast %c3_i32 : i32 to vector<256x1xi32>
    %140 = arith.cmpi eq, %138, %139 : vector<256x1xi32>
    %141 = vector.shape_cast %140 : vector<256x1xi1> to vector<256x1xi1>
    %142 = vector.broadcast %141 : vector<256x1xi1> to vector<256x128xi1>
    %143 = vector.shape_cast %137 : vector<1x128xf32> to vector<1x128xf32>
    %144 = vector.broadcast %143 : vector<1x128xf32> to vector<256x128xf32>
    %145 = arith.select %142, %144, %136 : vector<256x128xi1>, vector<256x128xf32>
    %c0_58 = arith.constant 0 : index
    %c0_59 = arith.constant 0 : index
    %146 = vector.load %arg14[%c0_58, %c0_59] : memref<128x128xbf16, #tpu.memory_space<vmem>>, vector<128x128xbf16>
    %cst_60 = arith.constant dense<0.000000e+00> : vector<256x128xf32>
    %147 = tpu.matmul %26, %146, %cst_60 {dimension_numbers = #tpu.dot_dimension_numbers<[1], [0], [0], [1], [0, 0, 1, 1], [], []>} : vector<256x128xbf16>, vector<128x128xbf16>, vector<256x128xf32> -> vector<256x128xf32>
    %148 = arith.truncf %145 : vector<256x128xf32> to vector<256x128xbf16>
    %c0_61 = arith.constant 0 : index
    %c0_62 = arith.constant 0 : index
    %149 = vector.load %arg15[%c0_61, %c0_62] : memref<128x128xbf16, #tpu.memory_space<vmem>>, vector<128x128xbf16>
    %cst_63 = arith.constant dense<0.000000e+00> : vector<256x128xf32>
    %150 = tpu.matmul %148, %149, %cst_63 {dimension_numbers = #tpu.dot_dimension_numbers<[1], [0], [0], [1], [0, 0, 1, 1], [], []>} : vector<256x128xbf16>, vector<128x128xbf16>, vector<256x128xf32> -> vector<256x128xf32>
    %151 = arith.addf %147, %150 : vector<256x128xf32>
    %c0_64 = arith.constant 0 : index
    %c0_65 = arith.constant 0 : index
    %152 = vector.load %arg16[%c0_64, %c0_65] : memref<1x128xf32, #tpu.memory_space<vmem>>, vector<1x128xf32>
    %153 = vector.broadcast %152 : vector<1x128xf32> to vector<256x128xf32>
    %154 = arith.addf %151, %153 : vector<256x128xf32>
    %cst_66 = arith.constant 5.000000e-01 : f32
    %155 = vector.broadcast %cst_66 : f32 to vector<256x128xf32>
    %156 = arith.mulf %155, %154 : vector<256x128xf32>
    %cst_67 = arith.constant 4.471500e-02 : f32
    %157 = vector.broadcast %cst_67 : f32 to vector<256x128xf32>
    %158 = arith.mulf %157, %154 : vector<256x128xf32>
    %159 = arith.mulf %158, %154 : vector<256x128xf32>
    %160 = arith.mulf %159, %154 : vector<256x128xf32>
    %161 = arith.addf %154, %160 : vector<256x128xf32>
    %cst_68 = arith.constant 0.797884583 : f32
    %162 = vector.broadcast %cst_68 : f32 to vector<256x128xf32>
    %163 = arith.mulf %162, %161 : vector<256x128xf32>
    %164 = math.tanh %163 : vector<256x128xf32>
    %cst_69 = arith.constant 1.000000e+00 : f32
    %165 = vector.broadcast %cst_69 : f32 to vector<256x128xf32>
    %166 = arith.addf %165, %164 : vector<256x128xf32>
    %167 = arith.mulf %156, %166 : vector<256x128xf32>
    %c0_70 = arith.constant 0 : index
    %c0_71 = arith.constant 0 : index
    %168 = vector.load %arg17[%c0_70, %c0_71] : memref<1x128xf32, #tpu.memory_space<vmem>>, vector<1x128xf32>
    %169 = vector.broadcast %168 : vector<1x128xf32> to vector<256x128xf32>
    %170 = arith.mulf %167, %169 : vector<256x128xf32>
    %cst_72 = arith.constant dense<0.000000e+00> : vector<256xf32>
    %171 = vector.multi_reduction <add>, %170, %cst_72 [1] : vector<256x128xf32> to vector<256xf32>
    %172 = vector.shape_cast %171 : vector<256xf32> to vector<256x1xf32>
    %c0_73 = arith.constant 0 : index
    %c0_74 = arith.constant 0 : index
    %173 = vector.load %arg18[%c0_73, %c0_74] : memref<1x1xf32, #tpu.memory_space<vmem>>, vector<1x1xf32>
    %174 = vector.broadcast %173 : vector<1x1xf32> to vector<256x1xf32>
    %175 = arith.addf %172, %174 : vector<256x1xf32>
    %176 = tpu.transpose %175, [1, 0] : vector<256x1xf32> -> vector<1x256xf32>
    %c0_75 = arith.constant 0 : index
    %c0_76 = arith.constant 0 : index
    %177 = vector.load %arg20[%c0_75, %c0_76] : memref<1x256xf32, #tpu.memory_space<vmem>>, vector<1x256xf32>
    tpu.vector_store %arg20[%c0_75, %c0_76], %176 {strides = array<i32>} : memref<1x256xf32, #tpu.memory_space<vmem>>, vector<1x256xf32>,
    return
  }
}

</mosaic_0001>

<llo_original>
// kernel: tpu_custom_call.1
$region0: #{tpu_custom_call.1}
  #allocation0 [shape = 'u32[]', space=smem, size = 0x4, offset = 0x4, fixed_abs, tag = 'smem constant byte address 0x4 - core index']
  #allocation1 [shape = 'u32[144,128]{1,0:T(1,128)}', space=vmem, size = 0x12000, scoped, tag = 'internal scratch']
  #allocation2 [shape = 'f32[1,1]{1,0:T(1,128)S(1)}', space=vmem, size = 0x200, scoped, tag = 'scoped memory for tpu_custom_call.1']
  #allocation3 [shape = 'f32[1,1]{1,0:T(1,128)S(1)}', space=vmem, size = 0x200, scoped, tag = 'scoped memory for tpu_custom_call.1']
  #allocation4 [shape = 'f32[1,1]{1,0:T(1,128)S(1)}', space=vmem, size = 0x200, scoped, tag = 'scoped memory for tpu_custom_call.1']
  %s0 = inlined_call_operand.vmem [shape: bf16[256,512], index: 0, kind: input, shape index: {}]
  %s1 = inlined_call_operand.vmem [shape: f32[256,1], index: 1, kind: input, shape index: {}]
  %s2 = inlined_call_operand.vmem [shape: s32[256,1], index: 2, kind: input, shape index: {}]
  %s3 = inlined_call_operand.vmem [shape: s32[1,256], index: 3, kind: input, shape index: {}]
  %s4 = inlined_call_operand.hbm [shape: bf16[512,128], index: 4, kind: input, shape index: {}]
  %s5 = inlined_call_operand.vmem [shape: f32[1,128], index: 5, kind: input, shape index: {}]
  %s6 = inlined_call_operand.vmem [shape: bf16[128,64], index: 6, kind: input, shape index: {}]
  %s7 = inlined_call_operand.vmem [shape: f32[1,64], index: 7, kind: input, shape index: {}]
  %s8 = inlined_call_operand.vmem [shape: f32[1,64], index: 8, kind: input, shape index: {}]
  %s9 = inlined_call_operand.<no memory space> [shape: f32[1,1], index: 9, kind: input, shape index: {}]
  %s10 = inlined_call_operand.vmem [shape: bf16[128,64], index: 10, kind: input, shape index: {}]
  %s11 = inlined_call_operand.vmem [shape: f32[1,64], index: 11, kind: input, shape index: {}]
  %s12 = inlined_call_operand.vmem [shape: f32[1,64], index: 12, kind: input, shape index: {}]
  %s13 = inlined_call_operand.<no memory space> [shape: f32[1,1], index: 13, kind: input, shape index: {}]
  %s14 = inlined_call_operand.vmem [shape: bf16[128,128], index: 14, kind: input, shape index: {}]
  %s15 = inlined_call_operand.vmem [shape: bf16[128,128], index: 15, kind: input, shape index: {}]
  %s16 = inlined_call_operand.vmem [shape: f32[1,128], index: 16, kind: input, shape index: {}]
  %s17 = inlined_call_operand.vmem [shape: f32[1,128], index: 17, kind: input, shape index: {}]
  %s18 = inlined_call_operand.<no memory space> [shape: f32[1,1], index: 18, kind: input, shape index: {}]
  %s19 = inlined_call_operand.vmem [shape: f32[4,1], index: 19, kind: output, shape index: {0}]
  %s20 = inlined_call_operand.hbm [shape: f32[1,256], index: 20, kind: output, shape index: {1}]
  %21 = xla_tuple %s19, %s20
  %s22 = sld [smem:[#allocation0]]
  $region98: #{tpu_custom_call.1} parent=0
    _
  %s24 = ssub.s32 1, %s22
  %s25 = scalar_select 0, %s24, %s22
  %v26 = vstv %s9
  %27 = vst [vmem:[#allocation2] sm:$0x1] %v26
  %v28 = vstv %s13
  %29 = vst [vmem:[#allocation3] sm:$0x1] %v28
  %v30 = vstv %s18
  %31 = vst [vmem:[#allocation4] sm:$0x1] %v30
  $region1: #{tpu_custom_call.1} parent=0
    #allocation5 [shape = 'u8[131072]{0}', space=vmem, size = 0x20000, scoped, tag = 'input window, operand 4, single buffered']
    #allocation6 [shape = 's32[1]{0}', space=sflag, size = 0x4, scoped, tag = 'scoped memory for tpu_custom_call.1']
    #allocation7 [shape = 's32[1]{0}', space=sflag, size = 0x4, scoped, tag = 'scoped memory for tpu_custom_call.1']
    #allocation8 [shape = 'u8[1024]{0}', space=vmem, size = 0x400, scoped, tag = 'output window, operand 1, single buffered']
    %32 = vsyncpa [#allocation6], 0
    %33 = vsyncpa [#allocation7], 0
    // Predicated region
    $region2: #{tpu_custom_call.1} parent=1 // pred_check
      _
    $region3: #{tpu_custom_call.1} parent=1 // pred_check_branch
      %35 = sbr.rel (0) target = $region5
    $region4: #{tpu_custom_call.1} parent=1 // pred_region
      _
    $region5: #{tpu_custom_call.1} parent=1 // pred_fallthru
      _
    // Predicated region
    $region6: #{tpu_custom_call.1} parent=1 // pred_check
      _
    $region7: #{tpu_custom_call.1} parent=1 // pred_check_branch
      %37 = sbr.rel (0) target = $region9
    $region8: #{tpu_custom_call.1} parent=1 // pred_region
      _
    $region9: #{tpu_custom_call.1} parent=1 // pred_fallthru
      _
    // Predicated region
    $region10: #{tpu_custom_call.1} parent=1 // pred_check
      _
    $region11: #{tpu_custom_call.1} parent=1 // pred_check_branch
      %39 = sbr.rel (0) target = $region13
    $region12: #{tpu_custom_call.1} parent=1 // pred_region
      _
    $region13: #{tpu_custom_call.1} parent=1 // pred_fallthru
      _
    // Predicated region
    $region14: #{tpu_custom_call.1} parent=1 // pred_check
      _
    $region15: #{tpu_custom_call.1} parent=1 // pred_check_branch
      %41 = sbr.rel (0) target = $region17
    $region16: #{tpu_custom_call.1} parent=1 // pred_region
      _
    $region17: #{tpu_custom_call.1} parent=1 // pred_fallthru
      _
    // Predicated region
    $region18: #{tpu_custom_call.1} parent=1 // pred_check
      _
    $region19: #{tpu_custom_call.1} parent=1 // pred_check_branch
      %43 = sbr.rel (0) target = $region21
    $region20: #{tpu_custom_call.1} parent=1 // pred_region
      %s45 = ssub.s32 4096, 4096
      %46 = vsyncadd [#allocation6], %s45
      %s47 = sshll.u32 [#allocation5], 4
      %s48 = int_to_ptr.vmem [resolvable:$true] %s47
      %53 = dma.hbm_to_vmem [thread:$0]  %s4, 4096, %s48, [#allocation6], 64, 64, 4
    $region21: #{tpu_custom_call.1} parent=1 // pred_fallthru
      _
    // Predicated region
    $region22: #{tpu_custom_call.1} parent=1 // pred_check
      _
    $region23: #{tpu_custom_call.1} parent=1 // pred_check_branch
      %55 = sbr.rel (0) target = $region25
    $region24: #{tpu_custom_call.1} parent=1 // pred_region
      _
    $region25: #{tpu_custom_call.1} parent=1 // pred_fallthru
      _
    // Predicated region
    $region26: #{tpu_custom_call.1} parent=1 // pred_check
      _
    $region27: #{tpu_custom_call.1} parent=1 // pred_check_branch
      %57 = sbr.rel (0) target = $region29
    $region28: #{tpu_custom_call.1} parent=1 // pred_region
      _
    $region29: #{tpu_custom_call.1} parent=1 // pred_fallthru
      _
    // Predicated region
    $region30: #{tpu_custom_call.1} parent=1 // pred_check
      _
    $region31: #{tpu_custom_call.1} parent=1 // pred_check_branch
      %59 = sbr.rel (0) target = $region33
    $region32: #{tpu_custom_call.1} parent=1 // pred_region
      _
    $region33: #{tpu_custom_call.1} parent=1 // pred_fallthru
      _
    // Predicated region
    $region34: #{tpu_custom_call.1} parent=1 // pred_check
      _
    $region35: #{tpu_custom_call.1} parent=1 // pred_check_branch
      %61 = sbr.rel (0) target = $region37
    $region36: #{tpu_custom_call.1} parent=1 // pred_region
      _
    $region37: #{tpu_custom_call.1} parent=1 // pred_fallthru
      _
    // Predicated region
    $region38: #{tpu_custom_call.1} parent=1 // pred_check
      _
    $region39: #{tpu_custom_call.1} parent=1 // pred_check_branch
      %63 = sbr.rel (0) target = $region41
    $region40: #{tpu_custom_call.1} parent=1 // pred_region
      _
    $region41: #{tpu_custom_call.1} parent=1 // pred_fallthru
      _
    // Predicated region
    $region42: #{tpu_custom_call.1} parent=1 // pred_check
      _
    $region43: #{tpu_custom_call.1} parent=1 // pred_check_branch
      %65 = sbr.rel (0) target = $region45
    $region44: #{tpu_custom_call.1} parent=1 // pred_region
      _
    $region45: #{tpu_custom_call.1} parent=1 // pred_fallthru
      _
    // Predicated region
    $region46: #{tpu_custom_call.1} parent=1 // pred_check
      _
    $region47: #{tpu_custom_call.1} parent=1 // pred_check_branch
      %67 = sbr.rel (0) target = $region49
    $region48: #{tpu_custom_call.1} parent=1 // pred_region
      _
    $region49: #{tpu_custom_call.1} parent=1 // pred_fallthru
      _
    // Predicated region
    $region50: #{tpu_custom_call.1} parent=1 // pred_check
      _
    $region51: #{tpu_custom_call.1} parent=1 // pred_check_branch
      %69 = sbr.rel (0) target = $region53
    $region52: #{tpu_custom_call.1} parent=1 // pred_region
      _
    $region53: #{tpu_custom_call.1} parent=1 // pred_fallthru
      _
    // Predicated region
    $region54: #{tpu_custom_call.1} parent=1 // pred_check
      _
    $region55: #{tpu_custom_call.1} parent=1 // pred_check_branch
      %71 = sbr.rel (0) target = $region57
    $region56: #{tpu_custom_call.1} parent=1 // pred_region
      _
    $region57: #{tpu_custom_call.1} parent=1 // pred_fallthru
      _
    // Predicated region
    $region58: #{tpu_custom_call.1} parent=1 // pred_check
      _
    $region59: #{tpu_custom_call.1} parent=1 // pred_check_branch
      %73 = sbr.rel (0) target = $region61
    $region60: #{tpu_custom_call.1} parent=1 // pred_region
      _
    $region61: #{tpu_custom_call.1} parent=1 // pred_fallthru
      _
    // Predicated region
    $region62: #{tpu_custom_call.1} parent=1 // pred_check
      _
    $region63: #{tpu_custom_call.1} parent=1 // pred_check_branch
      %75 = sbr.rel (0) target = $region65
    $region64: #{tpu_custom_call.1} parent=1 // pred_region
      _
    $region65: #{tpu_custom_call.1} parent=1 // pred_fallthru
      _
    // Predicated region
    $region66: #{tpu_custom_call.1} parent=1 // pred_check
      _
    $region67: #{tpu_custom_call.1} parent=1 // pred_check_branch
      %77 = sbr.rel (0) target = $region69
    $region68: #{tpu_custom_call.1} parent=1 // pred_region
      _
    $region69: #{tpu_custom_call.1} parent=1 // pred_fallthru
      _
    // Predicated region
    $region70: #{tpu_custom_call.1} parent=1 // pred_check
      _
    $region71: #{tpu_custom_call.1} parent=1 // pred_check_branch
      %79 = sbr.rel (0) target = $region73
    $region72: #{tpu_custom_call.1} parent=1 // pred_region
      _
    $region73: #{tpu_custom_call.1} parent=1 // pred_fallthru
      _
    // Predicated region
    $region74: #{tpu_custom_call.1} parent=1 // pred_check
      _
    $region75: #{tpu_custom_call.1} parent=1 // pred_check_branch
      %81 = sbr.rel (0) target = $region77
    $region76: #{tpu_custom_call.1} parent=1 // pred_region
      _
    $region77: #{tpu_custom_call.1} parent=1 // pred_fallthru
      _
    // Predicated region
    $region78: #{tpu_custom_call.1} parent=1 // pred_check
      _
    $region79: #{tpu_custom_call.1} parent=1 // pred_check_branch
      %83 = sbr.rel (0) target = $region81
    $region80: #{tpu_custom_call.1} parent=1 // pred_region
      %84 = dma.done [#allocation6], 4096
    $region81: #{tpu_custom_call.1} parent=1 // pred_fallthru
      _
    %v86 = vld [vmem:[%s0] sm:$0xff]
    %v87 = vld [vmem:[%s0 + $0x8] sm:$0xff]
    %v88 = vld [vmem:[%s0 + $0x10] sm:$0xff]
    %v89 = vld [vmem:[%s0 + $0x18] sm:$0xff]
    %v90 = vld [vmem:[%s0 + $0x20] sm:$0xff]
    %v91 = vld [vmem:[%s0 + $0x28] sm:$0xff]
    %v92 = vld [vmem:[%s0 + $0x30] sm:$0xff]
    %v93 = vld [vmem:[%s0 + $0x38] sm:$0xff]
    %v94 = vld [vmem:[%s0 + $0x40] sm:$0xff]
    %v95 = vld [vmem:[%s0 + $0x48] sm:$0xff]
    %v96 = vld [vmem:[%s0 + $0x50] sm:$0xff]
    %v97 = vld [vmem:[%s0 + $0x58] sm:$0xff]
    %v98 = vld [vmem:[%s0 + $0x60] sm:$0xff]
    %v99 = vld [vmem:[%s0 + $0x68] sm:$0xff]
    %v100 = vld [vmem:[%s0 + $0x70] sm:$0xff]
    %v101 = vld [vmem:[%s0 + $0x78] sm:$0xff]
    %v102 = vld [vmem:[%s0 + $0x80] sm:$0xff]
    %v103 = vld [vmem:[%s0 + $0x88] sm:$0xff]
    %v104 = vld [vmem:[%s0 + $0x90] sm:$0xff]
    %v105 = vld [vmem:[%s0 + $0x98] sm:$0xff]
    %v106 = vld [vmem:[%s0 + $0xa0] sm:$0xff]
    %v107 = vld [vmem:[%s0 + $0xa8] sm:$0xff]
    %v108 = vld [vmem:[%s0 + $0xb0] sm:$0xff]
    %v109 = vld [vmem:[%s0 + $0xb8] sm:$0xff]
    %v110 = vld [vmem:[%s0 + $0xc0] sm:$0xff]
    %v111 = vld [vmem:[%s0 + $0xc8] sm:$0xff]
    %v112 = vld [vmem:[%s0 + $0xd0] sm:$0xff]
    %v113 = vld [vmem:[%s0 + $0xd8] sm:$0xff]
    %v114 = vld [vmem:[%s0 + $0xe0] sm:$0xff]
    %v115 = vld [vmem:[%s0 + $0xe8] sm:$0xff]
    %v116 = vld [vmem:[%s0 + $0xf0] sm:$0xff]
    %v117 = vld [vmem:[%s0 + $0xf8] sm:$0xff]
    %v118 = vld [vmem:[%s0 + $0x100] sm:$0xff]
    %v119 = vld [vmem:[%s0 + $0x108] sm:$0xff]
    %v120 = vld [vmem:[%s0 + $0x110] sm:$0xff]
    %v121 = vld [vmem:[%s0 + $0x118] sm:$0xff]
    %v122 = vld [vmem:[%s0 + $0x120] sm:$0xff]
    %v123 = vld [vmem:[%s0 + $0x128] sm:$0xff]
    %v124 = vld [vmem:[%s0 + $0x130] sm:$0xff]
    %v125 = vld [vmem:[%s0 + $0x138] sm:$0xff]
    %v126 = vld [vmem:[%s0 + $0x140] sm:$0xff]
    %v127 = vld [vmem:[%s0 + $0x148] sm:$0xff]
    %v128 = vld [vmem:[%s0 + $0x150] sm:$0xff]
    %v129 = vld [vmem:[%s0 + $0x158] sm:$0xff]
    %v130 = vld [vmem:[%s0 + $0x160] sm:$0xff]
    %v131 = vld [vmem:[%s0 + $0x168] sm:$0xff]
    %v132 = vld [vmem:[%s0 + $0x170] sm:$0xff]
    %v133 = vld [vmem:[%s0 + $0x178] sm:$0xff]
    %v134 = vld [vmem:[%s0 + $0x180] sm:$0xff]
    %v135 = vld [vmem:[%s0 + $0x188] sm:$0xff]
    %v136 = vld [vmem:[%s0 + $0x190] sm:$0xff]
    %v137 = vld [vmem:[%s0 + $0x198] sm:$0xff]
    %v138 = vld [vmem:[%s0 + $0x1a0] sm:$0xff]
    %v139 = vld [vmem:[%s0 + $0x1a8] sm:$0xff]
    %v140 = vld [vmem:[%s0 + $0x1b0] sm:$0xff]
    %v141 = vld [vmem:[%s0 + $0x1b8] sm:$0xff]
    %v142 = vld [vmem:[%s0 + $0x1c0] sm:$0xff]
    %v143 = vld [vmem:[%s0 + $0x1c8] sm:$0xff]
    %v144 = vld [vmem:[%s0 + $0x1d0] sm:$0xff]
    %v145 = vld [vmem:[%s0 + $0x1d8] sm:$0xff]
    %v146 = vld [vmem:[%s0 + $0x1e0] sm:$0xff]
    %v147 = vld [vmem:[%s0 + $0x1e8] sm:$0xff]
    %v148 = vld [vmem:[%s0 + $0x1f0] sm:$0xff]
    %v149 = vld [vmem:[%s0 + $0x1f8] sm:$0xff]
    %v150 = vld [vmem:[#allocation5] sm:$0xf]
    %v151 = vld [vmem:[#allocation5 + $0x4] sm:$0xf]
    %v152 = vld [vmem:[#allocation5 + $0x8] sm:$0xf]
    %v153 = vld [vmem:[#allocation5 + $0xc] sm:$0xf]
    %v154 = vld [vmem:[#allocation5 + $0x10] sm:$0xf]
    %v155 = vld [vmem:[#allocation5 + $0x14] sm:$0xf]
    %v156 = vld [vmem:[#allocation5 + $0x18] sm:$0xf]
    %v157 = vld [vmem:[#allocation5 + $0x1c] sm:$0xf]
    %v158 = vld [vmem:[#allocation5 + $0x20] sm:$0xf]
    %v159 = vld [vmem:[#allocation5 + $0x24] sm:$0xf]
    %v160 = vld [vmem:[#allocation5 + $0x28] sm:$0xf]
    %v161 = vld [vmem:[#allocation5 + $0x2c] sm:$0xf]
    %v162 = vld [vmem:[#allocation5 + $0x30] sm:$0xf]
    %v163 = vld [vmem:[#allocation5 + $0x34] sm:$0xf]
    %v164 = vld [vmem:[#allocation5 + $0x38] sm:$0xf]
    %v165 = vld [vmem:[#allocation5 + $0x3c] sm:$0xf]
    %v166 = vld [vmem:[#allocation5 + $0x40] sm:$0xf]
    %v167 = vld [vmem:[#allocation5 + $0x44] sm:$0xf]
    %v168 = vld [vmem:[#allocation5 + $0x48] sm:$0xf]
    %v169 = vld [vmem:[#allocation5 + $0x4c] sm:$0xf]
    %v170 = vld [vmem:[#allocation5 + $0x50] sm:$0xf]
    %v171 = vld [vmem:[#allocation5 + $0x54] sm:$0xf]
    %v172 = vld [vmem:[#allocation5 + $0x58] sm:$0xf]
    %v173 = vld [vmem:[#allocation5 + $0x5c] sm:$0xf]
    %v174 = vld [vmem:[#allocation5 + $0x60] sm:$0xf]
    %v175 = vld [vmem:[#allocation5 + $0x64] sm:$0xf]
    %v176 = vld [vmem:[#allocation5 + $0x68] sm:$0xf]
    %v177 = vld [vmem:[#allocation5 + $0x6c] sm:$0xf]
    %v178 = vld [vmem:[#allocation5 + $0x70] sm:$0xf]
    %v179 = vld [vmem:[#allocation5 + $0x74] sm:$0xf]
    %v180 = vld [vmem:[#allocation5 + $0x78] sm:$0xf]
    %v181 = vld [vmem:[#allocation5 + $0x7c] sm:$0xf]
    %v182 = vld [vmem:[#allocation5 + $0x80] sm:$0xf]
    %v183 = vld [vmem:[#allocation5 + $0x84] sm:$0xf]
    %v184 = vld [vmem:[#allocation5 + $0x88] sm:$0xf]
    %v185 = vld [vmem:[#allocation5 + $0x8c] sm:$0xf]
    %v186 = vld [vmem:[#allocation5 + $0x90] sm:$0xf]
    %v187 = vld [vmem:[#allocation5 + $0x94] sm:$0xf]
    %v188 = vld [vmem:[#allocation5 + $0x98] sm:$0xf]
    %v189 = vld [vmem:[#allocation5 + $0x9c] sm:$0xf]
    %v190 = vld [vmem:[#allocation5 + $0xa0] sm:$0xf]
    %v191 = vld [vmem:[#allocation5 + $0xa4] sm:$0xf]
    %v192 = vld [vmem:[#allocation5 + $0xa8] sm:$0xf]
    %v193 = vld [vmem:[#allocation5 + $0xac] sm:$0xf]
    %v194 = vld [vmem:[#allocation5 + $0xb0] sm:$0xf]
    %v195 = vld [vmem:[#allocation5 + $0xb4] sm:$0xf]
    %v196 = vld [vmem:[#allocation5 + $0xb8] sm:$0xf]
    %v197 = vld [vmem:[#allocation5 + $0xbc] sm:$0xf]
    %v198 = vld [vmem:[#allocation5 + $0xc0] sm:$0xf]
    %v199 = vld [vmem:[#allocation5 + $0xc4] sm:$0xf]
    %v200 = vld [vmem:[#allocation5 + $0xc8] sm:$0xf]
    %v201 = vld [vmem:[#allocation5 + $0xcc] sm:$0xf]
    %v202 = vld [vmem:[#allocation5 + $0xd0] sm:$0xf]
    %v203 = vld [vmem:[#allocation5 + $0xd4] sm:$0xf]
    %v204 = vld [vmem:[#allocation5 + $0xd8] sm:$0xf]
    %v205 = vld [vmem:[#allocation5 + $0xdc] sm:$0xf]
    %v206 = vld [vmem:[#allocation5 + $0xe0] sm:$0xf]
    %v207 = vld [vmem:[#allocation5 + $0xe4] sm:$0xf]
    %v208 = vld [vmem:[#allocation5 + $0xe8] sm:$0xf]
    %v209 = vld [vmem:[#allocation5 + $0xec] sm:$0xf]
    %v210 = vld [vmem:[#allocation5 + $0xf0] sm:$0xf]
    %v211 = vld [vmem:[#allocation5 + $0xf4] sm:$0xf]
    %v212 = vld [vmem:[#allocation5 + $0xf8] sm:$0xf]
    %v213 = vld [vmem:[#allocation5 + $0xfc] sm:$0xf]
    %v214 = vld [vmem:[%s5] sm:$0x1]
    %v216 = vlaneseq
    %v217 = vshrl.u32 %v216, 7
    %v218 = vsub.s32 0, %v217
    %v219 = vrot.slane %v214, %v218
    %v285 = vunpack.c.l.b16 %v86
    %v286 = vunpack.c.h.b16 %v86
    %v287 = vunpack.c.l.b16 %v87
    %v288 = vunpack.c.h.b16 %v87
    %v289 = vunpack.c.l.b16 %v88
    %v290 = vunpack.c.h.b16 %v88
    %v291 = vunpack.c.l.b16 %v89
    %v292 = vunpack.c.h.b16 %v89
    %v293 = vunpack.c.l.b16 %v90
    %v294 = vunpack.c.h.b16 %v90
    %v295 = vunpack.c.l.b16 %v91
    %v296 = vunpack.c.h.b16 %v91
    %v297 = vunpack.c.l.b16 %v92
    %v298 = vunpack.c.h.b16 %v92
    %v299 = vunpack.c.l.b16 %v93
    %v300 = vunpack.c.h.b16 %v93
    %v301 = vunpack.c.l.b16 %v94
    %v302 = vunpack.c.h.b16 %v94
    %v303 = vunpack.c.l.b16 %v95
    %v304 = vunpack.c.h.b16 %v95
    %v305 = vunpack.c.l.b16 %v96
    %v306 = vunpack.c.h.b16 %v96
    %v307 = vunpack.c.l.b16 %v97
    %v308 = vunpack.c.h.b16 %v97
    %v309 = vunpack.c.l.b16 %v98
    %v310 = vunpack.c.h.b16 %v98
    %v311 = vunpack.c.l.b16 %v99
    %v312 = vunpack.c.h.b16 %v99
    %v313 = vunpack.c.l.b16 %v100
    %v314 = vunpack.c.h.b16 %v100
    %v315 = vunpack.c.l.b16 %v101
    %v316 = vunpack.c.h.b16 %v101
    %v317 = vunpack.c.l.b16 %v102
    %v318 = vunpack.c.h.b16 %v102
    %v319 = vunpack.c.l.b16 %v103
    %v320 = vunpack.c.h.b16 %v103
    %v321 = vunpack.c.l.b16 %v104
    %v322 = vunpack.c.h.b16 %v104
    %v323 = vunpack.c.l.b16 %v105
    %v324 = vunpack.c.h.b16 %v105
    %v325 = vunpack.c.l.b16 %v106
    %v326 = vunpack.c.h.b16 %v106
    %v327 = vunpack.c.l.b16 %v107
    %v328 = vunpack.c.h.b16 %v107
    %v329 = vunpack.c.l.b16 %v108
    %v330 = vunpack.c.h.b16 %v108
    %v331 = vunpack.c.l.b16 %v109
    %v332 = vunpack.c.h.b16 %v109
    %v333 = vunpack.c.l.b16 %v110
    %v334 = vunpack.c.h.b16 %v110
    %v335 = vunpack.c.l.b16 %v111
    %v336 = vunpack.c.h.b16 %v111
    %v337 = vunpack.c.l.b16 %v112
    %v338 = vunpack.c.h.b16 %v112
    %v339 = vunpack.c.l.b16 %v113
    %v340 = vunpack.c.h.b16 %v113
    %v341 = vunpack.c.l.b16 %v114
    %v342 = vunpack.c.h.b16 %v114
    %v343 = vunpack.c.l.b16 %v115
    %v344 = vunpack.c.h.b16 %v115
    %v345 = vunpack.c.l.b16 %v116
    %v346 = vunpack.c.h.b16 %v116
    %v347 = vunpack.c.l.b16 %v117
    %v348 = vunpack.c.h.b16 %v117
    %v349 = vunpack.c.l.b16 %v118
    %v350 = vunpack.c.h.b16 %v118
    %v351 = vunpack.c.l.b16 %v119
    %v352 = vunpack.c.h.b16 %v119
    %v353 = vunpack.c.l.b16 %v120
    %v354 = vunpack.c.h.b16 %v120
    %v355 = vunpack.c.l.b16 %v121
    %v356 = vunpack.c.h.b16 %v121
    %v357 = vunpack.c.l.b16 %v122
    %v358 = vunpack.c.h.b16 %v122
    %v359 = vunpack.c.l.b16 %v123
    %v360 = vunpack.c.h.b16 %v123
    %v361 = vunpack.c.l.b16 %v124
    %v362 = vunpack.c.h.b16 %v124
    %v363 = vunpack.c.l.b16 %v125
    %v364 = vunpack.c.h.b16 %v125
    %v365 = vunpack.c.l.b16 %v126
    %v366 = vunpack.c.h.b16 %v126
    %v367 = vunpack.c.l.b16 %v127
    %v368 = vunpack.c.h.b16 %v127
    %v369 = vunpack.c.l.b16 %v128
    %v370 = vunpack.c.h.b16 %v128
    %v371 = vunpack.c.l.b16 %v129
    %v372 = vunpack.c.h.b16 %v129
    %v373 = vunpack.c.l.b16 %v130
    %v374 = vunpack.c.h.b16 %v130
    %v375 = vunpack.c.l.b16 %v131
    %v376 = vunpack.c.h.b16 %v131
    %v377 = vunpack.c.l.b16 %v132
    %v378 = vunpack.c.h.b16 %v132
    %v379 = vunpack.c.l.b16 %v133
    %v380 = vunpack.c.h.b16 %v133
    %v381 = vunpack.c.l.b16 %v134
    %v382 = vunpack.c.h.b16 %v134
    %v383 = vunpack.c.l.b16 %v135
    %v384 = vunpack.c.h.b16 %v135
    %v385 = vunpack.c.l.b16 %v136
    %v386 = vunpack.c.h.b16 %v136
    %v387 = vunpack.c.l.b16 %v137
    %v388 = vunpack.c.h.b16 %v137
    %v389 = vunpack.c.l.b16 %v138
    %v390 = vunpack.c.h.b16 %v138
    %v391 = vunpack.c.l.b16 %v139
    %v392 = vunpack.c.h.b16 %v139
    %v393 = vunpack.c.l.b16 %v140
    %v394 = vunpack.c.h.b16 %v140
    %v395 = vunpack.c.l.b16 %v141
    %v396 = vunpack.c.h.b16 %v141
    %v397 = vunpack.c.l.b16 %v142
    %v398 = vunpack.c.h.b16 %v142
    %v399 = vunpack.c.l.b16 %v143
    %v400 = vunpack.c.h.b16 %v143
    %v401 = vunpack.c.l.b16 %v144
    %v402 = vunpack.c.h.b16 %v144
    %v403 = vunpack.c.l.b16 %v145
    %v404 = vunpack.c.h.b16 %v145
    %v405 = vunpack.c.l.b16 %v146
    %v406 = vunpack.c.h.b16 %v146
    %v407 = vunpack.c.l.b16 %v147
    %v408 = vunpack.c.h.b16 %v147
    %v409 = vunpack.c.l.b16 %v148
    %v410 = vunpack.c.h.b16 %v148
    %v411 = vunpack.c.l.b16 %v149
    %v412 = vunpack.c.h.b16 %v149
    %v413 = vpack.c.b16 %v289, %v285
    %v414 = vpack.c.b16 %v290, %v286
    %v415 = vpack.c.b16 %v291, %v287
    %v416 = vpack.c.b16 %v292, %v288
    %v417 = vpack.c.b16 %v297, %v293
    %v418 = vpack.c.b16 %v298, %v294
    %v419 = vpack.c.b16 %v299, %v295
    %v420 = vpack.c.b16 %v300, %v296
    %v421 = vpack.c.b16 %v305, %v301
    %v422 = vpack.c.b16 %v306, %v302
    %v423 = vpack.c.b16 %v307, %v303
    %v424 = vpack.c.b16 %v308, %v304
    %v425 = vpack.c.b16 %v313, %v309
    %v426 = vpack.c.b16 %v314, %v310
    %v427 = vpack.c.b16 %v315, %v311
    %v428 = vpack.c.b16 %v316, %v312
    %v429 = vpack.c.b16 %v321, %v317
    %v430 = vpack.c.b16 %v322, %v318
    %v431 = vpack.c.b16 %v323, %v319
    %v432 = vpack.c.b16 %v324, %v320
    %v433 = vpack.c.b16 %v329, %v325
    %v434 = vpack.c.b16 %v330, %v326
    %v435 = vpack.c.b16 %v331, %v327
    %v436 = vpack.c.b16 %v332, %v328
    %v437 = vpack.c.b16 %v337, %v333
    %v438 = vpack.c.b16 %v338, %v334
    %v439 = vpack.c.b16 %v339, %v335
    %v440 = vpack.c.b16 %v340, %v336
    %v441 = vpack.c.b16 %v345, %v341
    %v442 = vpack.c.b16 %v346, %v342
    %v443 = vpack.c.b16 %v347, %v343
    %v444 = vpack.c.b16 %v348, %v344
    %v445 = vpack.c.b16 %v353, %v349
    %v446 = vpack.c.b16 %v354, %v350
    %v447 = vpack.c.b16 %v355, %v351
    %v448 = vpack.c.b16 %v356, %v352
    %v449 = vpack.c.b16 %v361, %v357
    %v450 = vpack.c.b16 %v362, %v358
    %v451 = vpack.c.b16 %v363, %v359
    %v452 = vpack.c.b16 %v364, %v360
    %v453 = vpack.c.b16 %v369, %v365
    %v454 = vpack.c.b16 %v370, %v366
    %v455 = vpack.c.b16 %v371, %v367
    %v456 = vpack.c.b16 %v372, %v368
    %v457 = vpack.c.b16 %v377, %v373
    %v458 = vpack.c.b16 %v378, %v374
    %v459 = vpack.c.b16 %v379, %v375
    %v460 = vpack.c.b16 %v380, %v376
    %v461 = vpack.c.b16 %v385, %v381
    %v462 = vpack.c.b16 %v386, %v382
    %v463 = vpack.c.b16 %v387, %v383
    %v464 = vpack.c.b16 %v388, %v384
    %v465 = vpack.c.b16 %v393, %v389
    %v466 = vpack.c.b16 %v394, %v390
    %v467 = vpack.c.b16 %v395, %v391
    %v468 = vpack.c.b16 %v396, %v392
    %v469 = vpack.c.b16 %v401, %v397
    %v470 = vpack.c.b16 %v402, %v398
    %v471 = vpack.c.b16 %v403, %v399
    %v472 = vpack.c.b16 %v404, %v400
    %v473 = vpack.c.b16 %v409, %v405
    %v474 = vpack.c.b16 %v410, %v406
    %v475 = vpack.c.b16 %v411, %v407
    %v476 = vpack.c.b16 %v412, %v408
    %v605 = vunpack.c.l.b16 %v150
    %v606 = vunpack.c.l.b16 %v151
    %v607 = vunpack.c.l.b16 %v152
    %v608 = vunpack.c.l.b16 %v153
    %v609 = vunpack.c.l.b16 %v154
    %v610 = vunpack.c.l.b16 %v155
    %v611 = vunpack.c.l.b16 %v156
    %v612 = vunpack.c.l.b16 %v157
    %v613 = vunpack.c.l.b16 %v158
    %v614 = vunpack.c.l.b16 %v159
    %v615 = vunpack.c.l.b16 %v160
    %v616 = vunpack.c.l.b16 %v161
    %v617 = vunpack.c.l.b16 %v162
    %v618 = vunpack.c.l.b16 %v163
    %v619 = vunpack.c.l.b16 %v164
    %v620 = vunpack.c.l.b16 %v165
    %v621 = vunpack.c.l.b16 %v166
    %v622 = vunpack.c.l.b16 %v167
    %v623 = vunpack.c.l.b16 %v168
    %v624 = vunpack.c.l.b16 %v169
    %v625 = vunpack.c.l.b16 %v170
    %v626 = vunpack.c.l.b16 %v171
    %v627 = vunpack.c.l.b16 %v172
    %v628 = vunpack.c.l.b16 %v173
    %v629 = vunpack.c.l.b16 %v174
    %v630 = vunpack.c.l.b16 %v175
    %v631 = vunpack.c.l.b16 %v176
    %v632 = vunpack.c.l.b16 %v177
    %v633 = vunpack.c.l.b16 %v178
    %v634 = vunpack.c.l.b16 %v179
    %v635 = vunpack.c.l.b16 %v180
    %v636 = vunpack.c.l.b16 %v181
    %v637 = vunpack.c.l.b16 %v182
    %v638 = vunpack.c.l.b16 %v183
    %v639 = vunpack.c.l.b16 %v184
    %v640 = vunpack.c.l.b16 %v185
    %v641 = vunpack.c.l.b16 %v186
    %v642 = vunpack.c.l.b16 %v187
    %v643 = vunpack.c.l.b16 %v188
    %v644 = vunpack.c.l.b16 %v189
    %v645 = vunpack.c.l.b16 %v190
    %v646 = vunpack.c.l.b16 %v191
    %v647 = vunpack.c.l.b16 %v192
    %v648 = vunpack.c.l.b16 %v193
    %v649 = vunpack.c.l.b16 %v194
    %v650 = vunpack.c.l.b16 %v195
    %v651 = vunpack.c.l.b16 %v196
    %v652 = vunpack.c.l.b16 %v197
    %v653 = vunpack.c.l.b16 %v198
    %v654 = vunpack.c.l.b16 %v199
    %v655 = vunpack.c.l.b16 %v200
    %v656 = vunpack.c.l.b16 %v201
    %v657 = vunpack.c.l.b16 %v202
    %v658 = vunpack.c.l.b16 %v203
    %v659 = vunpack.c.l.b16 %v204
    %v660 = vunpack.c.l.b16 %v205
    %v661 = vunpack.c.l.b16 %v206
    %v662 = vunpack.c.l.b16 %v207
    %v663 = vunpack.c.l.b16 %v208
    %v664 = vunpack.c.l.b16 %v209
    %v665 = vunpack.c.l.b16 %v210
    %v666 = vunpack.c.l.b16 %v211
    %v667 = vunpack.c.l.b16 %v212
    %v668 = vunpack.c.l.b16 %v213
    %v669 = vpack.c.b16 %v606, %v605
    %v670 = vpack.c.b16 %v608, %v607
    %v671 = vpack.c.b16 %v610, %v609
    %v672 = vpack.c.b16 %v612, %v611
    %v673 = vpack.c.b16 %v614, %v613
    %v674 = vpack.c.b16 %v616, %v615
    %v675 = vpack.c.b16 %v618, %v617
    %v676 = vpack.c.b16 %v620, %v619
    %v677 = vpack.c.b16 %v622, %v621
    %v678 = vpack.c.b16 %v624, %v623
    %v679 = vpack.c.b16 %v626, %v625
    %v680 = vpack.c.b16 %v628, %v627
    %v681 = vpack.c.b16 %v630, %v629
    %v682 = vpack.c.b16 %v632, %v631
    %v683 = vpack.c.b16 %v634, %v633
    %v684 = vpack.c.b16 %v636, %v635
    %v685 = vpack.c.b16 %v638, %v637
    %v686 = vpack.c.b16 %v640, %v639
    %v687 = vpack.c.b16 %v642, %v641
    %v688 = vpack.c.b16 %v644, %v643
    %v689 = vpack.c.b16 %v646, %v645
    %v690 = vpack.c.b16 %v648, %v647
    %v691 = vpack.c.b16 %v650, %v649
    %v692 = vpack.c.b16 %v652, %v651
    %v693 = vpack.c.b16 %v654, %v653
    %v694 = vpack.c.b16 %v656, %v655
    %v695 = vpack.c.b16 %v658, %v657
    %v696 = vpack.c.b16 %v660, %v659
    %v697 = vpack.c.b16 %v662, %v661
    %v698 = vpack.c.b16 %v664, %v663
    %v699 = vpack.c.b16 %v666, %v665
    %v700 = vpack.c.b16 %v668, %v667
    %733 = vmatprep.subr.bf16.mxu0 0
    %734 = vmatpush1.bf16.msra.mxu0 %v676
    %735 = vmatprep.subr.bf16.mxu0 0
    %736 = vmatpush1.bf16.msra.mxu0 %v675
    %737 = vmatprep.subr.bf16.mxu0 0
    %738 = vmatpush1.bf16.msra.mxu0 %v674
    %739 = vmatprep.subr.bf16.mxu0 0
    %740 = vmatpush1.bf16.msra.mxu0 %v673
    %741 = vmatprep.subr.bf16.mxu0 0
    %742 = vmatpush1.bf16.msra.mxu0 %v672
    %743 = vmatprep.subr.bf16.mxu0 0
    %744 = vmatpush1.bf16.msra.mxu0 %v671
    %745 = vmatprep.subr.bf16.mxu0 0
    %746 = vmatpush1.bf16.msra.mxu0 %v670
    %747 = vmatprep.subr.bf16.mxu0 0
    %748 = vmatpush1.bf16.msra.mxu0 %v669
    %749 = vmatprep.subr.bf16.mxu0 0
    %750 = vmatpush2.bf16.msra.mxu0 %v684
    %751 = vmatprep.subr.bf16.mxu0 0
    %752 = vmatpush2.bf16.msra.mxu0 %v683
    %753 = vmatprep.subr.bf16.mxu0 0
    %754 = vmatpush2.bf16.msra.mxu0 %v682
    %755 = vmatprep.subr.bf16.mxu0 0
    %756 = vmatpush2.bf16.msra.mxu0 %v681
    %757 = vmatprep.subr.bf16.mxu0 0
    %758 = vmatpush2.bf16.msra.mxu0 %v680
    %759 = vmatprep.subr.bf16.mxu0 0
    %760 = vmatpush2.bf16.msra.mxu0 %v679
    %761 = vmatprep.subr.bf16.mxu0 0
    %762 = vmatpush2.bf16.msra.mxu0 %v678
    %763 = vmatprep.subr.bf16.mxu0 0
    %764 = vmatpush2.bf16.msra.mxu0 %v677
    %765 = vmatprep.mubr.bf16.mxu0 %v414
    %766 = vmatmul.mubr.bf16.gmra.mxu0 %v413
    %v767 = vpop.f32.mrf.mxu0
    %v768 = vadd.f32 %v219, %v767
    %v769 = vpop.f32.mrf.mxu0
    %v770 = vpop.f32.mrf.mxu0
    %v771 = vadd.f32 %v219, %v770
    %v772 = vpop.f32.mrf.mxu0
    %773 = vmatprep.mubr.bf16.mxu0 %v418
    %774 = vmatmul.mubr.bf16.gmra.mxu0 %v417
    %v775 = vpop.f32.mrf.mxu0
    %v776 = vadd.f32 %v219, %v775
    %v777 = vpop.f32.mrf.mxu0
    %v778 = vpop.f32.mrf.mxu0
    %v779 = vadd.f32 %v219, %v778
    %v780 = vpop.f32.mrf.mxu0
    %781 = vmatprep.mubr.bf16.mxu0 %v422
    %782 = vmatmul.mubr.bf16.gmra.mxu0 %v421
    %v783 = vpop.f32.mrf.mxu0
    %v784 = vadd.f32 %v219, %v783
    %v785 = vpop.f32.mrf.mxu0
    %v786 = vpop.f32.mrf.mxu0
    %v787 = vadd.f32 %v219, %v786
    %v788 = vpop.f32.mrf.mxu0
    %789 = vmatprep.mubr.bf16.mxu0 %v426
    %790 = vmatmul.mubr.bf16.gmra.mxu0 %v425
    %v791 = vpop.f32.mrf.mxu0
    %v792 = vadd.f32 %v219, %v791
    %v793 = vpop.f32.mrf.mxu0
    %v794 = vpop.f32.mrf.mxu0
    %v795 = vadd.f32 %v219, %v794
    %v796 = vpop.f32.mrf.mxu0
    %797 = vmatprep.mubr.bf16.mxu0 %v430
    %798 = vmatmul.mubr.bf16.gmra.mxu0 %v429
    %v799 = vpop.f32.mrf.mxu0
    %v800 = vadd.f32 %v219, %v799
    %v801 = vpop.f32.mrf.mxu0
    %v802 = vpop.f32.mrf.mxu0
    %v803 = vadd.f32 %v219, %v802
    %v804 = vpop.f32.mrf.mxu0
    %805 = vmatprep.mubr.bf16.mxu0 %v434
    %806 = vmatmul.mubr.bf16.gmra.mxu0 %v433
    %v807 = vpop.f32.mrf.mxu0
    %v808 = vadd.f32 %v219, %v807
    %v809 = vpop.f32.mrf.mxu0
    %v810 = vpop.f32.mrf.mxu0
    %v811 = vadd.f32 %v219, %v810
    %v812 = vpop.f32.mrf.mxu0
    %813 = vmatprep.mubr.bf16.mxu0 %v438
    %814 = vmatmul.mubr.bf16.gmra.mxu0 %v437
    %v815 = vpop.f32.mrf.mxu0
    %v816 = vadd.f32 %v219, %v815
    %v817 = vpop.f32.mrf.mxu0
    %v818 = vpop.f32.mrf.mxu0
    %v819 = vadd.f32 %v219, %v818
    %v820 = vpop.f32.mrf.mxu0
    %821 = vmatprep.mubr.bf16.mxu0 %v442
    %822 = vmatmul.mubr.bf16.gmra.mxu0 %v441
    %v823 = vpop.f32.mrf.mxu0
    %v824 = vadd.f32 %v219, %v823
    %v825 = vpop.f32.mrf.mxu0
    %v826 = vpop.f32.mrf.mxu0
    %v827 = vadd.f32 %v219, %v826
    %v828 = vpop.f32.mrf.mxu0
    %829 = vmatprep.mubr.bf16.mxu0 %v446
    %830 = vmatmul.mubr.bf16.gmra.mxu0 %v445
    %v831 = vpop.f32.mrf.mxu0
    %v832 = vadd.f32 %v219, %v831
    %v833 = vpop.f32.mrf.mxu0
    %v834 = vpop.f32.mrf.mxu0
    %v835 = vadd.f32 %v219, %v834
    %v836 = vpop.f32.mrf.mxu0
    %837 = vmatprep.mubr.bf16.mxu0 %v450
    %838 = vmatmul.mubr.bf16.gmra.mxu0 %v449
    %v839 = vpop.f32.mrf.mxu0
    %v840 = vadd.f32 %v219, %v839
    %v841 = vpop.f32.mrf.mxu0
    %v842 = vpop.f32.mrf.mxu0
    %v843 = vadd.f32 %v219, %v842
    %v844 = vpop.f32.mrf.mxu0
    %845 = vmatprep.mubr.bf16.mxu0 %v454
    %846 = vmatmul.mubr.bf16.gmra.mxu0 %v453
    %v847 = vpop.f32.mrf.mxu0
    %v848 = vadd.f32 %v219, %v847
    %v849 = vpop.f32.mrf.mxu0
    %v850 = vpop.f32.mrf.mxu0
    %v851 = vadd.f32 %v219, %v850
    %v852 = vpop.f32.mrf.mxu0
    %853 = vmatprep.mubr.bf16.mxu0 %v458
    %854 = vmatmul.mubr.bf16.gmra.mxu0 %v457
    %v855 = vpop.f32.mrf.mxu0
    %v856 = vadd.f32 %v219, %v855
    %v857 = vpop.f32.mrf.mxu0
    %v858 = vpop.f32.mrf.mxu0
    %v859 = vadd.f32 %v219, %v858
    %v860 = vpop.f32.mrf.mxu0
    %861 = vmatprep.mubr.bf16.mxu0 %v462
    %862 = vmatmul.mubr.bf16.gmra.mxu0 %v461
    %v863 = vpop.f32.mrf.mxu0
    %v864 = vadd.f32 %v219, %v863
    %v865 = vpop.f32.mrf.mxu0
    %v866 = vpop.f32.mrf.mxu0
    %v867 = vadd.f32 %v219, %v866
    %v868 = vpop.f32.mrf.mxu0
    %869 = vmatprep.mubr.bf16.mxu0 %v466
    %870 = vmatmul.mubr.bf16.gmra.mxu0 %v465
    %v871 = vpop.f32.mrf.mxu0
    %v872 = vadd.f32 %v219, %v871
    %v873 = vpop.f32.mrf.mxu0
    %v874 = vpop.f32.mrf.mxu0
    %v875 = vadd.f32 %v219, %v874
    %v876 = vpop.f32.mrf.mxu0
    %877 = vmatprep.mubr.bf16.mxu0 %v470
    %878 = vmatmul.mubr.bf16.gmra.mxu0 %v469
    %v879 = vpop.f32.mrf.mxu0
    %v880 = vadd.f32 %v219, %v879
    %v881 = vpop.f32.mrf.mxu0
    %v882 = vpop.f32.mrf.mxu0
    %v883 = vadd.f32 %v219, %v882
    %v884 = vpop.f32.mrf.mxu0
    %885 = vmatprep.mubr.bf16.mxu0 %v474
    %886 = vmatmul.mubr.bf16.gmra.mxu0 %v473
    %v887 = vpop.f32.mrf.mxu0
    %v888 = vadd.f32 %v219, %v887
    %v889 = vpop.f32.mrf.mxu0
    %v890 = vpop.f32.mrf.mxu0
    %v891 = vadd.f32 %v219, %v890
    %v892 = vpop.f32.mrf.mxu0
    %893 = vdwg.mxu0
    %894 = vmatprep.subr.bf16.mxu0 0
    %895 = vmatpush1.bf16.msra.mxu0 %v692
    %896 = vmatprep.subr.bf16.mxu0 0
    %897 = vmatpush1.bf16.msra.mxu0 %v691
    %898 = vmatprep.subr.bf16.mxu0 0
    %899 = vmatpush1.bf16.msra.mxu0 %v690
    %900 = vmatprep.subr.bf16.mxu0 0
    %901 = vmatpush1.bf16.msra.mxu0 %v689
    %902 = vmatprep.subr.bf16.mxu0 0
    %903 = vmatpush1.bf16.msra.mxu0 %v688
    %904 = vmatprep.subr.bf16.mxu0 0
    %905 = vmatpush1.bf16.msra.mxu0 %v687
    %906 = vmatprep.subr.bf16.mxu0 0
    %907 = vmatpush1.bf16.msra.mxu0 %v686
    %908 = vmatprep.subr.bf16.mxu0 0
    %909 = vmatpush1.bf16.msra.mxu0 %v685
    %910 = vmatprep.subr.bf16.mxu0 0
    %911 = vmatpush2.bf16.msra.mxu0 %v700
    %912 = vmatprep.subr.bf16.mxu0 0
    %913 = vmatpush2.bf16.msra.mxu0 %v699
    %914 = vmatprep.subr.bf16.mxu0 0
    %915 = vmatpush2.bf16.msra.mxu0 %v698
    %916 = vmatprep.subr.bf16.mxu0 0
    %917 = vmatpush2.bf16.msra.mxu0 %v697
    %918 = vmatprep.subr.bf16.mxu0 0
    %919 = vmatpush2.bf16.msra.mxu0 %v696
    %920 = vmatprep.subr.bf16.mxu0 0
    %921 = vmatpush2.bf16.msra.mxu0 %v695
    %922 = vmatprep.subr.bf16.mxu0 0
    %923 = vmatpush2.bf16.msra.mxu0 %v694
    %924 = vmatprep.subr.bf16.mxu0 0
    %925 = vmatpush2.bf16.msra.mxu0 %v693
    %926 = vmatprep.mubr.bf16.mxu0 %v416
    %927 = vmatmul.mubr.bf16.gmra.mxu0 %v415
    %v928 = vpop.f32.mrf.mxu0
    %v929 = vadd.f32 %v768, %v928
    %v930 = vpop.f32.mrf.mxu0
    %v931 = vpop.f32.mrf.mxu0
    %v932 = vadd.f32 %v771, %v931
    %v933 = vpop.f32.mrf.mxu0
    %934 = vmatprep.mubr.bf16.mxu0 %v420
    %935 = vmatmul.mubr.bf16.gmra.mxu0 %v419
    %v936 = vpop.f32.mrf.mxu0
    %v937 = vadd.f32 %v776, %v936
    %v938 = vpop.f32.mrf.mxu0
    %v939 = vpop.f32.mrf.mxu0
    %v940 = vadd.f32 %v779, %v939
    %v941 = vpop.f32.mrf.mxu0
    %942 = vmatprep.mubr.bf16.mxu0 %v424
    %943 = vmatmul.mubr.bf16.gmra.mxu0 %v423
    %v944 = vpop.f32.mrf.mxu0
    %v945 = vadd.f32 %v784, %v944
    %v946 = vpop.f32.mrf.mxu0
    %v947 = vpop.f32.mrf.mxu0
    %v948 = vadd.f32 %v787, %v947
    %v949 = vpop.f32.mrf.mxu0
    %950 = vmatprep.mubr.bf16.mxu0 %v428
    %951 = vmatmul.mubr.bf16.gmra.mxu0 %v427
    %v952 = vpop.f32.mrf.mxu0
    %v953 = vadd.f32 %v792, %v952
    %v954 = vpop.f32.mrf.mxu0
    %v955 = vpop.f32.mrf.mxu0
    %v956 = vadd.f32 %v795, %v955
    %v957 = vpop.f32.mrf.mxu0
    %958 = vmatprep.mubr.bf16.mxu0 %v432
    %959 = vmatmul.mubr.bf16.gmra.mxu0 %v431
    %v960 = vpop.f32.mrf.mxu0
    %v961 = vadd.f32 %v800, %v960
    %v962 = vpop.f32.mrf.mxu0
    %v963 = vpop.f32.mrf.mxu0
    %v964 = vadd.f32 %v803, %v963
    %v965 = vpop.f32.mrf.mxu0
    %966 = vmatprep.mubr.bf16.mxu0 %v436
    %967 = vmatmul.mubr.bf16.gmra.mxu0 %v435
    %v968 = vpop.f32.mrf.mxu0
    %v969 = vadd.f32 %v808, %v968
    %v970 = vpop.f32.mrf.mxu0
    %v971 = vpop.f32.mrf.mxu0
    %v972 = vadd.f32 %v811, %v971
    %v973 = vpop.f32.mrf.mxu0
    %974 = vmatprep.mubr.bf16.mxu0 %v440
    %975 = vmatmul.mubr.bf16.gmra.mxu0 %v439
    %v976 = vpop.f32.mrf.mxu0
    %v977 = vadd.f32 %v816, %v976
    %v978 = vpop.f32.mrf.mxu0
    %v979 = vpop.f32.mrf.mxu0
    %v980 = vadd.f32 %v819, %v979
    %v981 = vpop.f32.mrf.mxu0
    %982 = vmatprep.mubr.bf16.mxu0 %v444
    %983 = vmatmul.mubr.bf16.gmra.mxu0 %v443
    %v984 = vpop.f32.mrf.mxu0
    %v985 = vadd.f32 %v824, %v984
    %v986 = vpop.f32.mrf.mxu0
    %v987 = vpop.f32.mrf.mxu0
    %v988 = vadd.f32 %v827, %v987
    %v989 = vpop.f32.mrf.mxu0
    %990 = vmatprep.mubr.bf16.mxu0 %v448
    %991 = vmatmul.mubr.bf16.gmra.mxu0 %v447
    %v992 = vpop.f32.mrf.mxu0
    %v993 = vadd.f32 %v832, %v992
    %v994 = vpop.f32.mrf.mxu0
    %v995 = vpop.f32.mrf.mxu0
    %v996 = vadd.f32 %v835, %v995
    %v997 = vpop.f32.mrf.mxu0
    %998 = vmatprep.mubr.bf16.mxu0 %v452
    %999 = vmatmul.mubr.bf16.gmra.mxu0 %v451
    %v1000 = vpop.f32.mrf.mxu0
    %v1001 = vadd.f32 %v840, %v1000
    %v1002 = vpop.f32.mrf.mxu0
    %v1003 = vpop.f32.mrf.mxu0
    %v1004 = vadd.f32 %v843, %v1003
    %v1005 = vpop.f32.mrf.mxu0
    %1006 = vmatprep.mubr.bf16.mxu0 %v456
    %1007 = vmatmul.mubr.bf16.gmra.mxu0 %v455
    %v1008 = vpop.f32.mrf.mxu0
    %v1009 = vadd.f32 %v848, %v1008
    %v1010 = vpop.f32.mrf.mxu0
    %v1011 = vpop.f32.mrf.mxu0
    %v1012 = vadd.f32 %v851, %v1011
    %v1013 = vpop.f32.mrf.mxu0
    %1014 = vmatprep.mubr.bf16.mxu0 %v460
    %1015 = vmatmul.mubr.bf16.gmra.mxu0 %v459
    %v1016 = vpop.f32.mrf.mxu0
    %v1017 = vadd.f32 %v856, %v1016
    %v1018 = vpop.f32.mrf.mxu0
    %v1019 = vpop.f32.mrf.mxu0
    %v1020 = vadd.f32 %v859, %v1019
    %v1021 = vpop.f32.mrf.mxu0
    %1022 = vmatprep.mubr.bf16.mxu0 %v464
    %1023 = vmatmul.mubr.bf16.gmra.mxu0 %v463
    %v1024 = vpop.f32.mrf.mxu0
    %v1025 = vadd.f32 %v864, %v1024
    %v1026 = vpop.f32.mrf.mxu0
    %v1027 = vpop.f32.mrf.mxu0
    %v1028 = vadd.f32 %v867, %v1027
    %v1029 = vpop.f32.mrf.mxu0
    %1030 = vmatprep.mubr.bf16.mxu0 %v468
    %1031 = vmatmul.mubr.bf16.gmra.mxu0 %v467
    %v1032 = vpop.f32.mrf.mxu0
    %v1033 = vadd.f32 %v872, %v1032
    %v1034 = vpop.f32.mrf.mxu0
    %v1035 = vpop.f32.mrf.mxu0
    %v1036 = vadd.f32 %v875, %v1035
    %v1037 = vpop.f32.mrf.mxu0
    %1038 = vmatprep.mubr.bf16.mxu0 %v472
    %1039 = vmatmul.mubr.bf16.gmra.mxu0 %v471
    %v1040 = vpop.f32.mrf.mxu0
    %v1041 = vadd.f32 %v880, %v1040
    %v1042 = vpop.f32.mrf.mxu0
    %v1043 = vpop.f32.mrf.mxu0
    %v1044 = vadd.f32 %v883, %v1043
    %v1045 = vpop.f32.mrf.mxu0
    %1046 = vmatprep.mubr.bf16.mxu0 %v476
    %1047 = vmatmul.mubr.bf16.gmra.mxu0 %v475
    %v1048 = vpop.f32.mrf.mxu0
    %v1049 = vadd.f32 %v888, %v1048
    %v1050 = vpop.f32.mrf.mxu0
    %v1051 = vpop.f32.mrf.mxu0
    %v1052 = vadd.f32 %v891, %v1051
    %v1053 = vpop.f32.mrf.mxu0
    %1054 = vdwg.mxu0
    %v1055 = vmul.f32 %v929, 0.5
    %v1056 = vmul.f32 %v932, 0.5
    %v1057 = vmul.f32 %v937, 0.5
    %v1058 = vmul.f32 %v940, 0.5
    %v1059 = vmul.f32 %v945, 0.5
    %v1060 = vmul.f32 %v948, 0.5
    %v1061 = vmul.f32 %v953, 0.5
    %v1062 = vmul.f32 %v956, 0.5
    %v1063 = vmul.f32 %v961, 0.5
    %v1064 = vmul.f32 %v964, 0.5
    %v1065 = vmul.f32 %v969, 0.5
    %v1066 = vmul.f32 %v972, 0.5
    %v1067 = vmul.f32 %v977, 0.5
    %v1068 = vmul.f32 %v980, 0.5
    %v1069 = vmul.f32 %v985, 0.5
    %v1070 = vmul.f32 %v988, 0.5
    %v1071 = vmul.f32 %v993, 0.5
    %v1072 = vmul.f32 %v996, 0.5
    %v1073 = vmul.f32 %v1001, 0.5
    %v1074 = vmul.f32 %v1004, 0.5
    %v1075 = vmul.f32 %v1009, 0.5
    %v1076 = vmul.f32 %v1012, 0.5
    %v1077 = vmul.f32 %v1017, 0.5
    %v1078 = vmul.f32 %v1020, 0.5
    %v1079 = vmul.f32 %v1025, 0.5
    %v1080 = vmul.f32 %v1028, 0.5
    %v1081 = vmul.f32 %v1033, 0.5
    %v1082 = vmul.f32 %v1036, 0.5
    %v1083 = vmul.f32 %v1041, 0.5
    %v1084 = vmul.f32 %v1044, 0.5
    %v1085 = vmul.f32 %v1049, 0.5
    %v1086 = vmul.f32 %v1052, 0.5
    %v1087 = vmul.f32 %v929, 0.044715
    %v1088 = vmul.f32 %v932, 0.044715
    %v1089 = vmul.f32 %v937, 0.044715
    %v1090 = vmul.f32 %v940, 0.044715
    %v1091 = vmul.f32 %v945, 0.044715
    %v1092 = vmul.f32 %v948, 0.044715
    %v1093 = vmul.f32 %v953, 0.044715
    %v1094 = vmul.f32 %v956, 0.044715
    %v1095 = vmul.f32 %v961, 0.044715
    %v1096 = vmul.f32 %v964, 0.044715
    %v1097 = vmul.f32 %v969, 0.044715
    %v1098 = vmul.f32 %v972, 0.044715
    %v1099 = vmul.f32 %v977, 0.044715
    %v1100 = vmul.f32 %v980, 0.044715
    %v1101 = vmul.f32 %v985, 0.044715
    %v1102 = vmul.f32 %v988, 0.044715
    %v1103 = vmul.f32 %v993, 0.044715
    %v1104 = vmul.f32 %v996, 0.044715
    %v1105 = vmul.f32 %v1001, 0.044715
    %v1106 = vmul.f32 %v1004, 0.044715
    %v1107 = vmul.f32 %v1009, 0.044715
    %v1108 = vmul.f32 %v1012, 0.044715
    %v1109 = vmul.f32 %v1017, 0.044715
    %v1110 = vmul.f32 %v1020, 0.044715
    %v1111 = vmul.f32 %v1025, 0.044715
    %v1112 = vmul.f32 %v1028, 0.044715
    %v1113 = vmul.f32 %v1033, 0.044715
    %v1114 = vmul.f32 %v1036, 0.044715
    %v1115 = vmul.f32 %v1041, 0.044715
    %v1116 = vmul.f32 %v1044, 0.044715
    %v1117 = vmul.f32 %v1049, 0.044715
    %v1118 = vmul.f32 %v1052, 0.044715
    %v1119 = vmul.f32 %v1087, %v929
    %v1120 = vmul.f32 %v1088, %v932
    %v1121 = vmul.f32 %v1089, %v937
    %v1122 = vmul.f32 %v1090, %v940
    %v1123 = vmul.f32 %v1091, %v945
    %v1124 = vmul.f32 %v1092, %v948
    %v1125 = vmul.f32 %v1093, %v953
    %v1126 = vmul.f32 %v1094, %v956
    %v1127 = vmul.f32 %v1095, %v961
    %v1128 = vmul.f32 %v1096, %v964
    %v1129 = vmul.f32 %v1097, %v969
    %v1130 = vmul.f32 %v1098, %v972
    %v1131 = vmul.f32 %v1099, %v977
    %v1132 = vmul.f32 %v1100, %v980
    %v1133 = vmul.f32 %v1101, %v985
    %v1134 = vmul.f32 %v1102, %v988
    %v1135 = vmul.f32 %v1103, %v993
    %v1136 = vmul.f32 %v1104, %v996
    %v1137 = vmul.f32 %v1105, %v1001
    %v1138 = vmul.f32 %v1106, %v1004
    %v1139 = vmul.f32 %v1107, %v1009
    %v1140 = vmul.f32 %v1108, %v1012
    %v1141 = vmul.f32 %v1109, %v1017
    %v1142 = vmul.f32 %v1110, %v1020
    %v1143 = vmul.f32 %v1111, %v1025
    %v1144 = vmul.f32 %v1112, %v1028
    %v1145 = vmul.f32 %v1113, %v1033
    %v1146 = vmul.f32 %v1114, %v1036
    %v1147 = vmul.f32 %v1115, %v1041
    %v1148 = vmul.f32 %v1116, %v1044
    %v1149 = vmul.f32 %v1117, %v1049
    %v1150 = vmul.f32 %v1118, %v1052
    %v1151 = vmul.f32 %v1119, %v929
    %v1152 = vmul.f32 %v1120, %v932
    %v1153 = vmul.f32 %v1121, %v937
    %v1154 = vmul.f32 %v1122, %v940
    %v1155 = vmul.f32 %v1123, %v945
    %v1156 = vmul.f32 %v1124, %v948
    %v1157 = vmul.f32 %v1125, %v953
    %v1158 = vmul.f32 %v1126, %v956
    %v1159 = vmul.f32 %v1127, %v961
    %v1160 = vmul.f32 %v1128, %v964
    %v1161 = vmul.f32 %v1129, %v969
    %v1162 = vmul.f32 %v1130, %v972
    %v1163 = vmul.f32 %v1131, %v977
    %v1164 = vmul.f32 %v1132, %v980
    %v1165 = vmul.f32 %v1133, %v985
    %v1166 = vmul.f32 %v1134, %v988
    %v1167 = vmul.f32 %v1135, %v993
    %v1168 = vmul.f32 %v1136, %v996
    %v1169 = vmul.f32 %v1137, %v1001
    %v1170 = vmul.f32 %v1138, %v1004
    %v1171 = vmul.f32 %v1139, %v1009
    %v1172 = vmul.f32 %v1140, %v1012
    %v1173 = vmul.f32 %v1141, %v1017
    %v1174 = vmul.f32 %v1142, %v1020
    %v1175 = vmul.f32 %v1143, %v1025
    %v1176 = vmul.f32 %v1144, %v1028
    %v1177 = vmul.f32 %v1145, %v1033
    %v1178 = vmul.f32 %v1146, %v1036
    %v1179 = vmul.f32 %v1147, %v1041
    %v1180 = vmul.f32 %v1148, %v1044
    %v1181 = vmul.f32 %v1149, %v1049
    %v1182 = vmul.f32 %v1150, %v1052
    %v1183 = vadd.f32 %v929, %v1151
    %v1184 = vadd.f32 %v932, %v1152
    %v1185 = vadd.f32 %v937, %v1153
    %v1186 = vadd.f32 %v940, %v1154
    %v1187 = vadd.f32 %v945, %v1155
    %v1188 = vadd.f32 %v948, %v1156
    %v1189 = vadd.f32 %v953, %v1157
    %v1190 = vadd.f32 %v956, %v1158
    %v1191 = vadd.f32 %v961, %v1159
    %v1192 = vadd.f32 %v964, %v1160
    %v1193 = vadd.f32 %v969, %v1161
    %v1194 = vadd.f32 %v972, %v1162
    %v1195 = vadd.f32 %v977, %v1163
    %v1196 = vadd.f32 %v980, %v1164
    %v1197 = vadd.f32 %v985, %v1165
    %v1198 = vadd.f32 %v988, %v1166
    %v1199 = vadd.f32 %v993, %v1167
    %v1200 = vadd.f32 %v996, %v1168
    %v1201 = vadd.f32 %v1001, %v1169
    %v1202 = vadd.f32 %v1004, %v1170
    %v1203 = vadd.f32 %v1009, %v1171
    %v1204 = vadd.f32 %v1012, %v1172
    %v1205 = vadd.f32 %v1017, %v1173
    %v1206 = vadd.f32 %v1020, %v1174
    %v1207 = vadd.f32 %v1025, %v1175
    %v1208 = vadd.f32 %v1028, %v1176
    %v1209 = vadd.f32 %v1033, %v1177
    %v1210 = vadd.f32 %v1036, %v1178
    %v1211 = vadd.f32 %v1041, %v1179
    %v1212 = vadd.f32 %v1044, %v1180
    %v1213 = vadd.f32 %v1049, %v1181
    %v1214 = vadd.f32 %v1052, %v1182
    %v1215 = vmul.f32 %v1183, 0.7978846
    %v1216 = vmul.f32 %v1184, 0.7978846
    %v1217 = vmul.f32 %v1185, 0.7978846
    %v1218 = vmul.f32 %v1186, 0.7978846
    %v1219 = vmul.f32 %v1187, 0.7978846
    %v1220 = vmul.f32 %v1188, 0.7978846
    %v1221 = vmul.f32 %v1189, 0.7978846
    %v1222 = vmul.f32 %v1190, 0.7978846
    %v1223 = vmul.f32 %v1191, 0.7978846
    %v1224 = vmul.f32 %v1192, 0.7978846
    %v1225 = vmul.f32 %v1193, 0.7978846
    %v1226 = vmul.f32 %v1194, 0.7978846
    %v1227 = vmul.f32 %v1195, 0.7978846
    %v1228 = vmul.f32 %v1196, 0.7978846
    %v1229 = vmul.f32 %v1197, 0.7978846
    %v1230 = vmul.f32 %v1198, 0.7978846
    %v1231 = vmul.f32 %v1199, 0.7978846
    %v1232 = vmul.f32 %v1200, 0.7978846
    %v1233 = vmul.f32 %v1201, 0.7978846
    %v1234 = vmul.f32 %v1202, 0.7978846
    %v1235 = vmul.f32 %v1203, 0.7978846
    %v1236 = vmul.f32 %v1204, 0.7978846
    %v1237 = vmul.f32 %v1205, 0.7978846
    %v1238 = vmul.f32 %v1206, 0.7978846
    %v1239 = vmul.f32 %v1207, 0.7978846
    %v1240 = vmul.f32 %v1208, 0.7978846
    %v1241 = vmul.f32 %v1209, 0.7978846
    %v1242 = vmul.f32 %v1210, 0.7978846
    %v1243 = vmul.f32 %v1211, 0.7978846
    %v1244 = vmul.f32 %v1212, 0.7978846
    %v1245 = vmul.f32 %v1213, 0.7978846
    %v1246 = vmul.f32 %v1214, 0.7978846
    %v1247 = vtanh.pop %v1215
    %v1248 = vtanh.pop %v1216
    %v1249 = vtanh.pop %v1217
    %v1250 = vtanh.pop %v1218
    %v1251 = vtanh.pop %v1219
    %v1252 = vtanh.pop %v1220
    %v1253 = vtanh.pop %v1221
    %v1254 = vtanh.pop %v1222
    %v1255 = vtanh.pop %v1223
    %v1256 = vtanh.pop %v1224
    %v1257 = vtanh.pop %v1225
    %v1258 = vtanh.pop %v1226
    %v1259 = vtanh.pop %v1227
    %v1260 = vtanh.pop %v1228
    %v1261 = vtanh.pop %v1229
    %v1262 = vtanh.pop %v1230
    %v1263 = vtanh.pop %v1231
    %v1264 = vtanh.pop %v1232
    %v1265 = vtanh.pop %v1233
    %v1266 = vtanh.pop %v1234
    %v1267 = vtanh.pop %v1235
    %v1268 = vtanh.pop %v1236
    %v1269 = vtanh.pop %v1237
    %v1270 = vtanh.pop %v1238
    %v1271 = vtanh.pop %v1239
    %v1272 = vtanh.pop %v1240
    %v1273 = vtanh.pop %v1241
    %v1274 = vtanh.pop %v1242
    %v1275 = vtanh.pop %v1243
    %v1276 = vtanh.pop %v1244
    %v1277 = vtanh.pop %v1245
    %v1278 = vtanh.pop %v1246
    %v1279 = vadd.f32 %v1247, 1.0
    %v1280 = vadd.f32 %v1248, 1.0
    %v1281 = vadd.f32 %v1249, 1.0
    %v1282 = vadd.f32 %v1250, 1.0
    %v1283 = vadd.f32 %v1251, 1.0
    %v1284 = vadd.f32 %v1252, 1.0
    %v1285 = vadd.f32 %v1253, 1.0
    %v1286 = vadd.f32 %v1254, 1.0
    %v1287 = vadd.f32 %v1255, 1.0
    %v1288 = vadd.f32 %v1256, 1.0
    %v1289 = vadd.f32 %v1257, 1.0
    %v1290 = vadd.f32 %v1258, 1.0
    %v1291 = vadd.f32 %v1259, 1.0
    %v1292 = vadd.f32 %v1260, 1.0
    %v1293 = vadd.f32 %v1261, 1.0
    %v1294 = vadd.f32 %v1262, 1.0
    %v1295 = vadd.f32 %v1263, 1.0
    %v1296 = vadd.f32 %v1264, 1.0
    %v1297 = vadd.f32 %v1265, 1.0
    %v1298 = vadd.f32 %v1266, 1.0
    %v1299 = vadd.f32 %v1267, 1.0
    %v1300 = vadd.f32 %v1268, 1.0
    %v1301 = vadd.f32 %v1269, 1.0
    %v1302 = vadd.f32 %v1270, 1.0
    %v1303 = vadd.f32 %v1271, 1.0
    %v1304 = vadd.f32 %v1272, 1.0
    %v1305 = vadd.f32 %v1273, 1.0
    %v1306 = vadd.f32 %v1274, 1.0
    %v1307 = vadd.f32 %v1275, 1.0
    %v1308 = vadd.f32 %v1276, 1.0
    %v1309 = vadd.f32 %v1277, 1.0
    %v1310 = vadd.f32 %v1278, 1.0
    %v1311 = vmul.f32 %v1055, %v1279
    %v1312 = vmul.f32 %v1056, %v1280
    %v1313 = vmul.f32 %v1057, %v1281
    %v1314 = vmul.f32 %v1058, %v1282
    %v1315 = vmul.f32 %v1059, %v1283
    %v1316 = vmul.f32 %v1060, %v1284
    %v1317 = vmul.f32 %v1061, %v1285
    %v1318 = vmul.f32 %v1062, %v1286
    %v1319 = vmul.f32 %v1063, %v1287
    %v1320 = vmul.f32 %v1064, %v1288
    %v1321 = vmul.f32 %v1065, %v1289
    %v1322 = vmul.f32 %v1066, %v1290
    %v1323 = vmul.f32 %v1067, %v1291
    %v1324 = vmul.f32 %v1068, %v1292
    %v1325 = vmul.f32 %v1069, %v1293
    %v1326 = vmul.f32 %v1070, %v1294
    %v1327 = vmul.f32 %v1071, %v1295
    %v1328 = vmul.f32 %v1072, %v1296
    %v1329 = vmul.f32 %v1073, %v1297
    %v1330 = vmul.f32 %v1074, %v1298
    %v1331 = vmul.f32 %v1075, %v1299
    %v1332 = vmul.f32 %v1076, %v1300
    %v1333 = vmul.f32 %v1077, %v1301
    %v1334 = vmul.f32 %v1078, %v1302
    %v1335 = vmul.f32 %v1079, %v1303
    %v1336 = vmul.f32 %v1080, %v1304
    %v1337 = vmul.f32 %v1081, %v1305
    %v1338 = vmul.f32 %v1082, %v1306
    %v1339 = vmul.f32 %v1083, %v1307
    %v1340 = vmul.f32 %v1084, %v1308
    %v1341 = vmul.f32 %v1085, %v1309
    %v1342 = vmul.f32 %v1086, %v1310
    %v1343 = vlaneseq
    %v1344 = vand.u32 %v1343, 127
    %vm1345 = vcmp.eq.s32.totalorder %v1344, 127
    %v1346 = vld [vmem:[%s1] sm:$0xff]
    %v1347 = vld [vmem:[%s1 + $0x8] sm:$0xff]
    %v1348 = vld [vmem:[%s1 + $0x10] sm:$0xff]
    %v1349 = vld [vmem:[%s1 + $0x18] sm:$0xff]
    %v1350 = vld [vmem:[%s1 + $0x20] sm:$0xff]
    %v1351 = vld [vmem:[%s1 + $0x28] sm:$0xff]
    %v1352 = vld [vmem:[%s1 + $0x30] sm:$0xff]
    %v1353 = vld [vmem:[%s1 + $0x38] sm:$0xff]
    %v1354 = vld [vmem:[%s1 + $0x40] sm:$0xff]
    %v1355 = vld [vmem:[%s1 + $0x48] sm:$0xff]
    %v1356 = vld [vmem:[%s1 + $0x50] sm:$0xff]
    %v1357 = vld [vmem:[%s1 + $0x58] sm:$0xff]
    %v1358 = vld [vmem:[%s1 + $0x60] sm:$0xff]
    %v1359 = vld [vmem:[%s1 + $0x68] sm:$0xff]
    %v1360 = vld [vmem:[%s1 + $0x70] sm:$0xff]
    %v1361 = vld [vmem:[%s1 + $0x78] sm:$0xff]
    %v1362 = vld [vmem:[%s1 + $0x80] sm:$0xff]
    %v1363 = vld [vmem:[%s1 + $0x88] sm:$0xff]
    %v1364 = vld [vmem:[%s1 + $0x90] sm:$0xff]
    %v1365 = vld [vmem:[%s1 + $0x98] sm:$0xff]
    %v1366 = vld [vmem:[%s1 + $0xa0] sm:$0xff]
    %v1367 = vld [vmem:[%s1 + $0xa8] sm:$0xff]
    %v1368 = vld [vmem:[%s1 + $0xb0] sm:$0xff]
    %v1369 = vld [vmem:[%s1 + $0xb8] sm:$0xff]
    %v1370 = vld [vmem:[%s1 + $0xc0] sm:$0xff]
    %v1371 = vld [vmem:[%s1 + $0xc8] sm:$0xff]
    %v1372 = vld [vmem:[%s1 + $0xd0] sm:$0xff]
    %v1373 = vld [vmem:[%s1 + $0xd8] sm:$0xff]
    %v1374 = vld [vmem:[%s1 + $0xe0] sm:$0xff]
    %v1375 = vld [vmem:[%s1 + $0xe8] sm:$0xff]
    %v1376 = vld [vmem:[%s1 + $0xf0] sm:$0xff]
    %v1377 = vld [vmem:[%s1 + $0xf8] sm:$0xff]
    %1379 = vset.pattern.permute.xlu0 0
    %1380 = vperm.xlu0 %1379, %v1346
    %v1381 = vpop.permute.xlu0 %1380
    %1384 = vset.pattern.permute.xlu0 0
    %1385 = vperm.xlu0 %1384, %v1347
    %v1386 = vpop.permute.xlu0 %1385
    %1389 = vset.pattern.permute.xlu0 0
    %1390 = vperm.xlu0 %1389, %v1348
    %v1391 = vpop.permute.xlu0 %1390
    %1394 = vset.pattern.permute.xlu0 0
    %1395 = vperm.xlu0 %1394, %v1349
    %v1396 = vpop.permute.xlu0 %1395
    %1399 = vset.pattern.permute.xlu0 0
    %1400 = vperm.xlu0 %1399, %v1350
    %v1401 = vpop.permute.xlu0 %1400
    %1404 = vset.pattern.permute.xlu0 0
    %1405 = vperm.xlu0 %1404, %v1351
    %v1406 = vpop.permute.xlu0 %1405
    %1409 = vset.pattern.permute.xlu0 0
    %1410 = vperm.xlu0 %1409, %v1352
    %v1411 = vpop.permute.xlu0 %1410
    %1414 = vset.pattern.permute.xlu0 0
    %1415 = vperm.xlu0 %1414, %v1353
    %v1416 = vpop.permute.xlu0 %1415
    %1419 = vset.pattern.permute.xlu0 0
    %1420 = vperm.xlu0 %1419, %v1354
    %v1421 = vpop.permute.xlu0 %1420
    %1424 = vset.pattern.permute.xlu0 0
    %1425 = vperm.xlu0 %1424, %v1355
    %v1426 = vpop.permute.xlu0 %1425
    %1429 = vset.pattern.permute.xlu0 0
    %1430 = vperm.xlu0 %1429, %v1356
    %v1431 = vpop.permute.xlu0 %1430
    %1434 = vset.pattern.permute.xlu0 0
    %1435 = vperm.xlu0 %1434, %v1357
    %v1436 = vpop.permute.xlu0 %1435
    %1439 = vset.pattern.permute.xlu0 0
    %1440 = vperm.xlu0 %1439, %v1358
    %v1441 = vpop.permute.xlu0 %1440
    %1444 = vset.pattern.permute.xlu0 0
    %1445 = vperm.xlu0 %1444, %v1359
    %v1446 = vpop.permute.xlu0 %1445
    %1449 = vset.pattern.permute.xlu0 0
    %1450 = vperm.xlu0 %1449, %v1360
    %v1451 = vpop.permute.xlu0 %1450
    %1454 = vset.pattern.permute.xlu0 0
    %1455 = vperm.xlu0 %1454, %v1361
    %v1456 = vpop.permute.xlu0 %1455
    %1459 = vset.pattern.permute.xlu0 0
    %1460 = vperm.xlu0 %1459, %v1362
    %v1461 = vpop.permute.xlu0 %1460
    %1464 = vset.pattern.permute.xlu0 0
    %1465 = vperm.xlu0 %1464, %v1363
    %v1466 = vpop.permute.xlu0 %1465
    %1469 = vset.pattern.permute.xlu0 0
    %1470 = vperm.xlu0 %1469, %v1364
    %v1471 = vpop.permute.xlu0 %1470
    %1474 = vset.pattern.permute.xlu0 0
    %1475 = vperm.xlu0 %1474, %v1365
    %v1476 = vpop.permute.xlu0 %1475
    %1479 = vset.pattern.permute.xlu0 0
    %1480 = vperm.xlu0 %1479, %v1366
    %v1481 = vpop.permute.xlu0 %1480
    %1484 = vset.pattern.permute.xlu0 0
    %1485 = vperm.xlu0 %1484, %v1367
    %v1486 = vpop.permute.xlu0 %1485
    %1489 = vset.pattern.permute.xlu0 0
    %1490 = vperm.xlu0 %1489, %v1368
    %v1491 = vpop.permute.xlu0 %1490
    %1494 = vset.pattern.permute.xlu0 0
    %1495 = vperm.xlu0 %1494, %v1369
    %v1496 = vpop.permute.xlu0 %1495
    %1499 = vset.pattern.permute.xlu0 0
    %1500 = vperm.xlu0 %1499, %v1370
    %v1501 = vpop.permute.xlu0 %1500
    %1504 = vset.pattern.permute.xlu0 0
    %1505 = vperm.xlu0 %1504, %v1371
    %v1506 = vpop.permute.xlu0 %1505
    %1509 = vset.pattern.permute.xlu0 0
    %1510 = vperm.xlu0 %1509, %v1372
    %v1511 = vpop.permute.xlu0 %1510
    %1514 = vset.pattern.permute.xlu0 0
    %1515 = vperm.xlu0 %1514, %v1373
    %v1516 = vpop.permute.xlu0 %1515
    %1519 = vset.pattern.permute.xlu0 0
    %1520 = vperm.xlu0 %1519, %v1374
    %v1521 = vpop.permute.xlu0 %1520
    %1524 = vset.pattern.permute.xlu0 0
    %1525 = vperm.xlu0 %1524, %v1375
    %v1526 = vpop.permute.xlu0 %1525
    %1529 = vset.pattern.permute.xlu0 0
    %1530 = vperm.xlu0 %1529, %v1376
    %v1531 = vpop.permute.xlu0 %1530
    %1534 = vset.pattern.permute.xlu0 0
    %1535 = vperm.xlu0 %1534, %v1377
    %v1536 = vpop.permute.xlu0 %1535
    %v1538 = vsel %vm1345, %v1381, %v1311
    %v1539 = vsel %vm1345, %v1386, %v1312
    %v1540 = vsel %vm1345, %v1391, %v1313
    %v1541 = vsel %vm1345, %v1396, %v1314
    %v1542 = vsel %vm1345, %v1401, %v1315
    %v1543 = vsel %vm1345, %v1406, %v1316
    %v1544 = vsel %vm1345, %v1411, %v1317
    %v1545 = vsel %vm1345, %v1416, %v1318
    %v1546 = vsel %vm1345, %v1421, %v1319
    %v1547 = vsel %vm1345, %v1426, %v1320
    %v1548 = vsel %vm1345, %v1431, %v1321
    %v1549 = vsel %vm1345, %v1436, %v1322
    %v1550 = vsel %vm1345, %v1441, %v1323
    %v1551 = vsel %vm1345, %v1446, %v1324
    %v1552 = vsel %vm1345, %v1451, %v1325
    %v1553 = vsel %vm1345, %v1456, %v1326
    %v1554 = vsel %vm1345, %v1461, %v1327
    %v1555 = vsel %vm1345, %v1466, %v1328
    %v1556 = vsel %vm1345, %v1471, %v1329
    %v1557 = vsel %vm1345, %v1476, %v1330
    %v1558 = vsel %vm1345, %v1481, %v1331
    %v1559 = vsel %vm1345, %v1486, %v1332
    %v1560 = vsel %vm1345, %v1491, %v1333
    %v1561 = vsel %vm1345, %v1496, %v1334
    %v1562 = vsel %vm1345, %v1501, %v1335
    %v1563 = vsel %vm1345, %v1506, %v1336
    %v1564 = vsel %vm1345, %v1511, %v1337
    %v1565 = vsel %vm1345, %v1516, %v1338
    %v1566 = vsel %vm1345, %v1521, %v1339
    %v1567 = vsel %vm1345, %v1526, %v1340
    %v1568 = vsel %vm1345, %v1531, %v1341
    %v1569 = vsel %vm1345, %v1536, %v1342
    %v1570 = vpack.c.bf16 %v1539, %v1538
    %v1571 = vpack.c.bf16 %v1541, %v1540
    %v1572 = vpack.c.bf16 %v1543, %v1542
    %v1573 = vpack.c.bf16 %v1545, %v1544
    %v1574 = vpack.c.bf16 %v1547, %v1546
    %v1575 = vpack.c.bf16 %v1549, %v1548
    %v1576 = vpack.c.bf16 %v1551, %v1550
    %v1577 = vpack.c.bf16 %v1553, %v1552
    %v1578 = vpack.c.bf16 %v1555, %v1554
    %v1579 = vpack.c.bf16 %v1557, %v1556
    %v1580 = vpack.c.bf16 %v1559, %v1558
    %v1581 = vpack.c.bf16 %v1561, %v1560
    %v1582 = vpack.c.bf16 %v1563, %v1562
    %v1583 = vpack.c.bf16 %v1565, %v1564
    %v1584 = vpack.c.bf16 %v1567, %v1566
    %v1585 = vpack.c.bf16 %v1569, %v1568
    %v1586 = vld [vmem:[%s6] sm:$0xf]
    %v1587 = vld [vmem:[%s6 + $0x4] sm:$0xf]
    %v1588 = vld [vmem:[%s6 + $0x8] sm:$0xf]
    %v1589 = vld [vmem:[%s6 + $0xc] sm:$0xf]
    %v1590 = vld [vmem:[%s6 + $0x10] sm:$0xf]
    %v1591 = vld [vmem:[%s6 + $0x14] sm:$0xf]
    %v1592 = vld [vmem:[%s6 + $0x18] sm:$0xf]
    %v1593 = vld [vmem:[%s6 + $0x1c] sm:$0xf]
    %v1594 = vld [vmem:[%s6 + $0x20] sm:$0xf]
    %v1595 = vld [vmem:[%s6 + $0x24] sm:$0xf]
    %v1596 = vld [vmem:[%s6 + $0x28] sm:$0xf]
    %v1597 = vld [vmem:[%s6 + $0x2c] sm:$0xf]
    %v1598 = vld [vmem:[%s6 + $0x30] sm:$0xf]
    %v1599 = vld [vmem:[%s6 + $0x34] sm:$0xf]
    %v1600 = vld [vmem:[%s6 + $0x38] sm:$0xf]
    %v1601 = vld [vmem:[%s6 + $0x3c] sm:$0xf]
    %v1602 = vld [vmem:[%s7] sm:$0x1]
    %v1604 = vlaneseq
    %v1605 = vshrl.u32 %v1604, 7
    %v1606 = vsub.s32 0, %v1605
    %v1607 = vrot.slane %v1602, %v1606
    %v1625 = vunpack.c.l.b16 %v1586
    %v1626 = vunpack.c.l.b16 %v1587
    %v1627 = vunpack.c.l.b16 %v1588
    %v1628 = vunpack.c.l.b16 %v1589
    %v1629 = vunpack.c.l.b16 %v1590
    %v1630 = vunpack.c.l.b16 %v1591
    %v1631 = vunpack.c.l.b16 %v1592
    %v1632 = vunpack.c.l.b16 %v1593
    %v1633 = vunpack.c.l.b16 %v1594
    %v1634 = vunpack.c.l.b16 %v1595
    %v1635 = vunpack.c.l.b16 %v1596
    %v1636 = vunpack.c.l.b16 %v1597
    %v1637 = vunpack.c.l.b16 %v1598
    %v1638 = vunpack.c.l.b16 %v1599
    %v1639 = vunpack.c.l.b16 %v1600
    %v1640 = vunpack.c.l.b16 %v1601
    %v1641 = vpack.c.b16 %v1626, %v1625
    %v1642 = vpack.c.b16 %v1628, %v1627
    %v1643 = vpack.c.b16 %v1630, %v1629
    %v1644 = vpack.c.b16 %v1632, %v1631
    %v1645 = vpack.c.b16 %v1634, %v1633
    %v1646 = vpack.c.b16 %v1636, %v1635
    %v1647 = vpack.c.b16 %v1638, %v1637
    %v1648 = vpack.c.b16 %v1640, %v1639
    %1657 = vmatprep.subr.bf16.mxu0 0
    %1658 = vmatpush1.bf16.msra.mxu0 %v1648
    %1659 = vmatprep.subr.bf16.mxu0 0
    %1660 = vmatpush1.bf16.msra.mxu0 %v1647
    %1661 = vmatprep.subr.bf16.mxu0 0
    %1662 = vmatpush1.bf16.msra.mxu0 %v1646
    %1663 = vmatprep.subr.bf16.mxu0 0
    %1664 = vmatpush1.bf16.msra.mxu0 %v1645
    %1665 = vmatprep.subr.bf16.mxu0 0
    %1666 = vmatpush1.bf16.msra.mxu0 %v1644
    %1667 = vmatprep.subr.bf16.mxu0 0
    %1668 = vmatpush1.bf16.msra.mxu0 %v1643
    %1669 = vmatprep.subr.bf16.mxu0 0
    %1670 = vmatpush1.bf16.msra.mxu0 %v1642
    %1671 = vmatprep.subr.bf16.mxu0 0
    %1672 = vmatpush1.bf16.msra.mxu0 %v1641
    %1673 = vmatprep.subr.bf16.mxu0 0
    %1674 = vmatpush2.bf16.msra.mxu0 0
    %1675 = vmatprep.subr.bf16.mxu0 0
    %1676 = vmatpush2.bf16.msra.mxu0 0
    %1677 = vmatprep.subr.bf16.mxu0 0
    %1678 = vmatpush2.bf16.msra.mxu0 0
    %1679 = vmatprep.subr.bf16.mxu0 0
    %1680 = vmatpush2.bf16.msra.mxu0 0
    %1681 = vmatprep.subr.bf16.mxu0 0
    %1682 = vmatpush2.bf16.msra.mxu0 0
    %1683 = vmatprep.subr.bf16.mxu0 0
    %1684 = vmatpush2.bf16.msra.mxu0 0
    %1685 = vmatprep.subr.bf16.mxu0 0
    %1686 = vmatpush2.bf16.msra.mxu0 0
    %1687 = vmatprep.subr.bf16.mxu0 0
    %1688 = vmatpush2.bf16.msra.mxu0 0
    %1689 = vmatprep.mubr.bf16.mxu0 0
    %1690 = vmatmul.mubr.bf16.gmra.mxu0 %v1570
    %v1691 = vpop.f32.mrf.mxu0
    %v1692 = vadd.f32 %v1607, %v1691
    %v1693 = vpop.f32.mrf.mxu0
    %v1694 = vpop.f32.mrf.mxu0
    %v1695 = vadd.f32 %v1607, %v1694
    %v1696 = vpop.f32.mrf.mxu0
    %1697 = vmatprep.mubr.bf16.mxu0 0
    %1698 = vmatmul.mubr.bf16.gmra.mxu0 %v1571
    %v1699 = vpop.f32.mrf.mxu0
    %v1700 = vadd.f32 %v1607, %v1699
    %v1701 = vpop.f32.mrf.mxu0
    %v1702 = vpop.f32.mrf.mxu0
    %v1703 = vadd.f32 %v1607, %v1702
    %v1704 = vpop.f32.mrf.mxu0
    %1705 = vmatprep.mubr.bf16.mxu0 0
    %1706 = vmatmul.mubr.bf16.gmra.mxu0 %v1572
    %v1707 = vpop.f32.mrf.mxu0
    %v1708 = vadd.f32 %v1607, %v1707
    %v1709 = vpop.f32.mrf.mxu0
    %v1710 = vpop.f32.mrf.mxu0
    %v1711 = vadd.f32 %v1607, %v1710
    %v1712 = vpop.f32.mrf.mxu0
    %1713 = vmatprep.mubr.bf16.mxu0 0
    %1714 = vmatmul.mubr.bf16.gmra.mxu0 %v1573
    %v1715 = vpop.f32.mrf.mxu0
    %v1716 = vadd.f32 %v1607, %v1715
    %v1717 = vpop.f32.mrf.mxu0
    %v1718 = vpop.f32.mrf.mxu0
    %v1719 = vadd.f32 %v1607, %v1718
    %v1720 = vpop.f32.mrf.mxu0
    %1721 = vmatprep.mubr.bf16.mxu0 0
    %1722 = vmatmul.mubr.bf16.gmra.mxu0 %v1574
    %v1723 = vpop.f32.mrf.mxu0
    %v1724 = vadd.f32 %v1607, %v1723
    %v1725 = vpop.f32.mrf.mxu0
    %v1726 = vpop.f32.mrf.mxu0
    %v1727 = vadd.f32 %v1607, %v1726
    %v1728 = vpop.f32.mrf.mxu0
    %1729 = vmatprep.mubr.bf16.mxu0 0
    %1730 = vmatmul.mubr.bf16.gmra.mxu0 %v1575
    %v1731 = vpop.f32.mrf.mxu0
    %v1732 = vadd.f32 %v1607, %v1731
    %v1733 = vpop.f32.mrf.mxu0
    %v1734 = vpop.f32.mrf.mxu0
    %v1735 = vadd.f32 %v1607, %v1734
    %v1736 = vpop.f32.mrf.mxu0
    %1737 = vmatprep.mubr.bf16.mxu0 0
    %1738 = vmatmul.mubr.bf16.gmra.mxu0 %v1576
    %v1739 = vpop.f32.mrf.mxu0
    %v1740 = vadd.f32 %v1607, %v1739
    %v1741 = vpop.f32.mrf.mxu0
    %v1742 = vpop.f32.mrf.mxu0
    %v1743 = vadd.f32 %v1607, %v1742
    %v1744 = vpop.f32.mrf.mxu0
    %1745 = vmatprep.mubr.bf16.mxu0 0
    %1746 = vmatmul.mubr.bf16.gmra.mxu0 %v1577
    %v1747 = vpop.f32.mrf.mxu0
    %v1748 = vadd.f32 %v1607, %v1747
    %v1749 = vpop.f32.mrf.mxu0
    %v1750 = vpop.f32.mrf.mxu0
    %v1751 = vadd.f32 %v1607, %v1750
    %v1752 = vpop.f32.mrf.mxu0
    %1753 = vmatprep.mubr.bf16.mxu0 0
    %1754 = vmatmul.mubr.bf16.gmra.mxu0 %v1578
    %v1755 = vpop.f32.mrf.mxu0
    %v1756 = vadd.f32 %v1607, %v1755
    %v1757 = vpop.f32.mrf.mxu0
    %v1758 = vpop.f32.mrf.mxu0
    %v1759 = vadd.f32 %v1607, %v1758
    %v1760 = vpop.f32.mrf.mxu0
    %1761 = vmatprep.mubr.bf16.mxu0 0
    %1762 = vmatmul.mubr.bf16.gmra.mxu0 %v1579
    %v1763 = vpop.f32.mrf.mxu0
    %v1764 = vadd.f32 %v1607, %v1763
    %v1765 = vpop.f32.mrf.mxu0
    %v1766 = vpop.f32.mrf.mxu0
    %v1767 = vadd.f32 %v1607, %v1766
    %v1768 = vpop.f32.mrf.mxu0
    %1769 = vmatprep.mubr.bf16.mxu0 0
    %1770 = vmatmul.mubr.bf16.gmra.mxu0 %v1580
    %v1771 = vpop.f32.mrf.mxu0
    %v1772 = vadd.f32 %v1607, %v1771
    %v1773 = vpop.f32.mrf.mxu0
    %v1774 = vpop.f32.mrf.mxu0
    %v1775 = vadd.f32 %v1607, %v1774
    %v1776 = vpop.f32.mrf.mxu0
    %1777 = vmatprep.mubr.bf16.mxu0 0
    %1778 = vmatmul.mubr.bf16.gmra.mxu0 %v1581
    %v1779 = vpop.f32.mrf.mxu0
    %v1780 = vadd.f32 %v1607, %v1779
    %v1781 = vpop.f32.mrf.mxu0
    %v1782 = vpop.f32.mrf.mxu0
    %v1783 = vadd.f32 %v1607, %v1782
    %v1784 = vpop.f32.mrf.mxu0
    %1785 = vmatprep.mubr.bf16.mxu0 0
    %1786 = vmatmul.mubr.bf16.gmra.mxu0 %v1582
    %v1787 = vpop.f32.mrf.mxu0
    %v1788 = vadd.f32 %v1607, %v1787
    %v1789 = vpop.f32.mrf.mxu0
    %v1790 = vpop.f32.mrf.mxu0
    %v1791 = vadd.f32 %v1607, %v1790
    %v1792 = vpop.f32.mrf.mxu0
    %1793 = vmatprep.mubr.bf16.mxu0 0
    %1794 = vmatmul.mubr.bf16.gmra.mxu0 %v1583
    %v1795 = vpop.f32.mrf.mxu0
    %v1796 = vadd.f32 %v1607, %v1795
    %v1797 = vpop.f32.mrf.mxu0
    %v1798 = vpop.f32.mrf.mxu0
    %v1799 = vadd.f32 %v1607, %v1798
    %v1800 = vpop.f32.mrf.mxu0
    %1801 = vmatprep.mubr.bf16.mxu0 0
    %1802 = vmatmul.mubr.bf16.gmra.mxu0 %v1584
    %v1803 = vpop.f32.mrf.mxu0
    %v1804 = vadd.f32 %v1607, %v1803
    %v1805 = vpop.f32.mrf.mxu0
    %v1806 = vpop.f32.mrf.mxu0
    %v1807 = vadd.f32 %v1607, %v1806
    %v1808 = vpop.f32.mrf.mxu0
    %1809 = vmatprep.mubr.bf16.mxu0 0
    %1810 = vmatmul.mubr.bf16.gmra.mxu0 %v1585
    %v1811 = vpop.f32.mrf.mxu0
    %v1812 = vadd.f32 %v1607, %v1811
    %v1813 = vpop.f32.mrf.mxu0
    %v1814 = vpop.f32.mrf.mxu0
    %v1815 = vadd.f32 %v1607, %v1814
    %v1816 = vpop.f32.mrf.mxu0
    %1817 = vdwg.mxu0
    %v1818 = vmul.f32 %v1692, 0.5
    %v1819 = vmul.f32 %v1695, 0.5
    %v1820 = vmul.f32 %v1700, 0.5
    %v1821 = vmul.f32 %v1703, 0.5
    %v1822 = vmul.f32 %v1708, 0.5
    %v1823 = vmul.f32 %v1711, 0.5
    %v1824 = vmul.f32 %v1716, 0.5
    %v1825 = vmul.f32 %v1719, 0.5
    %v1826 = vmul.f32 %v1724, 0.5
    %v1827 = vmul.f32 %v1727, 0.5
    %v1828 = vmul.f32 %v1732, 0.5
    %v1829 = vmul.f32 %v1735, 0.5
    %v1830 = vmul.f32 %v1740, 0.5
    %v1831 = vmul.f32 %v1743, 0.5
    %v1832 = vmul.f32 %v1748, 0.5
    %v1833 = vmul.f32 %v1751, 0.5
    %v1834 = vmul.f32 %v1756, 0.5
    %v1835 = vmul.f32 %v1759, 0.5
    %v1836 = vmul.f32 %v1764, 0.5
    %v1837 = vmul.f32 %v1767, 0.5
    %v1838 = vmul.f32 %v1772, 0.5
    %v1839 = vmul.f32 %v1775, 0.5
    %v1840 = vmul.f32 %v1780, 0.5
    %v1841 = vmul.f32 %v1783, 0.5
    %v1842 = vmul.f32 %v1788, 0.5
    %v1843 = vmul.f32 %v1791, 0.5
    %v1844 = vmul.f32 %v1796, 0.5
    %v1845 = vmul.f32 %v1799, 0.5
    %v1846 = vmul.f32 %v1804, 0.5
    %v1847 = vmul.f32 %v1807, 0.5
    %v1848 = vmul.f32 %v1812, 0.5
    %v1849 = vmul.f32 %v1815, 0.5
    %v1850 = vmul.f32 %v1692, 0.044715
    %v1851 = vmul.f32 %v1695, 0.044715
    %v1852 = vmul.f32 %v1700, 0.044715
    %v1853 = vmul.f32 %v1703, 0.044715
    %v1854 = vmul.f32 %v1708, 0.044715
    %v1855 = vmul.f32 %v1711, 0.044715
    %v1856 = vmul.f32 %v1716, 0.044715
    %v1857 = vmul.f32 %v1719, 0.044715
    %v1858 = vmul.f32 %v1724, 0.044715
    %v1859 = vmul.f32 %v1727, 0.044715
    %v1860 = vmul.f32 %v1732, 0.044715
    %v1861 = vmul.f32 %v1735, 0.044715
    %v1862 = vmul.f32 %v1740, 0.044715
    %v1863 = vmul.f32 %v1743, 0.044715
    %v1864 = vmul.f32 %v1748, 0.044715
    %v1865 = vmul.f32 %v1751, 0.044715
    %v1866 = vmul.f32 %v1756, 0.044715
    %v1867 = vmul.f32 %v1759, 0.044715
    %v1868 = vmul.f32 %v1764, 0.044715
    %v1869 = vmul.f32 %v1767, 0.044715
    %v1870 = vmul.f32 %v1772, 0.044715
    %v1871 = vmul.f32 %v1775, 0.044715
    %v1872 = vmul.f32 %v1780, 0.044715
    %v1873 = vmul.f32 %v1783, 0.044715
    %v1874 = vmul.f32 %v1788, 0.044715
    %v1875 = vmul.f32 %v1791, 0.044715
    %v1876 = vmul.f32 %v1796, 0.044715
    %v1877 = vmul.f32 %v1799, 0.044715
    %v1878 = vmul.f32 %v1804, 0.044715
    %v1879 = vmul.f32 %v1807, 0.044715
    %v1880 = vmul.f32 %v1812, 0.044715
    %v1881 = vmul.f32 %v1815, 0.044715
    %v1882 = vmul.f32 %v1850, %v1692
    %v1883 = vmul.f32 %v1851, %v1695
    %v1884 = vmul.f32 %v1852, %v1700
    %v1885 = vmul.f32 %v1853, %v1703
    %v1886 = vmul.f32 %v1854, %v1708
    %v1887 = vmul.f32 %v1855, %v1711
    %v1888 = vmul.f32 %v1856, %v1716
    %v1889 = vmul.f32 %v1857, %v1719
    %v1890 = vmul.f32 %v1858, %v1724
    %v1891 = vmul.f32 %v1859, %v1727
    %v1892 = vmul.f32 %v1860, %v1732
    %v1893 = vmul.f32 %v1861, %v1735
    %v1894 = vmul.f32 %v1862, %v1740
    %v1895 = vmul.f32 %v1863, %v1743
    %v1896 = vmul.f32 %v1864, %v1748
    %v1897 = vmul.f32 %v1865, %v1751
    %v1898 = vmul.f32 %v1866, %v1756
    %v1899 = vmul.f32 %v1867, %v1759
    %v1900 = vmul.f32 %v1868, %v1764
    %v1901 = vmul.f32 %v1869, %v1767
    %v1902 = vmul.f32 %v1870, %v1772
    %v1903 = vmul.f32 %v1871, %v1775
    %v1904 = vmul.f32 %v1872, %v1780
    %v1905 = vmul.f32 %v1873, %v1783
    %v1906 = vmul.f32 %v1874, %v1788
    %v1907 = vmul.f32 %v1875, %v1791
    %v1908 = vmul.f32 %v1876, %v1796
    %v1909 = vmul.f32 %v1877, %v1799
    %v1910 = vmul.f32 %v1878, %v1804
    %v1911 = vmul.f32 %v1879, %v1807
    %v1912 = vmul.f32 %v1880, %v1812
    %v1913 = vmul.f32 %v1881, %v1815
    %v1914 = vmul.f32 %v1882, %v1692
    %v1915 = vmul.f32 %v1883, %v1695
    %v1916 = vmul.f32 %v1884, %v1700
    %v1917 = vmul.f32 %v1885, %v1703
    %v1918 = vmul.f32 %v1886, %v1708
    %v1919 = vmul.f32 %v1887, %v1711
    %v1920 = vmul.f32 %v1888, %v1716
    %v1921 = vmul.f32 %v1889, %v1719
    %v1922 = vmul.f32 %v1890, %v1724
    %v1923 = vmul.f32 %v1891, %v1727
    %v1924 = vmul.f32 %v1892, %v1732
    %v1925 = vmul.f32 %v1893, %v1735
    %v1926 = vmul.f32 %v1894, %v1740
    %v1927 = vmul.f32 %v1895, %v1743
    %v1928 = vmul.f32 %v1896, %v1748
    %v1929 = vmul.f32 %v1897, %v1751
    %v1930 = vmul.f32 %v1898, %v1756
    %v1931 = vmul.f32 %v1899, %v1759
    %v1932 = vmul.f32 %v1900, %v1764
    %v1933 = vmul.f32 %v1901, %v1767
    %v1934 = vmul.f32 %v1902, %v1772
    %v1935 = vmul.f32 %v1903, %v1775
    %v1936 = vmul.f32 %v1904, %v1780
    %v1937 = vmul.f32 %v1905, %v1783
    %v1938 = vmul.f32 %v1906, %v1788
    %v1939 = vmul.f32 %v1907, %v1791
    %v1940 = vmul.f32 %v1908, %v1796
    %v1941 = vmul.f32 %v1909, %v1799
    %v1942 = vmul.f32 %v1910, %v1804
    %v1943 = vmul.f32 %v1911, %v1807
    %v1944 = vmul.f32 %v1912, %v1812
    %v1945 = vmul.f32 %v1913, %v1815
    %v1946 = vadd.f32 %v1692, %v1914
    %v1947 = vadd.f32 %v1695, %v1915
    %v1948 = vadd.f32 %v1700, %v1916
    %v1949 = vadd.f32 %v1703, %v1917
    %v1950 = vadd.f32 %v1708, %v1918
    %v1951 = vadd.f32 %v1711, %v1919
    %v1952 = vadd.f32 %v1716, %v1920
    %v1953 = vadd.f32 %v1719, %v1921
    %v1954 = vadd.f32 %v1724, %v1922
    %v1955 = vadd.f32 %v1727, %v1923
    %v1956 = vadd.f32 %v1732, %v1924
    %v1957 = vadd.f32 %v1735, %v1925
    %v1958 = vadd.f32 %v1740, %v1926
    %v1959 = vadd.f32 %v1743, %v1927
    %v1960 = vadd.f32 %v1748, %v1928
    %v1961 = vadd.f32 %v1751, %v1929
    %v1962 = vadd.f32 %v1756, %v1930
    %v1963 = vadd.f32 %v1759, %v1931
    %v1964 = vadd.f32 %v1764, %v1932
    %v1965 = vadd.f32 %v1767, %v1933
    %v1966 = vadd.f32 %v1772, %v1934
    %v1967 = vadd.f32 %v1775, %v1935
    %v1968 = vadd.f32 %v1780, %v1936
    %v1969 = vadd.f32 %v1783, %v1937
    %v1970 = vadd.f32 %v1788, %v1938
    %v1971 = vadd.f32 %v1791, %v1939
    %v1972 = vadd.f32 %v1796, %v1940
    %v1973 = vadd.f32 %v1799, %v1941
    %v1974 = vadd.f32 %v1804, %v1942
    %v1975 = vadd.f32 %v1807, %v1943
    %v1976 = vadd.f32 %v1812, %v1944
    %v1977 = vadd.f32 %v1815, %v1945
    %v1978 = vmul.f32 %v1946, 0.7978846
    %v1979 = vmul.f32 %v1947, 0.7978846
    %v1980 = vmul.f32 %v1948, 0.7978846
    %v1981 = vmul.f32 %v1949, 0.7978846
    %v1982 = vmul.f32 %v1950, 0.7978846
    %v1983 = vmul.f32 %v1951, 0.7978846
    %v1984 = vmul.f32 %v1952, 0.7978846
    %v1985 = vmul.f32 %v1953, 0.7978846
    %v1986 = vmul.f32 %v1954, 0.7978846
    %v1987 = vmul.f32 %v1955, 0.7978846
    %v1988 = vmul.f32 %v1956, 0.7978846
    %v1989 = vmul.f32 %v1957, 0.7978846
    %v1990 = vmul.f32 %v1958, 0.7978846
    %v1991 = vmul.f32 %v1959, 0.7978846
    %v1992 = vmul.f32 %v1960, 0.7978846
    %v1993 = vmul.f32 %v1961, 0.7978846
    %v1994 = vmul.f32 %v1962, 0.7978846
    %v1995 = vmul.f32 %v1963, 0.7978846
    %v1996 = vmul.f32 %v1964, 0.7978846
    %v1997 = vmul.f32 %v1965, 0.7978846
    %v1998 = vmul.f32 %v1966, 0.7978846
    %v1999 = vmul.f32 %v1967, 0.7978846
    %v2000 = vmul.f32 %v1968, 0.7978846
    %v2001 = vmul.f32 %v1969, 0.7978846
    %v2002 = vmul.f32 %v1970, 0.7978846
    %v2003 = vmul.f32 %v1971, 0.7978846
    %v2004 = vmul.f32 %v1972, 0.7978846
    %v2005 = vmul.f32 %v1973, 0.7978846
    %v2006 = vmul.f32 %v1974, 0.7978846
    %v2007 = vmul.f32 %v1975, 0.7978846
    %v2008 = vmul.f32 %v1976, 0.7978846
    %v2009 = vmul.f32 %v1977, 0.7978846
    %v2010 = vtanh.pop %v1978
    %v2011 = vtanh.pop %v1979
    %v2012 = vtanh.pop %v1980
    %v2013 = vtanh.pop %v1981
    %v2014 = vtanh.pop %v1982
    %v2015 = vtanh.pop %v1983
    %v2016 = vtanh.pop %v1984
    %v2017 = vtanh.pop %v1985
    %v2018 = vtanh.pop %v1986
    %v2019 = vtanh.pop %v1987
    %v2020 = vtanh.pop %v1988
    %v2021 = vtanh.pop %v1989
    %v2022 = vtanh.pop %v1990
    %v2023 = vtanh.pop %v1991
    %v2024 = vtanh.pop %v1992
    %v2025 = vtanh.pop %v1993
    %v2026 = vtanh.pop %v1994
    %v2027 = vtanh.pop %v1995
    %v2028 = vtanh.pop %v1996
    %v2029 = vtanh.pop %v1997
    %v2030 = vtanh.pop %v1998
    %v2031 = vtanh.pop %v1999
    %v2032 = vtanh.pop %v2000
    %v2033 = vtanh.pop %v2001
    %v2034 = vtanh.pop %v2002
    %v2035 = vtanh.pop %v2003
    %v2036 = vtanh.pop %v2004
    %v2037 = vtanh.pop %v2005
    %v2038 = vtanh.pop %v2006
    %v2039 = vtanh.pop %v2007
    %v2040 = vtanh.pop %v2008
    %v2041 = vtanh.pop %v2009
    %v2042 = vadd.f32 %v2010, 1.0
    %v2043 = vadd.f32 %v2011, 1.0
    %v2044 = vadd.f32 %v2012, 1.0
    %v2045 = vadd.f32 %v2013, 1.0
    %v2046 = vadd.f32 %v2014, 1.0
    %v2047 = vadd.f32 %v2015, 1.0
    %v2048 = vadd.f32 %v2016, 1.0
    %v2049 = vadd.f32 %v2017, 1.0
    %v2050 = vadd.f32 %v2018, 1.0
    %v2051 = vadd.f32 %v2019, 1.0
    %v2052 = vadd.f32 %v2020, 1.0
    %v2053 = vadd.f32 %v2021, 1.0
    %v2054 = vadd.f32 %v2022, 1.0
    %v2055 = vadd.f32 %v2023, 1.0
    %v2056 = vadd.f32 %v2024, 1.0
    %v2057 = vadd.f32 %v2025, 1.0
    %v2058 = vadd.f32 %v2026, 1.0
    %v2059 = vadd.f32 %v2027, 1.0
    %v2060 = vadd.f32 %v2028, 1.0
    %v2061 = vadd.f32 %v2029, 1.0
    %v2062 = vadd.f32 %v2030, 1.0
    %v2063 = vadd.f32 %v2031, 1.0
    %v2064 = vadd.f32 %v2032, 1.0
    %v2065 = vadd.f32 %v2033, 1.0
    %v2066 = vadd.f32 %v2034, 1.0
    %v2067 = vadd.f32 %v2035, 1.0
    %v2068 = vadd.f32 %v2036, 1.0
    %v2069 = vadd.f32 %v2037, 1.0
    %v2070 = vadd.f32 %v2038, 1.0
    %v2071 = vadd.f32 %v2039, 1.0
    %v2072 = vadd.f32 %v2040, 1.0
    %v2073 = vadd.f32 %v2041, 1.0
    %v2074 = vmul.f32 %v1818, %v2042
    %v2075 = vmul.f32 %v1819, %v2043
    %v2076 = vmul.f32 %v1820, %v2044
    %v2077 = vmul.f32 %v1821, %v2045
    %v2078 = vmul.f32 %v1822, %v2046
    %v2079 = vmul.f32 %v1823, %v2047
    %v2080 = vmul.f32 %v1824, %v2048
    %v2081 = vmul.f32 %v1825, %v2049
    %v2082 = vmul.f32 %v1826, %v2050
    %v2083 = vmul.f32 %v1827, %v2051
    %v2084 = vmul.f32 %v1828, %v2052
    %v2085 = vmul.f32 %v1829, %v2053
    %v2086 = vmul.f32 %v1830, %v2054
    %v2087 = vmul.f32 %v1831, %v2055
    %v2088 = vmul.f32 %v1832, %v2056
    %v2089 = vmul.f32 %v1833, %v2057
    %v2090 = vmul.f32 %v1834, %v2058
    %v2091 = vmul.f32 %v1835, %v2059
    %v2092 = vmul.f32 %v1836, %v2060
    %v2093 = vmul.f32 %v1837, %v2061
    %v2094 = vmul.f32 %v1838, %v2062
    %v2095 = vmul.f32 %v1839, %v2063
    %v2096 = vmul.f32 %v1840, %v2064
    %v2097 = vmul.f32 %v1841, %v2065
    %v2098 = vmul.f32 %v1842, %v2066
    %v2099 = vmul.f32 %v1843, %v2067
    %v2100 = vmul.f32 %v1844, %v2068
    %v2101 = vmul.f32 %v1845, %v2069
    %v2102 = vmul.f32 %v1846, %v2070
    %v2103 = vmul.f32 %v1847, %v2071
    %v2104 = vmul.f32 %v1848, %v2072
    %v2105 = vmul.f32 %v1849, %v2073
    %v2106 = vld [vmem:[%s8] sm:$0x1]
    %v2108 = vlaneseq
    %v2109 = vshrl.u32 %v2108, 7
    %v2110 = vsub.s32 0, %v2109
    %v2111 = vrot.slane %v2106, %v2110
    %v2113 = vmul.f32 %v2074, %v2111
    %v2114 = vmul.f32 %v2075, %v2111
    %v2115 = vmul.f32 %v2076, %v2111
    %v2116 = vmul.f32 %v2077, %v2111
    %v2117 = vmul.f32 %v2078, %v2111
    %v2118 = vmul.f32 %v2079, %v2111
    %v2119 = vmul.f32 %v2080, %v2111
    %v2120 = vmul.f32 %v2081, %v2111
    %v2121 = vmul.f32 %v2082, %v2111
    %v2122 = vmul.f32 %v2083, %v2111
    %v2123 = vmul.f32 %v2084, %v2111
    %v2124 = vmul.f32 %v2085, %v2111
    %v2125 = vmul.f32 %v2086, %v2111
    %v2126 = vmul.f32 %v2087, %v2111
    %v2127 = vmul.f32 %v2088, %v2111
    %v2128 = vmul.f32 %v2089, %v2111
    %v2129 = vmul.f32 %v2090, %v2111
    %v2130 = vmul.f32 %v2091, %v2111
    %v2131 = vmul.f32 %v2092, %v2111
    %v2132 = vmul.f32 %v2093, %v2111
    %v2133 = vmul.f32 %v2094, %v2111
    %v2134 = vmul.f32 %v2095, %v2111
    %v2135 = vmul.f32 %v2096, %v2111
    %v2136 = vmul.f32 %v2097, %v2111
    %v2137 = vmul.f32 %v2098, %v2111
    %v2138 = vmul.f32 %v2099, %v2111
    %v2139 = vmul.f32 %v2100, %v2111
    %v2140 = vmul.f32 %v2101, %v2111
    %v2141 = vmul.f32 %v2102, %v2111
    %v2142 = vmul.f32 %v2103, %v2111
    %v2143 = vmul.f32 %v2104, %v2111
    %v2144 = vmul.f32 %v2105, %v2111
    %vm2145 = vcmask 523264
    %v2146 = vsel %vm2145, %v2113, 0.0
    %2147 = vadd.xlane.f32.xlu0 %v2146
    %v2148 = vpop.xlane.xlu0 %2147
    %v2149 = vsel %vm2145, %v2114, 0.0
    %2150 = vadd.xlane.f32.xlu0 %v2149
    %v2151 = vpop.xlane.xlu0 %2150
    %v2152 = vsel %vm2145, %v2115, 0.0
    %2153 = vadd.xlane.f32.xlu0 %v2152
    %v2154 = vpop.xlane.xlu0 %2153
    %v2155 = vsel %vm2145, %v2116, 0.0
    %2156 = vadd.xlane.f32.xlu0 %v2155
    %v2157 = vpop.xlane.xlu0 %2156
    %v2158 = vsel %vm2145, %v2117, 0.0
    %2159 = vadd.xlane.f32.xlu0 %v2158
    %v2160 = vpop.xlane.xlu0 %2159
    %v2161 = vsel %vm2145, %v2118, 0.0
    %2162 = vadd.xlane.f32.xlu0 %v2161
    %v2163 = vpop.xlane.xlu0 %2162
    %v2164 = vsel %vm2145, %v2119, 0.0
    %2165 = vadd.xlane.f32.xlu0 %v2164
    %v2166 = vpop.xlane.xlu0 %2165
    %v2167 = vsel %vm2145, %v2120, 0.0
    %2168 = vadd.xlane.f32.xlu0 %v2167
    %v2169 = vpop.xlane.xlu0 %2168
    %v2170 = vsel %vm2145, %v2121, 0.0
    %2171 = vadd.xlane.f32.xlu0 %v2170
    %v2172 = vpop.xlane.xlu0 %2171
    %v2173 = vsel %vm2145, %v2122, 0.0
    %2174 = vadd.xlane.f32.xlu0 %v2173
    %v2175 = vpop.xlane.xlu0 %2174
    %v2176 = vsel %vm2145, %v2123, 0.0
    %2177 = vadd.xlane.f32.xlu0 %v2176
    %v2178 = vpop.xlane.xlu0 %2177
    %v2179 = vsel %vm2145, %v2124, 0.0
    %2180 = vadd.xlane.f32.xlu0 %v2179
    %v2181 = vpop.xlane.xlu0 %2180
    %v2182 = vsel %vm2145, %v2125, 0.0
    %2183 = vadd.xlane.f32.xlu0 %v2182
    %v2184 = vpop.xlane.xlu0 %2183
    %v2185 = vsel %vm2145, %v2126, 0.0
    %2186 = vadd.xlane.f32.xlu0 %v2185
    %v2187 = vpop.xlane.xlu0 %2186
    %v2188 = vsel %vm2145, %v2127, 0.0
    %2189 = vadd.xlane.f32.xlu0 %v2188
    %v2190 = vpop.xlane.xlu0 %2189
    %v2191 = vsel %vm2145, %v2128, 0.0
    %2192 = vadd.xlane.f32.xlu0 %v2191
    %v2193 = vpop.xlane.xlu0 %2192
    %v2194 = vsel %vm2145, %v2129, 0.0
    %2195 = vadd.xlane.f32.xlu0 %v2194
    %v2196 = vpop.xlane.xlu0 %2195
    %v2197 = vsel %vm2145, %v2130, 0.0
    %2198 = vadd.xlane.f32.xlu0 %v2197
    %v2199 = vpop.xlane.xlu0 %2198
    %v2200 = vsel %vm2145, %v2131, 0.0
    %2201 = vadd.xlane.f32.xlu0 %v2200
    %v2202 = vpop.xlane.xlu0 %2201
    %v2203 = vsel %vm2145, %v2132, 0.0
    %2204 = vadd.xlane.f32.xlu0 %v2203
    %v2205 = vpop.xlane.xlu0 %2204
    %v2206 = vsel %vm2145, %v2133, 0.0
    %2207 = vadd.xlane.f32.xlu0 %v2206
    %v2208 = vpop.xlane.xlu0 %2207
    %v2209 = vsel %vm2145, %v2134, 0.0
    %2210 = vadd.xlane.f32.xlu0 %v2209
    %v2211 = vpop.xlane.xlu0 %2210
    %v2212 = vsel %vm2145, %v2135, 0.0
    %2213 = vadd.xlane.f32.xlu0 %v2212
    %v2214 = vpop.xlane.xlu0 %2213
    %v2215 = vsel %vm2145, %v2136, 0.0
    %2216 = vadd.xlane.f32.xlu0 %v2215
    %v2217 = vpop.xlane.xlu0 %2216
    %v2218 = vsel %vm2145, %v2137, 0.0
    %2219 = vadd.xlane.f32.xlu0 %v2218
    %v2220 = vpop.xlane.xlu0 %2219
    %v2221 = vsel %vm2145, %v2138, 0.0
    %2222 = vadd.xlane.f32.xlu0 %v2221
    %v2223 = vpop.xlane.xlu0 %2222
    %v2224 = vsel %vm2145, %v2139, 0.0
    %2225 = vadd.xlane.f32.xlu0 %v2224
    %v2226 = vpop.xlane.xlu0 %2225
    %v2227 = vsel %vm2145, %v2140, 0.0
    %2228 = vadd.xlane.f32.xlu0 %v2227
    %v2229 = vpop.xlane.xlu0 %2228
    %v2230 = vsel %vm2145, %v2141, 0.0
    %2231 = vadd.xlane.f32.xlu0 %v2230
    %v2232 = vpop.xlane.xlu0 %2231
    %v2233 = vsel %vm2145, %v2142, 0.0
    %2234 = vadd.xlane.f32.xlu0 %v2233
    %v2235 = vpop.xlane.xlu0 %2234
    %v2236 = vsel %vm2145, %v2143, 0.0
    %2237 = vadd.xlane.f32.xlu0 %v2236
    %v2238 = vpop.xlane.xlu0 %2237
    %v2239 = vsel %vm2145, %v2144, 0.0
    %2240 = vadd.xlane.f32.xlu0 %v2239
    %v2241 = vpop.xlane.xlu0 %2240
    %v2242 = vld [vmem:[#allocation2] sm:$0x1]
    %v2244 = vlaneseq
    %v2245 = vshrl.u32 %v2244, 7
    %v2246 = vsub.s32 0, %v2245
    %v2247 = vrot.slane %v2242, %v2246
    %v2249 = vadd.f32 %v2148, %v2247
    %v2250 = vadd.f32 %v2151, %v2247
    %v2251 = vadd.f32 %v2154, %v2247
    %v2252 = vadd.f32 %v2157, %v2247
    %v2253 = vadd.f32 %v2160, %v2247
    %v2254 = vadd.f32 %v2163, %v2247
    %v2255 = vadd.f32 %v2166, %v2247
    %v2256 = vadd.f32 %v2169, %v2247
    %v2257 = vadd.f32 %v2172, %v2247
    %v2258 = vadd.f32 %v2175, %v2247
    %v2259 = vadd.f32 %v2178, %v2247
    %v2260 = vadd.f32 %v2181, %v2247
    %v2261 = vadd.f32 %v2184, %v2247
    %v2262 = vadd.f32 %v2187, %v2247
    %v2263 = vadd.f32 %v2190, %v2247
    %v2264 = vadd.f32 %v2193, %v2247
    %v2265 = vadd.f32 %v2196, %v2247
    %v2266 = vadd.f32 %v2199, %v2247
    %v2267 = vadd.f32 %v2202, %v2247
    %v2268 = vadd.f32 %v2205, %v2247
    %v2269 = vadd.f32 %v2208, %v2247
    %v2270 = vadd.f32 %v2211, %v2247
    %v2271 = vadd.f32 %v2214, %v2247
    %v2272 = vadd.f32 %v2217, %v2247
    %v2273 = vadd.f32 %v2220, %v2247
    %v2274 = vadd.f32 %v2223, %v2247
    %v2275 = vadd.f32 %v2226, %v2247
    %v2276 = vadd.f32 %v2229, %v2247
    %v2277 = vadd.f32 %v2232, %v2247
    %v2278 = vadd.f32 %v2235, %v2247
    %v2279 = vadd.f32 %v2238, %v2247
    %v2280 = vadd.f32 %v2241, %v2247
    %2281 = vxpose.xlu0.b32.start [1/16] %v2249, 128
    %2282 = vxpose.xlu0.b32.cont [2/16] %v2250, 128
    %2283 = vxpose.xlu0.b32.cont [3/16] %v2251, 128
    %2284 = vxpose.xlu0.b32.cont [4/16] %v2252, 128
    %2285 = vxpose.xlu0.b32.cont [5/16] %v2253, 128
    %2286 = vxpose.xlu0.b32.cont [6/16] %v2254, 128
    %2287 = vxpose.xlu0.b32.cont [7/16] %v2255, 128
    %2288 = vxpose.xlu0.b32.cont [8/16] %v2256, 128
    %2289 = vxpose.xlu0.b32.cont [9/16] %v2257, 128
    %2290 = vxpose.xlu0.b32.cont [10/16] %v2258, 128
    %2291 = vxpose.xlu0.b32.cont [11/16] %v2259, 128
    %2292 = vxpose.xlu0.b32.cont [12/16] %v2260, 128
    %2293 = vxpose.xlu0.b32.cont [13/16] %v2261, 128
    %2294 = vxpose.xlu0.b32.cont [14/16] %v2262, 128
    %2295 = vxpose.xlu0.b32.cont [15/16] %v2263, 128
    %2296 = vxpose.xlu0.b32.end [16/16] %v2264, 128
    %v2297 = vpop.trf.xlu0
    %v2298 = vpop.trf.xlu0
    %v2299 = vpop.trf.xlu0
    %v2300 = vpop.trf.xlu0
    %v2301 = vpop.trf.xlu0
    %v2302 = vpop.trf.xlu0
    %v2303 = vpop.trf.xlu0
    %v2304 = vpop.trf.xlu0
    %v2305 = vpop.trf.xlu0
    %v2306 = vpop.trf.xlu0
    %v2307 = vpop.trf.xlu0
    %v2308 = vpop.trf.xlu0
    %v2309 = vpop.trf.xlu0
    %v2310 = vpop.trf.xlu0
    %v2311 = vpop.trf.xlu0
    %v2312 = vpop.trf.xlu0
    %2313 = vxpose.xlu0.b32.start [1/16] %v2265, 128
    %2314 = vxpose.xlu0.b32.cont [2/16] %v2266, 128
    %2315 = vxpose.xlu0.b32.cont [3/16] %v2267, 128
    %2316 = vxpose.xlu0.b32.cont [4/16] %v2268, 128
    %2317 = vxpose.xlu0.b32.cont [5/16] %v2269, 128
    %2318 = vxpose.xlu0.b32.cont [6/16] %v2270, 128
    %2319 = vxpose.xlu0.b32.cont [7/16] %v2271, 128
    %2320 = vxpose.xlu0.b32.cont [8/16] %v2272, 128
    %2321 = vxpose.xlu0.b32.cont [9/16] %v2273, 128
    %2322 = vxpose.xlu0.b32.cont [10/16] %v2274, 128
    %2323 = vxpose.xlu0.b32.cont [11/16] %v2275, 128
    %2324 = vxpose.xlu0.b32.cont [12/16] %v2276, 128
    %2325 = vxpose.xlu0.b32.cont [13/16] %v2277, 128
    %2326 = vxpose.xlu0.b32.cont [14/16] %v2278, 128
    %2327 = vxpose.xlu0.b32.cont [15/16] %v2279, 128
    %2328 = vxpose.xlu0.b32.end [16/16] %v2280, 128
    %v2329 = vpop.trf.xlu0
    %v2330 = vpop.trf.xlu0
    %v2331 = vpop.trf.xlu0
    %v2332 = vpop.trf.xlu0
    %v2333 = vpop.trf.xlu0
    %v2334 = vpop.trf.xlu0
    %v2335 = vpop.trf.xlu0
    %v2336 = vpop.trf.xlu0
    %v2337 = vpop.trf.xlu0
    %v2338 = vpop.trf.xlu0
    %v2339 = vpop.trf.xlu0
    %v2340 = vpop.trf.xlu0
    %v2341 = vpop.trf.xlu0
    %v2342 = vpop.trf.xlu0
    %v2343 = vpop.trf.xlu0
    %v2344 = vpop.trf.xlu0
    %v2345 = vlaneseq
    %v2346 = vshrl.u32 %v2345, 7
    %v2347 = vld [vmem:[%s3] sm:$0x3]
    %v2348 = vlaneseq
    %v2349 = vshrl.u32 %v2348, 7
    %v2350 = vsub.s32 0, %v2349
    %v2351 = vrot.slane %v2347, %v2350
    %v2352 = vlaneseq
    %v2353 = vshrl.u32 %v2352, 7
    %v2354 = vsub.s32 1, %v2353
    %v2355 = vrot.slane %v2347, %v2354
    %vm2356 = vcmp.eq.s32.totalorder %v2351, %v2346
    %vm2357 = vcmp.eq.s32.totalorder %v2355, %v2346
    %v2358 = vsel %vm2356, 1, 0
    %v2359 = vsel %vm2357, 1, 0
    %v2360 = vcvt.s32.f32 %v2358
    %v2361 = vcvt.s32.f32 %v2359
    %vm2362 = vcmp.gt.f32.partialorder %v2360, 0.5
    %vm2363 = vcmp.gt.f32.partialorder %v2361, 0.5
    %v2364 = vlaneseq
    %v2365 = vshrl.u32 %v2364, 7
    %v2366 = vsub.s32 0, %v2365
    %v2367 = vrot.slane %v2297, %v2366
    %v2368 = vlaneseq
    %v2369 = vshrl.u32 %v2368, 7
    %v2370 = vsub.s32 0, %v2369
    %v2371 = vrot.slane %v2329, %v2370
    %v2372 = vsel %vm2362, %v2367, -1e+30
    %v2373 = vsel %vm2363, %v2371, -1e+30
    %vm2374 = vcmask 1043456
    %v2375 = vsel %vm2374, %v2372, -inf
    %v2376 = vsel %vm2374, %v2373, -inf
    %v2377 = vmax.f32 %v2375, %v2376
    %2378 = vmax.xlane.f32.xlu0 %v2377
    %v2379 = vpop.xlane.xlu0 %2378
    %v2380 = vsub.f32 %v2372, %v2379
    %v2381 = vsub.f32 %v2373, %v2379
    %v2382 = vmul.f32 %v2380, 1.442695
    %v2383 = vpow.pop %v2382
    %v2384 = vmul.f32 %v2381, 1.442695
    %v2385 = vpow.pop %v2384
    %v2386 = vmul.f32 %v2383, %v2360
    %v2387 = vmul.f32 %v2385, %v2361
    %v2388 = vsel %vm2374, %v2386, 0.0
    %v2389 = vsel %vm2374, %v2387, 0.0
    %v2390 = vadd.f32 %v2388, %v2389
    %2391 = vadd.xlane.f32.xlu0 %v2390
    %v2392 = vpop.xlane.xlu0 %2391
    %v2393 = vmax.f32 %v2392, 1e-20
    %v2394 = vrcp.pop %v2393
    %v2395 = vmul.f32 %v2386, %v2394
    %v2396 = vmul.f32 %v2387, %v2394
    %v2397 = vpack.c.bf16 %v2395, %v2395
    %v2398 = vpack.c.bf16 %v2396, %v2396
    %2399 = vmatprep.subr.bf16.mxu0 0
    %2400 = vmatpush1.bf16.msra.mxu0 %v1577
    %2401 = vmatprep.subr.bf16.mxu0 0
    %2402 = vmatpush1.bf16.msra.mxu0 %v1576
    %2403 = vmatprep.subr.bf16.mxu0 0
    %2404 = vmatpush1.bf16.msra.mxu0 %v1575
    %2405 = vmatprep.subr.bf16.mxu0 0
    %2406 = vmatpush1.bf16.msra.mxu0 %v1574
    %2407 = vmatprep.subr.bf16.mxu0 0
    %2408 = vmatpush1.bf16.msra.mxu0 %v1573
    %2409 = vmatprep.subr.bf16.mxu0 0
    %2410 = vmatpush1.bf16.msra.mxu0 %v1572
    %2411 = vmatprep.subr.bf16.mxu0 0
    %2412 = vmatpush1.bf16.msra.mxu0 %v1571
    %2413 = vmatprep.subr.bf16.mxu0 0
    %2414 = vmatpush1.bf16.msra.mxu0 %v1570
    %2415 = vmatprep.subr.bf16.mxu0 0
    %2416 = vmatpush2.bf16.msra.mxu0 %v1585
    %2417 = vmatprep.subr.bf16.mxu0 0
    %2418 = vmatpush2.bf16.msra.mxu0 %v1584
    %2419 = vmatprep.subr.bf16.mxu0 0
    %2420 = vmatpush2.bf16.msra.mxu0 %v1583
    %2421 = vmatprep.subr.bf16.mxu0 0
    %2422 = vmatpush2.bf16.msra.mxu0 %v1582
    %2423 = vmatprep.subr.bf16.mxu0 0
    %2424 = vmatpush2.bf16.msra.mxu0 %v1581
    %2425 = vmatprep.subr.bf16.mxu0 0
    %2426 = vmatpush2.bf16.msra.mxu0 %v1580
    %2427 = vmatprep.subr.bf16.mxu0 0
    %2428 = vmatpush2.bf16.msra.mxu0 %v1579
    %2429 = vmatprep.subr.bf16.mxu0 0
    %2430 = vmatpush2.bf16.msra.mxu0 %v1578
    %2431 = vmatprep.mubr.bf16.mxu0 %v2398
    %2432 = vmatmul.mubr.bf16.gmra.mxu0 %v2397
    %v2433 = vpop.f32.mrf.mxu0
    %v2434 = vadd.f32 0.0, %v2433
    %v2435 = vpop.f32.mrf.mxu0
    %v2436 = vpop.f32.mrf.mxu0
    %v2437 = vpop.f32.mrf.mxu0
    %2438 = vdwg.mxu0
    %v2439 = vpack.c.bf16 %v2434, %v2434
    %v2440 = vld [vmem:[%s10] sm:$0xf]
    %v2441 = vld [vmem:[%s10 + $0x4] sm:$0xf]
    %v2442 = vld [vmem:[%s10 + $0x8] sm:$0xf]
    %v2443 = vld [vmem:[%s10 + $0xc] sm:$0xf]
    %v2444 = vld [vmem:[%s10 + $0x10] sm:$0xf]
    %v2445 = vld [vmem:[%s10 + $0x14] sm:$0xf]
    %v2446 = vld [vmem:[%s10 + $0x18] sm:$0xf]
    %v2447 = vld [vmem:[%s10 + $0x1c] sm:$0xf]
    %v2448 = vld [vmem:[%s10 + $0x20] sm:$0xf]
    %v2449 = vld [vmem:[%s10 + $0x24] sm:$0xf]
    %v2450 = vld [vmem:[%s10 + $0x28] sm:$0xf]
    %v2451 = vld [vmem:[%s10 + $0x2c] sm:$0xf]
    %v2452 = vld [vmem:[%s10 + $0x30] sm:$0xf]
    %v2453 = vld [vmem:[%s10 + $0x34] sm:$0xf]
    %v2454 = vld [vmem:[%s10 + $0x38] sm:$0xf]
    %v2455 = vld [vmem:[%s10 + $0x3c] sm:$0xf]
    %v2456 = vld [vmem:[%s11] sm:$0x1]
    %v2458 = vlaneseq
    %v2459 = vshrl.u32 %v2458, 7
    %v2460 = vsub.s32 0, %v2459
    %v2461 = vrot.slane %v2456, %v2460
    %v2479 = vunpack.c.l.b16 %v2440
    %v2480 = vunpack.c.l.b16 %v2441
    %v2481 = vunpack.c.l.b16 %v2442
    %v2482 = vunpack.c.l.b16 %v2443
    %v2483 = vunpack.c.l.b16 %v2444
    %v2484 = vunpack.c.l.b16 %v2445
    %v2485 = vunpack.c.l.b16 %v2446
    %v2486 = vunpack.c.l.b16 %v2447
    %v2487 = vunpack.c.l.b16 %v2448
    %v2488 = vunpack.c.l.b16 %v2449
    %v2489 = vunpack.c.l.b16 %v2450
    %v2490 = vunpack.c.l.b16 %v2451
    %v2491 = vunpack.c.l.b16 %v2452
    %v2492 = vunpack.c.l.b16 %v2453
    %v2493 = vunpack.c.l.b16 %v2454
    %v2494 = vunpack.c.l.b16 %v2455
    %v2495 = vpack.c.b16 %v2480, %v2479
    %v2496 = vpack.c.b16 %v2482, %v2481
    %v2497 = vpack.c.b16 %v2484, %v2483
    %v2498 = vpack.c.b16 %v2486, %v2485
    %v2499 = vpack.c.b16 %v2488, %v2487
    %v2500 = vpack.c.b16 %v2490, %v2489
    %v2501 = vpack.c.b16 %v2492, %v2491
    %v2502 = vpack.c.b16 %v2494, %v2493
    %2511 = vmatprep.subr.bf16.mxu0 0
    %2512 = vmatpush1.bf16.msra.mxu0 %v2502
    %2513 = vmatprep.subr.bf16.mxu0 0
    %2514 = vmatpush1.bf16.msra.mxu0 %v2501
    %2515 = vmatprep.subr.bf16.mxu0 0
    %2516 = vmatpush1.bf16.msra.mxu0 %v2500
    %2517 = vmatprep.subr.bf16.mxu0 0
    %2518 = vmatpush1.bf16.msra.mxu0 %v2499
    %2519 = vmatprep.subr.bf16.mxu0 0
    %2520 = vmatpush1.bf16.msra.mxu0 %v2498
    %2521 = vmatprep.subr.bf16.mxu0 0
    %2522 = vmatpush1.bf16.msra.mxu0 %v2497
    %2523 = vmatprep.subr.bf16.mxu0 0
    %2524 = vmatpush1.bf16.msra.mxu0 %v2496
    %2525 = vmatprep.subr.bf16.mxu0 0
    %2526 = vmatpush1.bf16.msra.mxu0 %v2495
    %2527 = vmatprep.subr.bf16.mxu0 0
    %2528 = vmatpush2.bf16.msra.mxu0 0
    %2529 = vmatprep.subr.bf16.mxu0 0
    %2530 = vmatpush2.bf16.msra.mxu0 0
    %2531 = vmatprep.subr.bf16.mxu0 0
    %2532 = vmatpush2.bf16.msra.mxu0 0
    %2533 = vmatprep.subr.bf16.mxu0 0
    %2534 = vmatpush2.bf16.msra.mxu0 0
    %2535 = vmatprep.subr.bf16.mxu0 0
    %2536 = vmatpush2.bf16.msra.mxu0 0
    %2537 = vmatprep.subr.bf16.mxu0 0
    %2538 = vmatpush2.bf16.msra.mxu0 0
    %2539 = vmatprep.subr.bf16.mxu0 0
    %2540 = vmatpush2.bf16.msra.mxu0 0
    %2541 = vmatprep.subr.bf16.mxu0 0
    %2542 = vmatpush2.bf16.msra.mxu0 0
    %2543 = vmatprep.mubr.bf16.mxu0 0
    %2544 = vmatmul.mubr.bf16.gmra.mxu0 %v2439
    %v2545 = vpop.f32.mrf.mxu0
    %v2546 = vadd.f32 %v2461, %v2545
    %v2547 = vpop.f32.mrf.mxu0
    %v2548 = vpop.f32.mrf.mxu0
    %v2549 = vpop.f32.mrf.mxu0
    %2550 = vdwg.mxu0
    %v2551 = vmul.f32 %v2546, 0.5
    %v2552 = vmul.f32 %v2546, 0.044715
    %v2553 = vmul.f32 %v2552, %v2546
    %v2554 = vmul.f32 %v2553, %v2546
    %v2555 = vadd.f32 %v2546, %v2554
    %v2556 = vmul.f32 %v2555, 0.7978846
    %v2557 = vtanh.pop %v2556
    %v2558 = vadd.f32 %v2557, 1.0
    %v2559 = vmul.f32 %v2551, %v2558
    %v2560 = vld [vmem:[%s12] sm:$0x1]
    %v2562 = vlaneseq
    %v2563 = vshrl.u32 %v2562, 7
    %v2564 = vsub.s32 0, %v2563
    %v2565 = vrot.slane %v2560, %v2564
    %v2567 = vmul.f32 %v2559, %v2565
    %vm2568 = vcmask 519168
    %v2569 = vsel %vm2568, %v2567, 0.0
    %2570 = vadd.xlane.f32.xlu0 %v2569
    %v2571 = vpop.xlane.xlu0 %2570
    %v2572 = vld [vmem:[#allocation3] sm:$0x1]
    %v2574 = vlaneseq
    %v2575 = vshrl.u32 %v2574, 7
    %v2576 = vsub.s32 0, %v2575
    %v2577 = vrot.slane %v2572, %v2576
    %v2579 = vadd.f32 %v2571, %v2577
    %vm2580 = vcmask 3072
    %2581 = vst.msk [vmem:[%s19] sm:$0xf] %vm2580, %v2579
    %v2582 = vld [vmem:[%s2] sm:$0xff]
    %v2583 = vld [vmem:[%s2 + $0x8] sm:$0xff]
    %v2584 = vld [vmem:[%s2 + $0x10] sm:$0xff]
    %v2585 = vld [vmem:[%s2 + $0x18] sm:$0xff]
    %v2586 = vld [vmem:[%s2 + $0x20] sm:$0xff]
    %v2587 = vld [vmem:[%s2 + $0x28] sm:$0xff]
    %v2588 = vld [vmem:[%s2 + $0x30] sm:$0xff]
    %v2589 = vld [vmem:[%s2 + $0x38] sm:$0xff]
    %v2590 = vld [vmem:[%s2 + $0x40] sm:$0xff]
    %v2591 = vld [vmem:[%s2 + $0x48] sm:$0xff]
    %v2592 = vld [vmem:[%s2 + $0x50] sm:$0xff]
    %v2593 = vld [vmem:[%s2 + $0x58] sm:$0xff]
    %v2594 = vld [vmem:[%s2 + $0x60] sm:$0xff]
    %v2595 = vld [vmem:[%s2 + $0x68] sm:$0xff]
    %v2596 = vld [vmem:[%s2 + $0x70] sm:$0xff]
    %v2597 = vld [vmem:[%s2 + $0x78] sm:$0xff]
    %v2598 = vld [vmem:[%s2 + $0x80] sm:$0xff]
    %v2599 = vld [vmem:[%s2 + $0x88] sm:$0xff]
    %v2600 = vld [vmem:[%s2 + $0x90] sm:$0xff]
    %v2601 = vld [vmem:[%s2 + $0x98] sm:$0xff]
    %v2602 = vld [vmem:[%s2 + $0xa0] sm:$0xff]
    %v2603 = vld [vmem:[%s2 + $0xa8] sm:$0xff]
    %v2604 = vld [vmem:[%s2 + $0xb0] sm:$0xff]
    %v2605 = vld [vmem:[%s2 + $0xb8] sm:$0xff]
    %v2606 = vld [vmem:[%s2 + $0xc0] sm:$0xff]
    %v2607 = vld [vmem:[%s2 + $0xc8] sm:$0xff]
    %v2608 = vld [vmem:[%s2 + $0xd0] sm:$0xff]
    %v2609 = vld [vmem:[%s2 + $0xd8] sm:$0xff]
    %v2610 = vld [vmem:[%s2 + $0xe0] sm:$0xff]
    %v2611 = vld [vmem:[%s2 + $0xe8] sm:$0xff]
    %v2612 = vld [vmem:[%s2 + $0xf0] sm:$0xff]
    %v2613 = vld [vmem:[%s2 + $0xf8] sm:$0xff]
    %vm2614 = vcmp.eq.s32.totalorder %v2582, 0
    %vm2615 = vcmp.eq.s32.totalorder %v2583, 0
    %vm2616 = vcmp.eq.s32.totalorder %v2584, 0
    %vm2617 = vcmp.eq.s32.totalorder %v2585, 0
    %vm2618 = vcmp.eq.s32.totalorder %v2586, 0
    %vm2619 = vcmp.eq.s32.totalorder %v2587, 0
    %vm2620 = vcmp.eq.s32.totalorder %v2588, 0
    %vm2621 = vcmp.eq.s32.totalorder %v2589, 0
    %vm2622 = vcmp.eq.s32.totalorder %v2590, 0
    %vm2623 = vcmp.eq.s32.totalorder %v2591, 0
    %vm2624 = vcmp.eq.s32.totalorder %v2592, 0
    %vm2625 = vcmp.eq.s32.totalorder %v2593, 0
    %vm2626 = vcmp.eq.s32.totalorder %v2594, 0
    %vm2627 = vcmp.eq.s32.totalorder %v2595, 0
    %vm2628 = vcmp.eq.s32.totalorder %v2596, 0
    %vm2629 = vcmp.eq.s32.totalorder %v2597, 0
    %vm2630 = vcmp.eq.s32.totalorder %v2598, 0
    %vm2631 = vcmp.eq.s32.totalorder %v2599, 0
    %vm2632 = vcmp.eq.s32.totalorder %v2600, 0
    %vm2633 = vcmp.eq.s32.totalorder %v2601, 0
    %vm2634 = vcmp.eq.s32.totalorder %v2602, 0
    %vm2635 = vcmp.eq.s32.totalorder %v2603, 0
    %vm2636 = vcmp.eq.s32.totalorder %v2604, 0
    %vm2637 = vcmp.eq.s32.totalorder %v2605, 0
    %vm2638 = vcmp.eq.s32.totalorder %v2606, 0
    %vm2639 = vcmp.eq.s32.totalorder %v2607, 0
    %vm2640 = vcmp.eq.s32.totalorder %v2608, 0
    %vm2641 = vcmp.eq.s32.totalorder %v2609, 0
    %vm2642 = vcmp.eq.s32.totalorder %v2610, 0
    %vm2643 = vcmp.eq.s32.totalorder %v2611, 0
    %vm2644 = vcmp.eq.s32.totalorder %v2612, 0
    %vm2645 = vcmp.eq.s32.totalorder %v2613, 0
    %v2646 = vsel %vm2614, 1, 0
    %v2647 = vsel %vm2615, 1, 0
    %v2648 = vsel %vm2616, 1, 0
    %v2649 = vsel %vm2617, 1, 0
    %v2650 = vsel %vm2618, 1, 0
    %v2651 = vsel %vm2619, 1, 0
    %v2652 = vsel %vm2620, 1, 0
    %v2653 = vsel %vm2621, 1, 0
    %v2654 = vsel %vm2622, 1, 0
    %v2655 = vsel %vm2623, 1, 0
    %v2656 = vsel %vm2624, 1, 0
    %v2657 = vsel %vm2625, 1, 0
    %v2658 = vsel %vm2626, 1, 0
    %v2659 = vsel %vm2627, 1, 0
    %v2660 = vsel %vm2628, 1, 0
    %v2661 = vsel %vm2629, 1, 0
    %v2662 = vsel %vm2630, 1, 0
    %v2663 = vsel %vm2631, 1, 0
    %v2664 = vsel %vm2632, 1, 0
    %v2665 = vsel %vm2633, 1, 0
    %v2666 = vsel %vm2634, 1, 0
    %v2667 = vsel %vm2635, 1, 0
    %v2668 = vsel %vm2636, 1, 0
    %v2669 = vsel %vm2637, 1, 0
    %v2670 = vsel %vm2638, 1, 0
    %v2671 = vsel %vm2639, 1, 0
    %v2672 = vsel %vm2640, 1, 0
    %v2673 = vsel %vm2641, 1, 0
    %v2674 = vsel %vm2642, 1, 0
    %v2675 = vsel %vm2643, 1, 0
    %v2676 = vsel %vm2644, 1, 0
    %v2677 = vsel %vm2645, 1, 0
    %2678 = vset.pattern.permute.xlu0 0
    %2679 = vperm.xlu0 %2678, %v2646
    %v2680 = vpop.permute.xlu0 %2679
    %2681 = vset.pattern.permute.xlu0 0
    %2682 = vperm.xlu0 %2681, %v2647
    %v2683 = vpop.permute.xlu0 %2682
    %2684 = vset.pattern.permute.xlu0 0
    %2685 = vperm.xlu0 %2684, %v2648
    %v2686 = vpop.permute.xlu0 %2685
    %2687 = vset.pattern.permute.xlu0 0
    %2688 = vperm.xlu0 %2687, %v2649
    %v2689 = vpop.permute.xlu0 %2688
    %2690 = vset.pattern.permute.xlu0 0
    %2691 = vperm.xlu0 %2690, %v2650
    %v2692 = vpop.permute.xlu0 %2691
    %2693 = vset.pattern.permute.xlu0 0
    %2694 = vperm.xlu0 %2693, %v2651
    %v2695 = vpop.permute.xlu0 %2694
    %2696 = vset.pattern.permute.xlu0 0
    %2697 = vperm.xlu0 %2696, %v2652
    %v2698 = vpop.permute.xlu0 %2697
    %2699 = vset.pattern.permute.xlu0 0
    %2700 = vperm.xlu0 %2699, %v2653
    %v2701 = vpop.permute.xlu0 %2700
    %2702 = vset.pattern.permute.xlu0 0
    %2703 = vperm.xlu0 %2702, %v2654
    %v2704 = vpop.permute.xlu0 %2703
    %2705 = vset.pattern.permute.xlu0 0
    %2706 = vperm.xlu0 %2705, %v2655
    %v2707 = vpop.permute.xlu0 %2706
    %2708 = vset.pattern.permute.xlu0 0
    %2709 = vperm.xlu0 %2708, %v2656
    %v2710 = vpop.permute.xlu0 %2709
    %2711 = vset.pattern.permute.xlu0 0
    %2712 = vperm.xlu0 %2711, %v2657
    %v2713 = vpop.permute.xlu0 %2712
    %2714 = vset.pattern.permute.xlu0 0
    %2715 = vperm.xlu0 %2714, %v2658
    %v2716 = vpop.permute.xlu0 %2715
    %2717 = vset.pattern.permute.xlu0 0
    %2718 = vperm.xlu0 %2717, %v2659
    %v2719 = vpop.permute.xlu0 %2718
    %2720 = vset.pattern.permute.xlu0 0
    %2721 = vperm.xlu0 %2720, %v2660
    %v2722 = vpop.permute.xlu0 %2721
    %2723 = vset.pattern.permute.xlu0 0
    %2724 = vperm.xlu0 %2723, %v2661
    %v2725 = vpop.permute.xlu0 %2724
    %2726 = vset.pattern.permute.xlu0 0
    %2727 = vperm.xlu0 %2726, %v2662
    %v2728 = vpop.permute.xlu0 %2727
    %2729 = vset.pattern.permute.xlu0 0
    %2730 = vperm.xlu0 %2729, %v2663
    %v2731 = vpop.permute.xlu0 %2730
    %2732 = vset.pattern.permute.xlu0 0
    %2733 = vperm.xlu0 %2732, %v2664
    %v2734 = vpop.permute.xlu0 %2733
    %2735 = vset.pattern.permute.xlu0 0
    %2736 = vperm.xlu0 %2735, %v2665
    %v2737 = vpop.permute.xlu0 %2736
    %2738 = vset.pattern.permute.xlu0 0
    %2739 = vperm.xlu0 %2738, %v2666
    %v2740 = vpop.permute.xlu0 %2739
    %2741 = vset.pattern.permute.xlu0 0
    %2742 = vperm.xlu0 %2741, %v2667
    %v2743 = vpop.permute.xlu0 %2742
    %2744 = vset.pattern.permute.xlu0 0
    %2745 = vperm.xlu0 %2744, %v2668
    %v2746 = vpop.permute.xlu0 %2745
    %2747 = vset.pattern.permute.xlu0 0
    %2748 = vperm.xlu0 %2747, %v2669
    %v2749 = vpop.permute.xlu0 %2748
    %2750 = vset.pattern.permute.xlu0 0
    %2751 = vperm.xlu0 %2750, %v2670
    %v2752 = vpop.permute.xlu0 %2751
    %2753 = vset.pattern.permute.xlu0 0
    %2754 = vperm.xlu0 %2753, %v2671
    %v2755 = vpop.permute.xlu0 %2754
    %2756 = vset.pattern.permute.xlu0 0
    %2757 = vperm.xlu0 %2756, %v2672
    %v2758 = vpop.permute.xlu0 %2757
    %2759 = vset.pattern.permute.xlu0 0
    %2760 = vperm.xlu0 %2759, %v2673
    %v2761 = vpop.permute.xlu0 %2760
    %2762 = vset.pattern.permute.xlu0 0
    %2763 = vperm.xlu0 %2762, %v2674
    %v2764 = vpop.permute.xlu0 %2763
    %2765 = vset.pattern.permute.xlu0 0
    %2766 = vperm.xlu0 %2765, %v2675
    %v2767 = vpop.permute.xlu0 %2766
    %2768 = vset.pattern.permute.xlu0 0
    %2769 = vperm.xlu0 %2768, %v2676
    %v2770 = vpop.permute.xlu0 %2769
    %2771 = vset.pattern.permute.xlu0 0
    %2772 = vperm.xlu0 %2771, %v2677
    %v2773 = vpop.permute.xlu0 %2772
    %vm2774 = vcmp.eq.s32.totalorder %v2680, 1
    %vm2775 = vcmp.eq.s32.totalorder %v2683, 1
    %vm2776 = vcmp.eq.s32.totalorder %v2686, 1
    %vm2777 = vcmp.eq.s32.totalorder %v2689, 1
    %vm2778 = vcmp.eq.s32.totalorder %v2692, 1
    %vm2779 = vcmp.eq.s32.totalorder %v2695, 1
    %vm2780 = vcmp.eq.s32.totalorder %v2698, 1
    %vm2781 = vcmp.eq.s32.totalorder %v2701, 1
    %vm2782 = vcmp.eq.s32.totalorder %v2704, 1
    %vm2783 = vcmp.eq.s32.totalorder %v2707, 1
    %vm2784 = vcmp.eq.s32.totalorder %v2710, 1
    %vm2785 = vcmp.eq.s32.totalorder %v2713, 1
    %vm2786 = vcmp.eq.s32.totalorder %v2716, 1
    %vm2787 = vcmp.eq.s32.totalorder %v2719, 1
    %vm2788 = vcmp.eq.s32.totalorder %v2722, 1
    %vm2789 = vcmp.eq.s32.totalorder %v2725, 1
    %vm2790 = vcmp.eq.s32.totalorder %v2728, 1
    %vm2791 = vcmp.eq.s32.totalorder %v2731, 1
    %vm2792 = vcmp.eq.s32.totalorder %v2734, 1
    %vm2793 = vcmp.eq.s32.totalorder %v2737, 1
    %vm2794 = vcmp.eq.s32.totalorder %v2740, 1
    %vm2795 = vcmp.eq.s32.totalorder %v2743, 1
    %vm2796 = vcmp.eq.s32.totalorder %v2746, 1
    %vm2797 = vcmp.eq.s32.totalorder %v2749, 1
    %vm2798 = vcmp.eq.s32.totalorder %v2752, 1
    %vm2799 = vcmp.eq.s32.totalorder %v2755, 1
    %vm2800 = vcmp.eq.s32.totalorder %v2758, 1
    %vm2801 = vcmp.eq.s32.totalorder %v2761, 1
    %vm2802 = vcmp.eq.s32.totalorder %v2764, 1
    %vm2803 = vcmp.eq.s32.totalorder %v2767, 1
    %vm2804 = vcmp.eq.s32.totalorder %v2770, 1
    %vm2805 = vcmp.eq.s32.totalorder %v2773, 1
    %v2806 = vlaneseq
    %v2807 = vshrl.u32 %v2806, 7
    %v2808 = vsub.s32 0, %v2807
    %v2809 = vrot.slane %v2434, %v2808
    %v2810 = vsel %vm2774, %v2809, 0.0
    %v2811 = vsel %vm2775, %v2809, 0.0
    %v2812 = vsel %vm2776, %v2809, 0.0
    %v2813 = vsel %vm2777, %v2809, 0.0
    %v2814 = vsel %vm2778, %v2809, 0.0
    %v2815 = vsel %vm2779, %v2809, 0.0
    %v2816 = vsel %vm2780, %v2809, 0.0
    %v2817 = vsel %vm2781, %v2809, 0.0
    %v2818 = vsel %vm2782, %v2809, 0.0
    %v2819 = vsel %vm2783, %v2809, 0.0
    %v2820 = vsel %vm2784, %v2809, 0.0
    %v2821 = vsel %vm2785, %v2809, 0.0
    %v2822 = vsel %vm2786, %v2809, 0.0
    %v2823 = vsel %vm2787, %v2809, 0.0
    %v2824 = vsel %vm2788, %v2809, 0.0
    %v2825 = vsel %vm2789, %v2809, 0.0
    %v2826 = vsel %vm2790, %v2809, 0.0
    %v2827 = vsel %vm2791, %v2809, 0.0
    %v2828 = vsel %vm2792, %v2809, 0.0
    %v2829 = vsel %vm2793, %v2809, 0.0
    %v2830 = vsel %vm2794, %v2809, 0.0
    %v2831 = vsel %vm2795, %v2809, 0.0
    %v2832 = vsel %vm2796, %v2809, 0.0
    %v2833 = vsel %vm2797, %v2809, 0.0
    %v2834 = vsel %vm2798, %v2809, 0.0
    %v2835 = vsel %vm2799, %v2809, 0.0
    %v2836 = vsel %vm2800, %v2809, 0.0
    %v2837 = vsel %vm2801, %v2809, 0.0
    %v2838 = vsel %vm2802, %v2809, 0.0
    %v2839 = vsel %vm2803, %v2809, 0.0
    %v2840 = vsel %vm2804, %v2809, 0.0
    %v2841 = vsel %vm2805, %v2809, 0.0
    %vm2842 = vcmp.eq.s32.totalorder %v2582, 1
    %vm2843 = vcmp.eq.s32.totalorder %v2583, 1
    %vm2844 = vcmp.eq.s32.totalorder %v2584, 1
    %vm2845 = vcmp.eq.s32.totalorder %v2585, 1
    %vm2846 = vcmp.eq.s32.totalorder %v2586, 1
    %vm2847 = vcmp.eq.s32.totalorder %v2587, 1
    %vm2848 = vcmp.eq.s32.totalorder %v2588, 1
    %vm2849 = vcmp.eq.s32.totalorder %v2589, 1
    %vm2850 = vcmp.eq.s32.totalorder %v2590, 1
    %vm2851 = vcmp.eq.s32.totalorder %v2591, 1
    %vm2852 = vcmp.eq.s32.totalorder %v2592, 1
    %vm2853 = vcmp.eq.s32.totalorder %v2593, 1
    %vm2854 = vcmp.eq.s32.totalorder %v2594, 1
    %vm2855 = vcmp.eq.s32.totalorder %v2595, 1
    %vm2856 = vcmp.eq.s32.totalorder %v2596, 1
    %vm2857 = vcmp.eq.s32.totalorder %v2597, 1
    %vm2858 = vcmp.eq.s32.totalorder %v2598, 1
    %vm2859 = vcmp.eq.s32.totalorder %v2599, 1
    %vm2860 = vcmp.eq.s32.totalorder %v2600, 1
    %vm2861 = vcmp.eq.s32.totalorder %v2601, 1
    %vm2862 = vcmp.eq.s32.totalorder %v2602, 1
    %vm2863 = vcmp.eq.s32.totalorder %v2603, 1
    %vm2864 = vcmp.eq.s32.totalorder %v2604, 1
    %vm2865 = vcmp.eq.s32.totalorder %v2605, 1
    %vm2866 = vcmp.eq.s32.totalorder %v2606, 1
    %vm2867 = vcmp.eq.s32.totalorder %v2607, 1
    %vm2868 = vcmp.eq.s32.totalorder %v2608, 1
    %vm2869 = vcmp.eq.s32.totalorder %v2609, 1
    %vm2870 = vcmp.eq.s32.totalorder %v2610, 1
    %vm2871 = vcmp.eq.s32.totalorder %v2611, 1
    %vm2872 = vcmp.eq.s32.totalorder %v2612, 1
    %vm2873 = vcmp.eq.s32.totalorder %v2613, 1
    %v2874 = vsel %vm2842, 1, 0
    %v2875 = vsel %vm2843, 1, 0
    %v2876 = vsel %vm2844, 1, 0
    %v2877 = vsel %vm2845, 1, 0
    %v2878 = vsel %vm2846, 1, 0
    %v2879 = vsel %vm2847, 1, 0
    %v2880 = vsel %vm2848, 1, 0
    %v2881 = vsel %vm2849, 1, 0
    %v2882 = vsel %vm2850, 1, 0
    %v2883 = vsel %vm2851, 1, 0
    %v2884 = vsel %vm2852, 1, 0
    %v2885 = vsel %vm2853, 1, 0
    %v2886 = vsel %vm2854, 1, 0
    %v2887 = vsel %vm2855, 1, 0
    %v2888 = vsel %vm2856, 1, 0
    %v2889 = vsel %vm2857, 1, 0
    %v2890 = vsel %vm2858, 1, 0
    %v2891 = vsel %vm2859, 1, 0
    %v2892 = vsel %vm2860, 1, 0
    %v2893 = vsel %vm2861, 1, 0
    %v2894 = vsel %vm2862, 1, 0
    %v2895 = vsel %vm2863, 1, 0
    %v2896 = vsel %vm2864, 1, 0
    %v2897 = vsel %vm2865, 1, 0
    %v2898 = vsel %vm2866, 1, 0
    %v2899 = vsel %vm2867, 1, 0
    %v2900 = vsel %vm2868, 1, 0
    %v2901 = vsel %vm2869, 1, 0
    %v2902 = vsel %vm2870, 1, 0
    %v2903 = vsel %vm2871, 1, 0
    %v2904 = vsel %vm2872, 1, 0
    %v2905 = vsel %vm2873, 1, 0
    %2906 = vset.pattern.permute.xlu0 0
    %2907 = vperm.xlu0 %2906, %v2874
    %v2908 = vpop.permute.xlu0 %2907
    %2909 = vset.pattern.permute.xlu0 0
    %2910 = vperm.xlu0 %2909, %v2875
    %v2911 = vpop.permute.xlu0 %2910
    %2912 = vset.pattern.permute.xlu0 0
    %2913 = vperm.xlu0 %2912, %v2876
    %v2914 = vpop.permute.xlu0 %2913
    %2915 = vset.pattern.permute.xlu0 0
    %2916 = vperm.xlu0 %2915, %v2877
    %v2917 = vpop.permute.xlu0 %2916
    %2918 = vset.pattern.permute.xlu0 0
    %2919 = vperm.xlu0 %2918, %v2878
    %v2920 = vpop.permute.xlu0 %2919
    %2921 = vset.pattern.permute.xlu0 0
    %2922 = vperm.xlu0 %2921, %v2879
    %v2923 = vpop.permute.xlu0 %2922
    %2924 = vset.pattern.permute.xlu0 0
    %2925 = vperm.xlu0 %2924, %v2880
    %v2926 = vpop.permute.xlu0 %2925
    %2927 = vset.pattern.permute.xlu0 0
    %2928 = vperm.xlu0 %2927, %v2881
    %v2929 = vpop.permute.xlu0 %2928
    %2930 = vset.pattern.permute.xlu0 0
    %2931 = vperm.xlu0 %2930, %v2882
    %v2932 = vpop.permute.xlu0 %2931
    %2933 = vset.pattern.permute.xlu0 0
    %2934 = vperm.xlu0 %2933, %v2883
    %v2935 = vpop.permute.xlu0 %2934
    %2936 = vset.pattern.permute.xlu0 0
    %2937 = vperm.xlu0 %2936, %v2884
    %v2938 = vpop.permute.xlu0 %2937
    %2939 = vset.pattern.permute.xlu0 0
    %2940 = vperm.xlu0 %2939, %v2885
    %v2941 = vpop.permute.xlu0 %2940
    %2942 = vset.pattern.permute.xlu0 0
    %2943 = vperm.xlu0 %2942, %v2886
    %v2944 = vpop.permute.xlu0 %2943
    %2945 = vset.pattern.permute.xlu0 0
    %2946 = vperm.xlu0 %2945, %v2887
    %v2947 = vpop.permute.xlu0 %2946
    %2948 = vset.pattern.permute.xlu0 0
    %2949 = vperm.xlu0 %2948, %v2888
    %v2950 = vpop.permute.xlu0 %2949
    %2951 = vset.pattern.permute.xlu0 0
    %2952 = vperm.xlu0 %2951, %v2889
    %v2953 = vpop.permute.xlu0 %2952
    %2954 = vset.pattern.permute.xlu0 0
    %2955 = vperm.xlu0 %2954, %v2890
    %v2956 = vpop.permute.xlu0 %2955
    %2957 = vset.pattern.permute.xlu0 0
    %2958 = vperm.xlu0 %2957, %v2891
    %v2959 = vpop.permute.xlu0 %2958
    %2960 = vset.pattern.permute.xlu0 0
    %2961 = vperm.xlu0 %2960, %v2892
    %v2962 = vpop.permute.xlu0 %2961
    %2963 = vset.pattern.permute.xlu0 0
    %2964 = vperm.xlu0 %2963, %v2893
    %v2965 = vpop.permute.xlu0 %2964
    %2966 = vset.pattern.permute.xlu0 0
    %2967 = vperm.xlu0 %2966, %v2894
    %v2968 = vpop.permute.xlu0 %2967
    %2969 = vset.pattern.permute.xlu0 0
    %2970 = vperm.xlu0 %2969, %v2895
    %v2971 = vpop.permute.xlu0 %2970
    %2972 = vset.pattern.permute.xlu0 0
    %2973 = vperm.xlu0 %2972, %v2896
    %v2974 = vpop.permute.xlu0 %2973
    %2975 = vset.pattern.permute.xlu0 0
    %2976 = vperm.xlu0 %2975, %v2897
    %v2977 = vpop.permute.xlu0 %2976
    %2978 = vset.pattern.permute.xlu0 0
    %2979 = vperm.xlu0 %2978, %v2898
    %v2980 = vpop.permute.xlu0 %2979
    %2981 = vset.pattern.permute.xlu0 0
    %2982 = vperm.xlu0 %2981, %v2899
    %v2983 = vpop.permute.xlu0 %2982
    %2984 = vset.pattern.permute.xlu0 0
    %2985 = vperm.xlu0 %2984, %v2900
    %v2986 = vpop.permute.xlu0 %2985
    %2987 = vset.pattern.permute.xlu0 0
    %2988 = vperm.xlu0 %2987, %v2901
    %v2989 = vpop.permute.xlu0 %2988
    %2990 = vset.pattern.permute.xlu0 0
    %2991 = vperm.xlu0 %2990, %v2902
    %v2992 = vpop.permute.xlu0 %2991
    %2993 = vset.pattern.permute.xlu0 0
    %2994 = vperm.xlu0 %2993, %v2903
    %v2995 = vpop.permute.xlu0 %2994
    %2996 = vset.pattern.permute.xlu0 0
    %2997 = vperm.xlu0 %2996, %v2904
    %v2998 = vpop.permute.xlu0 %2997
    %2999 = vset.pattern.permute.xlu0 0
    %3000 = vperm.xlu0 %2999, %v2905
    %v3001 = vpop.permute.xlu0 %3000
    %vm3002 = vcmp.eq.s32.totalorder %v2908, 1
    %vm3003 = vcmp.eq.s32.totalorder %v2911, 1
    %vm3004 = vcmp.eq.s32.totalorder %v2914, 1
    %vm3005 = vcmp.eq.s32.totalorder %v2917, 1
    %vm3006 = vcmp.eq.s32.totalorder %v2920, 1
    %vm3007 = vcmp.eq.s32.totalorder %v2923, 1
    %vm3008 = vcmp.eq.s32.totalorder %v2926, 1
    %vm3009 = vcmp.eq.s32.totalorder %v2929, 1
    %vm3010 = vcmp.eq.s32.totalorder %v2932, 1
    %vm3011 = vcmp.eq.s32.totalorder %v2935, 1
    %vm3012 = vcmp.eq.s32.totalorder %v2938, 1
    %vm3013 = vcmp.eq.s32.totalorder %v2941, 1
    %vm3014 = vcmp.eq.s32.totalorder %v2944, 1
    %vm3015 = vcmp.eq.s32.totalorder %v2947, 1
    %vm3016 = vcmp.eq.s32.totalorder %v2950, 1
    %vm3017 = vcmp.eq.s32.totalorder %v2953, 1
    %vm3018 = vcmp.eq.s32.totalorder %v2956, 1
    %vm3019 = vcmp.eq.s32.totalorder %v2959, 1
    %vm3020 = vcmp.eq.s32.totalorder %v2962, 1
    %vm3021 = vcmp.eq.s32.totalorder %v2965, 1
    %vm3022 = vcmp.eq.s32.totalorder %v2968, 1
    %vm3023 = vcmp.eq.s32.totalorder %v2971, 1
    %vm3024 = vcmp.eq.s32.totalorder %v2974, 1
    %vm3025 = vcmp.eq.s32.totalorder %v2977, 1
    %vm3026 = vcmp.eq.s32.totalorder %v2980, 1
    %vm3027 = vcmp.eq.s32.totalorder %v2983, 1
    %vm3028 = vcmp.eq.s32.totalorder %v2986, 1
    %vm3029 = vcmp.eq.s32.totalorder %v2989, 1
    %vm3030 = vcmp.eq.s32.totalorder %v2992, 1
    %vm3031 = vcmp.eq.s32.totalorder %v2995, 1
    %vm3032 = vcmp.eq.s32.totalorder %v2998, 1
    %vm3033 = vcmp.eq.s32.totalorder %v3001, 1
    %v3034 = vlaneseq
    %v3035 = vshrl.u32 %v3034, 7
    %v3036 = vsub.s32 1, %v3035
    %v3037 = vrot.slane %v2434, %v3036
    %v3038 = vsel %vm3002, %v3037, %v2810
    %v3039 = vsel %vm3003, %v3037, %v2811
    %v3040 = vsel %vm3004, %v3037, %v2812
    %v3041 = vsel %vm3005, %v3037, %v2813
    %v3042 = vsel %vm3006, %v3037, %v2814
    %v3043 = vsel %vm3007, %v3037, %v2815
    %v3044 = vsel %vm3008, %v3037, %v2816
    %v3045 = vsel %vm3009, %v3037, %v2817
    %v3046 = vsel %vm3010, %v3037, %v2818
    %v3047 = vsel %vm3011, %v3037, %v2819
    %v3048 = vsel %vm3012, %v3037, %v2820
    %v3049 = vsel %vm3013, %v3037, %v2821
    %v3050 = vsel %vm3014, %v3037, %v2822
    %v3051 = vsel %vm3015, %v3037, %v2823
    %v3052 = vsel %vm3016, %v3037, %v2824
    %v3053 = vsel %vm3017, %v3037, %v2825
    %v3054 = vsel %vm3018, %v3037, %v2826
    %v3055 = vsel %vm3019, %v3037, %v2827
    %v3056 = vsel %vm3020, %v3037, %v2828
    %v3057 = vsel %vm3021, %v3037, %v2829
    %v3058 = vsel %vm3022, %v3037, %v2830
    %v3059 = vsel %vm3023, %v3037, %v2831
    %v3060 = vsel %vm3024, %v3037, %v2832
    %v3061 = vsel %vm3025, %v3037, %v2833
    %v3062 = vsel %vm3026, %v3037, %v2834
    %v3063 = vsel %vm3027, %v3037, %v2835
    %v3064 = vsel %vm3028, %v3037, %v2836
    %v3065 = vsel %vm3029, %v3037, %v2837
    %v3066 = vsel %vm3030, %v3037, %v2838
    %v3067 = vsel %vm3031, %v3037, %v2839
    %v3068 = vsel %vm3032, %v3037, %v2840
    %v3069 = vsel %vm3033, %v3037, %v2841
    %vm3070 = vcmp.eq.s32.totalorder %v2582, 2
    %vm3071 = vcmp.eq.s32.totalorder %v2583, 2
    %vm3072 = vcmp.eq.s32.totalorder %v2584, 2
    %vm3073 = vcmp.eq.s32.totalorder %v2585, 2
    %vm3074 = vcmp.eq.s32.totalorder %v2586, 2
    %vm3075 = vcmp.eq.s32.totalorder %v2587, 2
    %vm3076 = vcmp.eq.s32.totalorder %v2588, 2
    %vm3077 = vcmp.eq.s32.totalorder %v2589, 2
    %vm3078 = vcmp.eq.s32.totalorder %v2590, 2
    %vm3079 = vcmp.eq.s32.totalorder %v2591, 2
    %vm3080 = vcmp.eq.s32.totalorder %v2592, 2
    %vm3081 = vcmp.eq.s32.totalorder %v2593, 2
    %vm3082 = vcmp.eq.s32.totalorder %v2594, 2
    %vm3083 = vcmp.eq.s32.totalorder %v2595, 2
    %vm3084 = vcmp.eq.s32.totalorder %v2596, 2
    %vm3085 = vcmp.eq.s32.totalorder %v2597, 2
    %vm3086 = vcmp.eq.s32.totalorder %v2598, 2
    %vm3087 = vcmp.eq.s32.totalorder %v2599, 2
    %vm3088 = vcmp.eq.s32.totalorder %v2600, 2
    %vm3089 = vcmp.eq.s32.totalorder %v2601, 2
    %vm3090 = vcmp.eq.s32.totalorder %v2602, 2
    %vm3091 = vcmp.eq.s32.totalorder %v2603, 2
    %vm3092 = vcmp.eq.s32.totalorder %v2604, 2
    %vm3093 = vcmp.eq.s32.totalorder %v2605, 2
    %vm3094 = vcmp.eq.s32.totalorder %v2606, 2
    %vm3095 = vcmp.eq.s32.totalorder %v2607, 2
    %vm3096 = vcmp.eq.s32.totalorder %v2608, 2
    %vm3097 = vcmp.eq.s32.totalorder %v2609, 2
    %vm3098 = vcmp.eq.s32.totalorder %v2610, 2
    %vm3099 = vcmp.eq.s32.totalorder %v2611, 2
    %vm3100 = vcmp.eq.s32.totalorder %v2612, 2
    %vm3101 = vcmp.eq.s32.totalorder %v2613, 2
    %v3102 = vsel %vm3070, 1, 0
    %v3103 = vsel %vm3071, 1, 0
    %v3104 = vsel %vm3072, 1, 0
    %v3105 = vsel %vm3073, 1, 0
    %v3106 = vsel %vm3074, 1, 0
    %v3107 = vsel %vm3075, 1, 0
    %v3108 = vsel %vm3076, 1, 0
    %v3109 = vsel %vm3077, 1, 0
    %v3110 = vsel %vm3078, 1, 0
    %v3111 = vsel %vm3079, 1, 0
    %v3112 = vsel %vm3080, 1, 0
    %v3113 = vsel %vm3081, 1, 0
    %v3114 = vsel %vm3082, 1, 0
    %v3115 = vsel %vm3083, 1, 0
    %v3116 = vsel %vm3084, 1, 0
    %v3117 = vsel %vm3085, 1, 0
    %v3118 = vsel %vm3086, 1, 0
    %v3119 = vsel %vm3087, 1, 0
    %v3120 = vsel %vm3088, 1, 0
    %v3121 = vsel %vm3089, 1, 0
    %v3122 = vsel %vm3090, 1, 0
    %v3123 = vsel %vm3091, 1, 0
    %v3124 = vsel %vm3092, 1, 0
    %v3125 = vsel %vm3093, 1, 0
    %v3126 = vsel %vm3094, 1, 0
    %v3127 = vsel %vm3095, 1, 0
    %v3128 = vsel %vm3096, 1, 0
    %v3129 = vsel %vm3097, 1, 0
    %v3130 = vsel %vm3098, 1, 0
    %v3131 = vsel %vm3099, 1, 0
    %v3132 = vsel %vm3100, 1, 0
    %v3133 = vsel %vm3101, 1, 0
    %3134 = vset.pattern.permute.xlu0 0
    %3135 = vperm.xlu0 %3134, %v3102
    %v3136 = vpop.permute.xlu0 %3135
    %3137 = vset.pattern.permute.xlu0 0
    %3138 = vperm.xlu0 %3137, %v3103
    %v3139 = vpop.permute.xlu0 %3138
    %3140 = vset.pattern.permute.xlu0 0
    %3141 = vperm.xlu0 %3140, %v3104
    %v3142 = vpop.permute.xlu0 %3141
    %3143 = vset.pattern.permute.xlu0 0
    %3144 = vperm.xlu0 %3143, %v3105
    %v3145 = vpop.permute.xlu0 %3144
    %3146 = vset.pattern.permute.xlu0 0
    %3147 = vperm.xlu0 %3146, %v3106
    %v3148 = vpop.permute.xlu0 %3147
    %3149 = vset.pattern.permute.xlu0 0
    %3150 = vperm.xlu0 %3149, %v3107
    %v3151 = vpop.permute.xlu0 %3150
    %3152 = vset.pattern.permute.xlu0 0
    %3153 = vperm.xlu0 %3152, %v3108
    %v3154 = vpop.permute.xlu0 %3153
    %3155 = vset.pattern.permute.xlu0 0
    %3156 = vperm.xlu0 %3155, %v3109
    %v3157 = vpop.permute.xlu0 %3156
    %3158 = vset.pattern.permute.xlu0 0
    %3159 = vperm.xlu0 %3158, %v3110
    %v3160 = vpop.permute.xlu0 %3159
    %3161 = vset.pattern.permute.xlu0 0
    %3162 = vperm.xlu0 %3161, %v3111
    %v3163 = vpop.permute.xlu0 %3162
    %3164 = vset.pattern.permute.xlu0 0
    %3165 = vperm.xlu0 %3164, %v3112
    %v3166 = vpop.permute.xlu0 %3165
    %3167 = vset.pattern.permute.xlu0 0
    %3168 = vperm.xlu0 %3167, %v3113
    %v3169 = vpop.permute.xlu0 %3168
    %3170 = vset.pattern.permute.xlu0 0
    %3171 = vperm.xlu0 %3170, %v3114
    %v3172 = vpop.permute.xlu0 %3171
    %3173 = vset.pattern.permute.xlu0 0
    %3174 = vperm.xlu0 %3173, %v3115
    %v3175 = vpop.permute.xlu0 %3174
    %3176 = vset.pattern.permute.xlu0 0
    %3177 = vperm.xlu0 %3176, %v3116
    %v3178 = vpop.permute.xlu0 %3177
    %3179 = vset.pattern.permute.xlu0 0
    %3180 = vperm.xlu0 %3179, %v3117
    %v3181 = vpop.permute.xlu0 %3180
    %3182 = vset.pattern.permute.xlu0 0
    %3183 = vperm.xlu0 %3182, %v3118
    %v3184 = vpop.permute.xlu0 %3183
    %3185 = vset.pattern.permute.xlu0 0
    %3186 = vperm.xlu0 %3185, %v3119
    %v3187 = vpop.permute.xlu0 %3186
    %3188 = vset.pattern.permute.xlu0 0
    %3189 = vperm.xlu0 %3188, %v3120
    %v3190 = vpop.permute.xlu0 %3189
    %3191 = vset.pattern.permute.xlu0 0
    %3192 = vperm.xlu0 %3191, %v3121
    %v3193 = vpop.permute.xlu0 %3192
    %3194 = vset.pattern.permute.xlu0 0
    %3195 = vperm.xlu0 %3194, %v3122
    %v3196 = vpop.permute.xlu0 %3195
    %3197 = vset.pattern.permute.xlu0 0
    %3198 = vperm.xlu0 %3197, %v3123
    %v3199 = vpop.permute.xlu0 %3198
    %3200 = vset.pattern.permute.xlu0 0
    %3201 = vperm.xlu0 %3200, %v3124
    %v3202 = vpop.permute.xlu0 %3201
    %3203 = vset.pattern.permute.xlu0 0
    %3204 = vperm.xlu0 %3203, %v3125
    %v3205 = vpop.permute.xlu0 %3204
    %3206 = vset.pattern.permute.xlu0 0
    %3207 = vperm.xlu0 %3206, %v3126
    %v3208 = vpop.permute.xlu0 %3207
    %3209 = vset.pattern.permute.xlu0 0
    %3210 = vperm.xlu0 %3209, %v3127
    %v3211 = vpop.permute.xlu0 %3210
    %3212 = vset.pattern.permute.xlu0 0
    %3213 = vperm.xlu0 %3212, %v3128
    %v3214 = vpop.permute.xlu0 %3213
    %3215 = vset.pattern.permute.xlu0 0
    %3216 = vperm.xlu0 %3215, %v3129
    %v3217 = vpop.permute.xlu0 %3216
    %3218 = vset.pattern.permute.xlu0 0
    %3219 = vperm.xlu0 %3218, %v3130
    %v3220 = vpop.permute.xlu0 %3219
    %3221 = vset.pattern.permute.xlu0 0
    %3222 = vperm.xlu0 %3221, %v3131
    %v3223 = vpop.permute.xlu0 %3222
    %3224 = vset.pattern.permute.xlu0 0
    %3225 = vperm.xlu0 %3224, %v3132
    %v3226 = vpop.permute.xlu0 %3225
    %3227 = vset.pattern.permute.xlu0 0
    %3228 = vperm.xlu0 %3227, %v3133
    %v3229 = vpop.permute.xlu0 %3228
    %vm3230 = vcmp.eq.s32.totalorder %v3136, 1
    %vm3231 = vcmp.eq.s32.totalorder %v3139, 1
    %vm3232 = vcmp.eq.s32.totalorder %v3142, 1
    %vm3233 = vcmp.eq.s32.totalorder %v3145, 1
    %vm3234 = vcmp.eq.s32.totalorder %v3148, 1
    %vm3235 = vcmp.eq.s32.totalorder %v3151, 1
    %vm3236 = vcmp.eq.s32.totalorder %v3154, 1
    %vm3237 = vcmp.eq.s32.totalorder %v3157, 1
    %vm3238 = vcmp.eq.s32.totalorder %v3160, 1
    %vm3239 = vcmp.eq.s32.totalorder %v3163, 1
    %vm3240 = vcmp.eq.s32.totalorder %v3166, 1
    %vm3241 = vcmp.eq.s32.totalorder %v3169, 1
    %vm3242 = vcmp.eq.s32.totalorder %v3172, 1
    %vm3243 = vcmp.eq.s32.totalorder %v3175, 1
    %vm3244 = vcmp.eq.s32.totalorder %v3178, 1
    %vm3245 = vcmp.eq.s32.totalorder %v3181, 1
    %vm3246 = vcmp.eq.s32.totalorder %v3184, 1
    %vm3247 = vcmp.eq.s32.totalorder %v3187, 1
    %vm3248 = vcmp.eq.s32.totalorder %v3190, 1
    %vm3249 = vcmp.eq.s32.totalorder %v3193, 1
    %vm3250 = vcmp.eq.s32.totalorder %v3196, 1
    %vm3251 = vcmp.eq.s32.totalorder %v3199, 1
    %vm3252 = vcmp.eq.s32.totalorder %v3202, 1
    %vm3253 = vcmp.eq.s32.totalorder %v3205, 1
    %vm3254 = vcmp.eq.s32.totalorder %v3208, 1
    %vm3255 = vcmp.eq.s32.totalorder %v3211, 1
    %vm3256 = vcmp.eq.s32.totalorder %v3214, 1
    %vm3257 = vcmp.eq.s32.totalorder %v3217, 1
    %vm3258 = vcmp.eq.s32.totalorder %v3220, 1
    %vm3259 = vcmp.eq.s32.totalorder %v3223, 1
    %vm3260 = vcmp.eq.s32.totalorder %v3226, 1
    %vm3261 = vcmp.eq.s32.totalorder %v3229, 1
    %v3262 = vlaneseq
    %v3263 = vshrl.u32 %v3262, 7
    %v3264 = vsub.s32 2, %v3263
    %v3265 = vrot.slane %v2434, %v3264
    %v3266 = vsel %vm3230, %v3265, %v3038
    %v3267 = vsel %vm3231, %v3265, %v3039
    %v3268 = vsel %vm3232, %v3265, %v3040
    %v3269 = vsel %vm3233, %v3265, %v3041
    %v3270 = vsel %vm3234, %v3265, %v3042
    %v3271 = vsel %vm3235, %v3265, %v3043
    %v3272 = vsel %vm3236, %v3265, %v3044
    %v3273 = vsel %vm3237, %v3265, %v3045
    %v3274 = vsel %vm3238, %v3265, %v3046
    %v3275 = vsel %vm3239, %v3265, %v3047
    %v3276 = vsel %vm3240, %v3265, %v3048
    %v3277 = vsel %vm3241, %v3265, %v3049
    %v3278 = vsel %vm3242, %v3265, %v3050
    %v3279 = vsel %vm3243, %v3265, %v3051
    %v3280 = vsel %vm3244, %v3265, %v3052
    %v3281 = vsel %vm3245, %v3265, %v3053
    %v3282 = vsel %vm3246, %v3265, %v3054
    %v3283 = vsel %vm3247, %v3265, %v3055
    %v3284 = vsel %vm3248, %v3265, %v3056
    %v3285 = vsel %vm3249, %v3265, %v3057
    %v3286 = vsel %vm3250, %v3265, %v3058
    %v3287 = vsel %vm3251, %v3265, %v3059
    %v3288 = vsel %vm3252, %v3265, %v3060
    %v3289 = vsel %vm3253, %v3265, %v3061
    %v3290 = vsel %vm3254, %v3265, %v3062
    %v3291 = vsel %vm3255, %v3265, %v3063
    %v3292 = vsel %vm3256, %v3265, %v3064
    %v3293 = vsel %vm3257, %v3265, %v3065
    %v3294 = vsel %vm3258, %v3265, %v3066
    %v3295 = vsel %vm3259, %v3265, %v3067
    %v3296 = vsel %vm3260, %v3265, %v3068
    %v3297 = vsel %vm3261, %v3265, %v3069
    %vm3298 = vcmp.eq.s32.totalorder %v2582, 3
    %vm3299 = vcmp.eq.s32.totalorder %v2583, 3
    %vm3300 = vcmp.eq.s32.totalorder %v2584, 3
    %vm3301 = vcmp.eq.s32.totalorder %v2585, 3
    %vm3302 = vcmp.eq.s32.totalorder %v2586, 3
    %vm3303 = vcmp.eq.s32.totalorder %v2587, 3
    %vm3304 = vcmp.eq.s32.totalorder %v2588, 3
    %vm3305 = vcmp.eq.s32.totalorder %v2589, 3
    %vm3306 = vcmp.eq.s32.totalorder %v2590, 3
    %vm3307 = vcmp.eq.s32.totalorder %v2591, 3
    %vm3308 = vcmp.eq.s32.totalorder %v2592, 3
    %vm3309 = vcmp.eq.s32.totalorder %v2593, 3
    %vm3310 = vcmp.eq.s32.totalorder %v2594, 3
    %vm3311 = vcmp.eq.s32.totalorder %v2595, 3
    %vm3312 = vcmp.eq.s32.totalorder %v2596, 3
    %vm3313 = vcmp.eq.s32.totalorder %v2597, 3
    %vm3314 = vcmp.eq.s32.totalorder %v2598, 3
    %vm3315 = vcmp.eq.s32.totalorder %v2599, 3
    %vm3316 = vcmp.eq.s32.totalorder %v2600, 3
    %vm3317 = vcmp.eq.s32.totalorder %v2601, 3
    %vm3318 = vcmp.eq.s32.totalorder %v2602, 3
    %vm3319 = vcmp.eq.s32.totalorder %v2603, 3
    %vm3320 = vcmp.eq.s32.totalorder %v2604, 3
    %vm3321 = vcmp.eq.s32.totalorder %v2605, 3
    %vm3322 = vcmp.eq.s32.totalorder %v2606, 3
    %vm3323 = vcmp.eq.s32.totalorder %v2607, 3
    %vm3324 = vcmp.eq.s32.totalorder %v2608, 3
    %vm3325 = vcmp.eq.s32.totalorder %v2609, 3
    %vm3326 = vcmp.eq.s32.totalorder %v2610, 3
    %vm3327 = vcmp.eq.s32.totalorder %v2611, 3
    %vm3328 = vcmp.eq.s32.totalorder %v2612, 3
    %vm3329 = vcmp.eq.s32.totalorder %v2613, 3
    %v3330 = vsel %vm3298, 1, 0
    %v3331 = vsel %vm3299, 1, 0
    %v3332 = vsel %vm3300, 1, 0
    %v3333 = vsel %vm3301, 1, 0
    %v3334 = vsel %vm3302, 1, 0
    %v3335 = vsel %vm3303, 1, 0
    %v3336 = vsel %vm3304, 1, 0
    %v3337 = vsel %vm3305, 1, 0
    %v3338 = vsel %vm3306, 1, 0
    %v3339 = vsel %vm3307, 1, 0
    %v3340 = vsel %vm3308, 1, 0
    %v3341 = vsel %vm3309, 1, 0
    %v3342 = vsel %vm3310, 1, 0
    %v3343 = vsel %vm3311, 1, 0
    %v3344 = vsel %vm3312, 1, 0
    %v3345 = vsel %vm3313, 1, 0
    %v3346 = vsel %vm3314, 1, 0
    %v3347 = vsel %vm3315, 1, 0
    %v3348 = vsel %vm3316, 1, 0
    %v3349 = vsel %vm3317, 1, 0
    %v3350 = vsel %vm3318, 1, 0
    %v3351 = vsel %vm3319, 1, 0
    %v3352 = vsel %vm3320, 1, 0
    %v3353 = vsel %vm3321, 1, 0
    %v3354 = vsel %vm3322, 1, 0
    %v3355 = vsel %vm3323, 1, 0
    %v3356 = vsel %vm3324, 1, 0
    %v3357 = vsel %vm3325, 1, 0
    %v3358 = vsel %vm3326, 1, 0
    %v3359 = vsel %vm3327, 1, 0
    %v3360 = vsel %vm3328, 1, 0
    %v3361 = vsel %vm3329, 1, 0
    %3362 = vset.pattern.permute.xlu0 0
    %3363 = vperm.xlu0 %3362, %v3330
    %v3364 = vpop.permute.xlu0 %3363
    %3365 = vset.pattern.permute.xlu0 0
    %3366 = vperm.xlu0 %3365, %v3331
    %v3367 = vpop.permute.xlu0 %3366
    %3368 = vset.pattern.permute.xlu0 0
    %3369 = vperm.xlu0 %3368, %v3332
    %v3370 = vpop.permute.xlu0 %3369
    %3371 = vset.pattern.permute.xlu0 0
    %3372 = vperm.xlu0 %3371, %v3333
    %v3373 = vpop.permute.xlu0 %3372
    %3374 = vset.pattern.permute.xlu0 0
    %3375 = vperm.xlu0 %3374, %v3334
    %v3376 = vpop.permute.xlu0 %3375
    %3377 = vset.pattern.permute.xlu0 0
    %3378 = vperm.xlu0 %3377, %v3335
    %v3379 = vpop.permute.xlu0 %3378
    %3380 = vset.pattern.permute.xlu0 0
    %3381 = vperm.xlu0 %3380, %v3336
    %v3382 = vpop.permute.xlu0 %3381
    %3383 = vset.pattern.permute.xlu0 0
    %3384 = vperm.xlu0 %3383, %v3337
    %v3385 = vpop.permute.xlu0 %3384
    %3386 = vset.pattern.permute.xlu0 0
    %3387 = vperm.xlu0 %3386, %v3338
    %v3388 = vpop.permute.xlu0 %3387
    %3389 = vset.pattern.permute.xlu0 0
    %3390 = vperm.xlu0 %3389, %v3339
    %v3391 = vpop.permute.xlu0 %3390
    %3392 = vset.pattern.permute.xlu0 0
    %3393 = vperm.xlu0 %3392, %v3340
    %v3394 = vpop.permute.xlu0 %3393
    %3395 = vset.pattern.permute.xlu0 0
    %3396 = vperm.xlu0 %3395, %v3341
    %v3397 = vpop.permute.xlu0 %3396
    %3398 = vset.pattern.permute.xlu0 0
    %3399 = vperm.xlu0 %3398, %v3342
    %v3400 = vpop.permute.xlu0 %3399
    %3401 = vset.pattern.permute.xlu0 0
    %3402 = vperm.xlu0 %3401, %v3343
    %v3403 = vpop.permute.xlu0 %3402
    %3404 = vset.pattern.permute.xlu0 0
    %3405 = vperm.xlu0 %3404, %v3344
    %v3406 = vpop.permute.xlu0 %3405
    %3407 = vset.pattern.permute.xlu0 0
    %3408 = vperm.xlu0 %3407, %v3345
    %v3409 = vpop.permute.xlu0 %3408
    %3410 = vset.pattern.permute.xlu0 0
    %3411 = vperm.xlu0 %3410, %v3346
    %v3412 = vpop.permute.xlu0 %3411
    %3413 = vset.pattern.permute.xlu0 0
    %3414 = vperm.xlu0 %3413, %v3347
    %v3415 = vpop.permute.xlu0 %3414
    %3416 = vset.pattern.permute.xlu0 0
    %3417 = vperm.xlu0 %3416, %v3348
    %v3418 = vpop.permute.xlu0 %3417
    %3419 = vset.pattern.permute.xlu0 0
    %3420 = vperm.xlu0 %3419, %v3349
    %v3421 = vpop.permute.xlu0 %3420
    %3422 = vset.pattern.permute.xlu0 0
    %3423 = vperm.xlu0 %3422, %v3350
    %v3424 = vpop.permute.xlu0 %3423
    %3425 = vset.pattern.permute.xlu0 0
    %3426 = vperm.xlu0 %3425, %v3351
    %v3427 = vpop.permute.xlu0 %3426
    %3428 = vset.pattern.permute.xlu0 0
    %3429 = vperm.xlu0 %3428, %v3352
    %v3430 = vpop.permute.xlu0 %3429
    %3431 = vset.pattern.permute.xlu0 0
    %3432 = vperm.xlu0 %3431, %v3353
    %v3433 = vpop.permute.xlu0 %3432
    %3434 = vset.pattern.permute.xlu0 0
    %3435 = vperm.xlu0 %3434, %v3354
    %v3436 = vpop.permute.xlu0 %3435
    %3437 = vset.pattern.permute.xlu0 0
    %3438 = vperm.xlu0 %3437, %v3355
    %v3439 = vpop.permute.xlu0 %3438
    %3440 = vset.pattern.permute.xlu0 0
    %3441 = vperm.xlu0 %3440, %v3356
    %v3442 = vpop.permute.xlu0 %3441
    %3443 = vset.pattern.permute.xlu0 0
    %3444 = vperm.xlu0 %3443, %v3357
    %v3445 = vpop.permute.xlu0 %3444
    %3446 = vset.pattern.permute.xlu0 0
    %3447 = vperm.xlu0 %3446, %v3358
    %v3448 = vpop.permute.xlu0 %3447
    %3449 = vset.pattern.permute.xlu0 0
    %3450 = vperm.xlu0 %3449, %v3359
    %v3451 = vpop.permute.xlu0 %3450
    %3452 = vset.pattern.permute.xlu0 0
    %3453 = vperm.xlu0 %3452, %v3360
    %v3454 = vpop.permute.xlu0 %3453
    %3455 = vset.pattern.permute.xlu0 0
    %3456 = vperm.xlu0 %3455, %v3361
    %v3457 = vpop.permute.xlu0 %3456
    %vm3458 = vcmp.eq.s32.totalorder %v3364, 1
    %vm3459 = vcmp.eq.s32.totalorder %v3367, 1
    %vm3460 = vcmp.eq.s32.totalorder %v3370, 1
    %vm3461 = vcmp.eq.s32.totalorder %v3373, 1
    %vm3462 = vcmp.eq.s32.totalorder %v3376, 1
    %vm3463 = vcmp.eq.s32.totalorder %v3379, 1
    %vm3464 = vcmp.eq.s32.totalorder %v3382, 1
    %vm3465 = vcmp.eq.s32.totalorder %v3385, 1
    %vm3466 = vcmp.eq.s32.totalorder %v3388, 1
    %vm3467 = vcmp.eq.s32.totalorder %v3391, 1
    %vm3468 = vcmp.eq.s32.totalorder %v3394, 1
    %vm3469 = vcmp.eq.s32.totalorder %v3397, 1
    %vm3470 = vcmp.eq.s32.totalorder %v3400, 1
    %vm3471 = vcmp.eq.s32.totalorder %v3403, 1
    %vm3472 = vcmp.eq.s32.totalorder %v3406, 1
    %vm3473 = vcmp.eq.s32.totalorder %v3409, 1
    %vm3474 = vcmp.eq.s32.totalorder %v3412, 1
    %vm3475 = vcmp.eq.s32.totalorder %v3415, 1
    %vm3476 = vcmp.eq.s32.totalorder %v3418, 1
    %vm3477 = vcmp.eq.s32.totalorder %v3421, 1
    %vm3478 = vcmp.eq.s32.totalorder %v3424, 1
    %vm3479 = vcmp.eq.s32.totalorder %v3427, 1
    %vm3480 = vcmp.eq.s32.totalorder %v3430, 1
    %vm3481 = vcmp.eq.s32.totalorder %v3433, 1
    %vm3482 = vcmp.eq.s32.totalorder %v3436, 1
    %vm3483 = vcmp.eq.s32.totalorder %v3439, 1
    %vm3484 = vcmp.eq.s32.totalorder %v3442, 1
    %vm3485 = vcmp.eq.s32.totalorder %v3445, 1
    %vm3486 = vcmp.eq.s32.totalorder %v3448, 1
    %vm3487 = vcmp.eq.s32.totalorder %v3451, 1
    %vm3488 = vcmp.eq.s32.totalorder %v3454, 1
    %vm3489 = vcmp.eq.s32.totalorder %v3457, 1
    %v3490 = vlaneseq
    %v3491 = vshrl.u32 %v3490, 7
    %v3492 = vsub.s32 3, %v3491
    %v3493 = vrot.slane %v2434, %v3492
    %v3494 = vsel %vm3458, %v3493, %v3266
    %v3495 = vsel %vm3459, %v3493, %v3267
    %v3496 = vsel %vm3460, %v3493, %v3268
    %v3497 = vsel %vm3461, %v3493, %v3269
    %v3498 = vsel %vm3462, %v3493, %v3270
    %v3499 = vsel %vm3463, %v3493, %v3271
    %v3500 = vsel %vm3464, %v3493, %v3272
    %v3501 = vsel %vm3465, %v3493, %v3273
    %v3502 = vsel %vm3466, %v3493, %v3274
    %v3503 = vsel %vm3467, %v3493, %v3275
    %v3504 = vsel %vm3468, %v3493, %v3276
    %v3505 = vsel %vm3469, %v3493, %v3277
    %v3506 = vsel %vm3470, %v3493, %v3278
    %v3507 = vsel %vm3471, %v3493, %v3279
    %v3508 = vsel %vm3472, %v3493, %v3280
    %v3509 = vsel %vm3473, %v3493, %v3281
    %v3510 = vsel %vm3474, %v3493, %v3282
    %v3511 = vsel %vm3475, %v3493, %v3283
    %v3512 = vsel %vm3476, %v3493, %v3284
    %v3513 = vsel %vm3477, %v3493, %v3285
    %v3514 = vsel %vm3478, %v3493, %v3286
    %v3515 = vsel %vm3479, %v3493, %v3287
    %v3516 = vsel %vm3480, %v3493, %v3288
    %v3517 = vsel %vm3481, %v3493, %v3289
    %v3518 = vsel %vm3482, %v3493, %v3290
    %v3519 = vsel %vm3483, %v3493, %v3291
    %v3520 = vsel %vm3484, %v3493, %v3292
    %v3521 = vsel %vm3485, %v3493, %v3293
    %v3522 = vsel %vm3486, %v3493, %v3294
    %v3523 = vsel %vm3487, %v3493, %v3295
    %v3524 = vsel %vm3488, %v3493, %v3296
    %v3525 = vsel %vm3489, %v3493, %v3297
    %v3526 = vld [vmem:[%s14] sm:$0xf]
    %v3527 = vld [vmem:[%s14 + $0x4] sm:$0xf]
    %v3528 = vld [vmem:[%s14 + $0x8] sm:$0xf]
    %v3529 = vld [vmem:[%s14 + $0xc] sm:$0xf]
    %v3530 = vld [vmem:[%s14 + $0x10] sm:$0xf]
    %v3531 = vld [vmem:[%s14 + $0x14] sm:$0xf]
    %v3532 = vld [vmem:[%s14 + $0x18] sm:$0xf]
    %v3533 = vld [vmem:[%s14 + $0x1c] sm:$0xf]
    %v3534 = vld [vmem:[%s14 + $0x20] sm:$0xf]
    %v3535 = vld [vmem:[%s14 + $0x24] sm:$0xf]
    %v3536 = vld [vmem:[%s14 + $0x28] sm:$0xf]
    %v3537 = vld [vmem:[%s14 + $0x2c] sm:$0xf]
    %v3538 = vld [vmem:[%s14 + $0x30] sm:$0xf]
    %v3539 = vld [vmem:[%s14 + $0x34] sm:$0xf]
    %v3540 = vld [vmem:[%s14 + $0x38] sm:$0xf]
    %v3541 = vld [vmem:[%s14 + $0x3c] sm:$0xf]
    %v3542 = vpack.c.bf16 %v3495, %v3494
    %v3543 = vpack.c.bf16 %v3497, %v3496
    %v3544 = vpack.c.bf16 %v3499, %v3498
    %v3545 = vpack.c.bf16 %v3501, %v3500
    %v3546 = vpack.c.bf16 %v3503, %v3502
    %v3547 = vpack.c.bf16 %v3505, %v3504
    %v3548 = vpack.c.bf16 %v3507, %v3506
    %v3549 = vpack.c.bf16 %v3509, %v3508
    %v3550 = vpack.c.bf16 %v3511, %v3510
    %v3551 = vpack.c.bf16 %v3513, %v3512
    %v3552 = vpack.c.bf16 %v3515, %v3514
    %v3553 = vpack.c.bf16 %v3517, %v3516
    %v3554 = vpack.c.bf16 %v3519, %v3518
    %v3555 = vpack.c.bf16 %v3521, %v3520
    %v3556 = vpack.c.bf16 %v3523, %v3522
    %v3557 = vpack.c.bf16 %v3525, %v3524
    %v3558 = vld [vmem:[%s15] sm:$0xf]
    %v3559 = vld [vmem:[%s15 + $0x4] sm:$0xf]
    %v3560 = vld [vmem:[%s15 + $0x8] sm:$0xf]
    %v3561 = vld [vmem:[%s15 + $0xc] sm:$0xf]
    %v3562 = vld [vmem:[%s15 + $0x10] sm:$0xf]
    %v3563 = vld [vmem:[%s15 + $0x14] sm:$0xf]
    %v3564 = vld [vmem:[%s15 + $0x18] sm:$0xf]
    %v3565 = vld [vmem:[%s15 + $0x1c] sm:$0xf]
    %v3566 = vld [vmem:[%s15 + $0x20] sm:$0xf]
    %v3567 = vld [vmem:[%s15 + $0x24] sm:$0xf]
    %v3568 = vld [vmem:[%s15 + $0x28] sm:$0xf]
    %v3569 = vld [vmem:[%s15 + $0x2c] sm:$0xf]
    %v3570 = vld [vmem:[%s15 + $0x30] sm:$0xf]
    %v3571 = vld [vmem:[%s15 + $0x34] sm:$0xf]
    %v3572 = vld [vmem:[%s15 + $0x38] sm:$0xf]
    %v3573 = vld [vmem:[%s15 + $0x3c] sm:$0xf]
    %v3590 = vunpack.c.l.b16 %v3558
    %v3591 = vunpack.c.l.b16 %v3559
    %v3592 = vunpack.c.l.b16 %v3560
    %v3593 = vunpack.c.l.b16 %v3561
    %v3594 = vunpack.c.l.b16 %v3562
    %v3595 = vunpack.c.l.b16 %v3563
    %v3596 = vunpack.c.l.b16 %v3564
    %v3597 = vunpack.c.l.b16 %v3565
    %v3598 = vunpack.c.l.b16 %v3566
    %v3599 = vunpack.c.l.b16 %v3567
    %v3600 = vunpack.c.l.b16 %v3568
    %v3601 = vunpack.c.l.b16 %v3569
    %v3602 = vunpack.c.l.b16 %v3570
    %v3603 = vunpack.c.l.b16 %v3571
    %v3604 = vunpack.c.l.b16 %v3572
    %v3605 = vunpack.c.l.b16 %v3573
    %v3606 = vpack.c.b16 %v3591, %v3590
    %v3607 = vpack.c.b16 %v3593, %v3592
    %v3608 = vpack.c.b16 %v3595, %v3594
    %v3609 = vpack.c.b16 %v3597, %v3596
    %v3610 = vpack.c.b16 %v3599, %v3598
    %v3611 = vpack.c.b16 %v3601, %v3600
    %v3612 = vpack.c.b16 %v3603, %v3602
    %v3613 = vpack.c.b16 %v3605, %v3604
    %3622 = vmatprep.subr.bf16.mxu0 0
    %3623 = vmatpush1.bf16.msra.mxu0 %v3613
    %3624 = vmatprep.subr.bf16.mxu0 0
    %3625 = vmatpush1.bf16.msra.mxu0 %v3612
    %3626 = vmatprep.subr.bf16.mxu0 0
    %3627 = vmatpush1.bf16.msra.mxu0 %v3611
    %3628 = vmatprep.subr.bf16.mxu0 0
    %3629 = vmatpush1.bf16.msra.mxu0 %v3610
    %3630 = vmatprep.subr.bf16.mxu0 0
    %3631 = vmatpush1.bf16.msra.mxu0 %v3609
    %3632 = vmatprep.subr.bf16.mxu0 0
    %3633 = vmatpush1.bf16.msra.mxu0 %v3608
    %3634 = vmatprep.subr.bf16.mxu0 0
    %3635 = vmatpush1.bf16.msra.mxu0 %v3607
    %3636 = vmatprep.subr.bf16.mxu0 0
    %3637 = vmatpush1.bf16.msra.mxu0 %v3606
    %3638 = vmatprep.subr.bf16.mxu0 0
    %3639 = vmatpush2.bf16.msra.mxu0 0
    %3640 = vmatprep.subr.bf16.mxu0 0
    %3641 = vmatpush2.bf16.msra.mxu0 0
    %3642 = vmatprep.subr.bf16.mxu0 0
    %3643 = vmatpush2.bf16.msra.mxu0 0
    %3644 = vmatprep.subr.bf16.mxu0 0
    %3645 = vmatpush2.bf16.msra.mxu0 0
    %3646 = vmatprep.subr.bf16.mxu0 0
    %3647 = vmatpush2.bf16.msra.mxu0 0
    %3648 = vmatprep.subr.bf16.mxu0 0
    %3649 = vmatpush2.bf16.msra.mxu0 0
    %3650 = vmatprep.subr.bf16.mxu0 0
    %3651 = vmatpush2.bf16.msra.mxu0 0
    %3652 = vmatprep.subr.bf16.mxu0 0
    %3653 = vmatpush2.bf16.msra.mxu0 0
    %3654 = vmatprep.mubr.bf16.mxu0 0
    %3655 = vmatmul.mubr.bf16.gmra.mxu0 %v3542
    %v3656 = vpop.f32.mrf.mxu0
    %v3657 = vadd.f32 0.0, %v3656
    %v3658 = vpop.f32.mrf.mxu0
    %v3659 = vpop.f32.mrf.mxu0
    %v3660 = vadd.f32 0.0, %v3659
    %v3661 = vpop.f32.mrf.mxu0
    %3662 = vmatprep.mubr.bf16.mxu0 0
    %3663 = vmatmul.mubr.bf16.gmra.mxu0 %v3543
    %v3664 = vpop.f32.mrf.mxu0
    %v3665 = vadd.f32 0.0, %v3664
    %v3666 = vpop.f32.mrf.mxu0
    %v3667 = vpop.f32.mrf.mxu0
    %v3668 = vadd.f32 0.0, %v3667
    %v3669 = vpop.f32.mrf.mxu0
    %3670 = vmatprep.mubr.bf16.mxu0 0
    %3671 = vmatmul.mubr.bf16.gmra.mxu0 %v3544
    %v3672 = vpop.f32.mrf.mxu0
    %v3673 = vadd.f32 0.0, %v3672
    %v3674 = vpop.f32.mrf.mxu0
    %v3675 = vpop.f32.mrf.mxu0
    %v3676 = vadd.f32 0.0, %v3675
    %v3677 = vpop.f32.mrf.mxu0
    %3678 = vmatprep.mubr.bf16.mxu0 0
    %3679 = vmatmul.mubr.bf16.gmra.mxu0 %v3545
    %v3680 = vpop.f32.mrf.mxu0
    %v3681 = vadd.f32 0.0, %v3680
    %v3682 = vpop.f32.mrf.mxu0
    %v3683 = vpop.f32.mrf.mxu0
    %v3684 = vadd.f32 0.0, %v3683
    %v3685 = vpop.f32.mrf.mxu0
    %3686 = vmatprep.mubr.bf16.mxu0 0
    %3687 = vmatmul.mubr.bf16.gmra.mxu0 %v3546
    %v3688 = vpop.f32.mrf.mxu0
    %v3689 = vadd.f32 0.0, %v3688
    %v3690 = vpop.f32.mrf.mxu0
    %v3691 = vpop.f32.mrf.mxu0
    %v3692 = vadd.f32 0.0, %v3691
    %v3693 = vpop.f32.mrf.mxu0
    %3694 = vmatprep.mubr.bf16.mxu0 0
    %3695 = vmatmul.mubr.bf16.gmra.mxu0 %v3547
    %v3696 = vpop.f32.mrf.mxu0
    %v3697 = vadd.f32 0.0, %v3696
    %v3698 = vpop.f32.mrf.mxu0
    %v3699 = vpop.f32.mrf.mxu0
    %v3700 = vadd.f32 0.0, %v3699
    %v3701 = vpop.f32.mrf.mxu0
    %3702 = vmatprep.mubr.bf16.mxu0 0
    %3703 = vmatmul.mubr.bf16.gmra.mxu0 %v3548
    %v3704 = vpop.f32.mrf.mxu0
    %v3705 = vadd.f32 0.0, %v3704
    %v3706 = vpop.f32.mrf.mxu0
    %v3707 = vpop.f32.mrf.mxu0
    %v3708 = vadd.f32 0.0, %v3707
    %v3709 = vpop.f32.mrf.mxu0
    %3710 = vmatprep.mubr.bf16.mxu0 0
    %3711 = vmatmul.mubr.bf16.gmra.mxu0 %v3549
    %v3712 = vpop.f32.mrf.mxu0
    %v3713 = vadd.f32 0.0, %v3712
    %v3714 = vpop.f32.mrf.mxu0
    %v3715 = vpop.f32.mrf.mxu0
    %v3716 = vadd.f32 0.0, %v3715
    %v3717 = vpop.f32.mrf.mxu0
    %3718 = vmatprep.mubr.bf16.mxu0 0
    %3719 = vmatmul.mubr.bf16.gmra.mxu0 %v3550
    %v3720 = vpop.f32.mrf.mxu0
    %v3721 = vadd.f32 0.0, %v3720
    %v3722 = vpop.f32.mrf.mxu0
    %v3723 = vpop.f32.mrf.mxu0
    %v3724 = vadd.f32 0.0, %v3723
    %v3725 = vpop.f32.mrf.mxu0
    %3726 = vmatprep.mubr.bf16.mxu0 0
    %3727 = vmatmul.mubr.bf16.gmra.mxu0 %v3551
    %v3728 = vpop.f32.mrf.mxu0
    %v3729 = vadd.f32 0.0, %v3728
    %v3730 = vpop.f32.mrf.mxu0
    %v3731 = vpop.f32.mrf.mxu0
    %v3732 = vadd.f32 0.0, %v3731
    %v3733 = vpop.f32.mrf.mxu0
    %3734 = vmatprep.mubr.bf16.mxu0 0
    %3735 = vmatmul.mubr.bf16.gmra.mxu0 %v3552
    %v3736 = vpop.f32.mrf.mxu0
    %v3737 = vadd.f32 0.0, %v3736
    %v3738 = vpop.f32.mrf.mxu0
    %v3739 = vpop.f32.mrf.mxu0
    %v3740 = vadd.f32 0.0, %v3739
    %v3741 = vpop.f32.mrf.mxu0
    %3742 = vmatprep.mubr.bf16.mxu0 0
    %3743 = vmatmul.mubr.bf16.gmra.mxu0 %v3553
    %v3744 = vpop.f32.mrf.mxu0
    %v3745 = vadd.f32 0.0, %v3744
    %v3746 = vpop.f32.mrf.mxu0
    %v3747 = vpop.f32.mrf.mxu0
    %v3748 = vadd.f32 0.0, %v3747
    %v3749 = vpop.f32.mrf.mxu0
    %3750 = vmatprep.mubr.bf16.mxu0 0
    %3751 = vmatmul.mubr.bf16.gmra.mxu0 %v3554
    %v3752 = vpop.f32.mrf.mxu0
    %v3753 = vadd.f32 0.0, %v3752
    %v3754 = vpop.f32.mrf.mxu0
    %v3755 = vpop.f32.mrf.mxu0
    %v3756 = vadd.f32 0.0, %v3755
    %v3757 = vpop.f32.mrf.mxu0
    %3758 = vmatprep.mubr.bf16.mxu0 0
    %3759 = vmatmul.mubr.bf16.gmra.mxu0 %v3555
    %v3760 = vpop.f32.mrf.mxu0
    %v3761 = vadd.f32 0.0, %v3760
    %v3762 = vpop.f32.mrf.mxu0
    %v3763 = vpop.f32.mrf.mxu0
    %v3764 = vadd.f32 0.0, %v3763
    %v3765 = vpop.f32.mrf.mxu0
    %3766 = vmatprep.mubr.bf16.mxu0 0
    %3767 = vmatmul.mubr.bf16.gmra.mxu0 %v3556
    %v3768 = vpop.f32.mrf.mxu0
    %v3769 = vadd.f32 0.0, %v3768
    %v3770 = vpop.f32.mrf.mxu0
    %v3771 = vpop.f32.mrf.mxu0
    %v3772 = vadd.f32 0.0, %v3771
    %v3773 = vpop.f32.mrf.mxu0
    %3774 = vmatprep.mubr.bf16.mxu0 0
    %3775 = vmatmul.mubr.bf16.gmra.mxu0 %v3557
    %v3776 = vpop.f32.mrf.mxu0
    %v3777 = vadd.f32 0.0, %v3776
    %v3778 = vpop.f32.mrf.mxu0
    %v3779 = vpop.f32.mrf.mxu0
    %v3780 = vadd.f32 0.0, %v3779
    %v3781 = vpop.f32.mrf.mxu0
    %3782 = vdwg.mxu0
    %v3799 = vunpack.c.l.b16 %v3526
    %v3800 = vunpack.c.l.b16 %v3527
    %v3801 = vunpack.c.l.b16 %v3528
    %v3802 = vunpack.c.l.b16 %v3529
    %v3803 = vunpack.c.l.b16 %v3530
    %v3804 = vunpack.c.l.b16 %v3531
    %v3805 = vunpack.c.l.b16 %v3532
    %v3806 = vunpack.c.l.b16 %v3533
    %v3807 = vunpack.c.l.b16 %v3534
    %v3808 = vunpack.c.l.b16 %v3535
    %v3809 = vunpack.c.l.b16 %v3536
    %v3810 = vunpack.c.l.b16 %v3537
    %v3811 = vunpack.c.l.b16 %v3538
    %v3812 = vunpack.c.l.b16 %v3539
    %v3813 = vunpack.c.l.b16 %v3540
    %v3814 = vunpack.c.l.b16 %v3541
    %v3815 = vpack.c.b16 %v3800, %v3799
    %v3816 = vpack.c.b16 %v3802, %v3801
    %v3817 = vpack.c.b16 %v3804, %v3803
    %v3818 = vpack.c.b16 %v3806, %v3805
    %v3819 = vpack.c.b16 %v3808, %v3807
    %v3820 = vpack.c.b16 %v3810, %v3809
    %v3821 = vpack.c.b16 %v3812, %v3811
    %v3822 = vpack.c.b16 %v3814, %v3813
    %3831 = vmatprep.subr.bf16.mxu0 0
    %3832 = vmatpush1.bf16.msra.mxu0 %v3822
    %3833 = vmatprep.subr.bf16.mxu0 0
    %3834 = vmatpush1.bf16.msra.mxu0 %v3821
    %3835 = vmatprep.subr.bf16.mxu0 0
    %3836 = vmatpush1.bf16.msra.mxu0 %v3820
    %3837 = vmatprep.subr.bf16.mxu0 0
    %3838 = vmatpush1.bf16.msra.mxu0 %v3819
    %3839 = vmatprep.subr.bf16.mxu0 0
    %3840 = vmatpush1.bf16.msra.mxu0 %v3818
    %3841 = vmatprep.subr.bf16.mxu0 0
    %3842 = vmatpush1.bf16.msra.mxu0 %v3817
    %3843 = vmatprep.subr.bf16.mxu0 0
    %3844 = vmatpush1.bf16.msra.mxu0 %v3816
    %3845 = vmatprep.subr.bf16.mxu0 0
    %3846 = vmatpush1.bf16.msra.mxu0 %v3815
    %3847 = vmatprep.subr.bf16.mxu0 0
    %3848 = vmatpush2.bf16.msra.mxu0 0
    %3849 = vmatprep.subr.bf16.mxu0 0
    %3850 = vmatpush2.bf16.msra.mxu0 0
    %3851 = vmatprep.subr.bf16.mxu0 0
    %3852 = vmatpush2.bf16.msra.mxu0 0
    %3853 = vmatprep.subr.bf16.mxu0 0
    %3854 = vmatpush2.bf16.msra.mxu0 0
    %3855 = vmatprep.subr.bf16.mxu0 0
    %3856 = vmatpush2.bf16.msra.mxu0 0
    %3857 = vmatprep.subr.bf16.mxu0 0
    %3858 = vmatpush2.bf16.msra.mxu0 0
    %3859 = vmatprep.subr.bf16.mxu0 0
    %3860 = vmatpush2.bf16.msra.mxu0 0
    %3861 = vmatprep.subr.bf16.mxu0 0
    %3862 = vmatpush2.bf16.msra.mxu0 0
    %3863 = vmatprep.mubr.bf16.mxu0 0
    %3864 = vmatmul.mubr.bf16.gmra.mxu0 %v1570
    %v3865 = vpop.f32.mrf.mxu0
    %v3866 = vadd.f32 %v3657, %v3865
    %v3867 = vpop.f32.mrf.mxu0
    %v3868 = vpop.f32.mrf.mxu0
    %v3869 = vadd.f32 %v3660, %v3868
    %v3870 = vpop.f32.mrf.mxu0
    %3871 = vmatprep.mubr.bf16.mxu0 0
    %3872 = vmatmul.mubr.bf16.gmra.mxu0 %v1571
    %v3873 = vpop.f32.mrf.mxu0
    %v3874 = vadd.f32 %v3665, %v3873
    %v3875 = vpop.f32.mrf.mxu0
    %v3876 = vpop.f32.mrf.mxu0
    %v3877 = vadd.f32 %v3668, %v3876
    %v3878 = vpop.f32.mrf.mxu0
    %3879 = vmatprep.mubr.bf16.mxu0 0
    %3880 = vmatmul.mubr.bf16.gmra.mxu0 %v1572
    %v3881 = vpop.f32.mrf.mxu0
    %v3882 = vadd.f32 %v3673, %v3881
    %v3883 = vpop.f32.mrf.mxu0
    %v3884 = vpop.f32.mrf.mxu0
    %v3885 = vadd.f32 %v3676, %v3884
    %v3886 = vpop.f32.mrf.mxu0
    %3887 = vmatprep.mubr.bf16.mxu0 0
    %3888 = vmatmul.mubr.bf16.gmra.mxu0 %v1573
    %v3889 = vpop.f32.mrf.mxu0
    %v3890 = vadd.f32 %v3681, %v3889
    %v3891 = vpop.f32.mrf.mxu0
    %v3892 = vpop.f32.mrf.mxu0
    %v3893 = vadd.f32 %v3684, %v3892
    %v3894 = vpop.f32.mrf.mxu0
    %3895 = vmatprep.mubr.bf16.mxu0 0
    %3896 = vmatmul.mubr.bf16.gmra.mxu0 %v1574
    %v3897 = vpop.f32.mrf.mxu0
    %v3898 = vadd.f32 %v3689, %v3897
    %v3899 = vpop.f32.mrf.mxu0
    %v3900 = vpop.f32.mrf.mxu0
    %v3901 = vadd.f32 %v3692, %v3900
    %v3902 = vpop.f32.mrf.mxu0
    %3903 = vmatprep.mubr.bf16.mxu0 0
    %3904 = vmatmul.mubr.bf16.gmra.mxu0 %v1575
    %v3905 = vpop.f32.mrf.mxu0
    %v3906 = vadd.f32 %v3697, %v3905
    %v3907 = vpop.f32.mrf.mxu0
    %v3908 = vpop.f32.mrf.mxu0
    %v3909 = vadd.f32 %v3700, %v3908
    %v3910 = vpop.f32.mrf.mxu0
    %3911 = vmatprep.mubr.bf16.mxu0 0
    %3912 = vmatmul.mubr.bf16.gmra.mxu0 %v1576
    %v3913 = vpop.f32.mrf.mxu0
    %v3914 = vadd.f32 %v3705, %v3913
    %v3915 = vpop.f32.mrf.mxu0
    %v3916 = vpop.f32.mrf.mxu0
    %v3917 = vadd.f32 %v3708, %v3916
    %v3918 = vpop.f32.mrf.mxu0
    %3919 = vmatprep.mubr.bf16.mxu0 0
    %3920 = vmatmul.mubr.bf16.gmra.mxu0 %v1577
    %v3921 = vpop.f32.mrf.mxu0
    %v3922 = vadd.f32 %v3713, %v3921
    %v3923 = vpop.f32.mrf.mxu0
    %v3924 = vpop.f32.mrf.mxu0
    %v3925 = vadd.f32 %v3716, %v3924
    %v3926 = vpop.f32.mrf.mxu0
    %3927 = vmatprep.mubr.bf16.mxu0 0
    %3928 = vmatmul.mubr.bf16.gmra.mxu0 %v1578
    %v3929 = vpop.f32.mrf.mxu0
    %v3930 = vadd.f32 %v3721, %v3929
    %v3931 = vpop.f32.mrf.mxu0
    %v3932 = vpop.f32.mrf.mxu0
    %v3933 = vadd.f32 %v3724, %v3932
    %v3934 = vpop.f32.mrf.mxu0
    %3935 = vmatprep.mubr.bf16.mxu0 0
    %3936 = vmatmul.mubr.bf16.gmra.mxu0 %v1579
    %v3937 = vpop.f32.mrf.mxu0
    %v3938 = vadd.f32 %v3729, %v3937
    %v3939 = vpop.f32.mrf.mxu0
    %v3940 = vpop.f32.mrf.mxu0
    %v3941 = vadd.f32 %v3732, %v3940
    %v3942 = vpop.f32.mrf.mxu0
    %3943 = vmatprep.mubr.bf16.mxu0 0
    %3944 = vmatmul.mubr.bf16.gmra.mxu0 %v1580
    %v3945 = vpop.f32.mrf.mxu0
    %v3946 = vadd.f32 %v3737, %v3945
    %v3947 = vpop.f32.mrf.mxu0
    %v3948 = vpop.f32.mrf.mxu0
    %v3949 = vadd.f32 %v3740, %v3948
    %v3950 = vpop.f32.mrf.mxu0
    %3951 = vmatprep.mubr.bf16.mxu0 0
    %3952 = vmatmul.mubr.bf16.gmra.mxu0 %v1581
    %v3953 = vpop.f32.mrf.mxu0
    %v3954 = vadd.f32 %v3745, %v3953
    %v3955 = vpop.f32.mrf.mxu0
    %v3956 = vpop.f32.mrf.mxu0
    %v3957 = vadd.f32 %v3748, %v3956
    %v3958 = vpop.f32.mrf.mxu0
    %3959 = vmatprep.mubr.bf16.mxu0 0
    %3960 = vmatmul.mubr.bf16.gmra.mxu0 %v1582
    %v3961 = vpop.f32.mrf.mxu0
    %v3962 = vadd.f32 %v3753, %v3961
    %v3963 = vpop.f32.mrf.mxu0
    %v3964 = vpop.f32.mrf.mxu0
    %v3965 = vadd.f32 %v3756, %v3964
    %v3966 = vpop.f32.mrf.mxu0
    %3967 = vmatprep.mubr.bf16.mxu0 0
    %3968 = vmatmul.mubr.bf16.gmra.mxu0 %v1583
    %v3969 = vpop.f32.mrf.mxu0
    %v3970 = vadd.f32 %v3761, %v3969
    %v3971 = vpop.f32.mrf.mxu0
    %v3972 = vpop.f32.mrf.mxu0
    %v3973 = vadd.f32 %v3764, %v3972
    %v3974 = vpop.f32.mrf.mxu0
    %3975 = vmatprep.mubr.bf16.mxu0 0
    %3976 = vmatmul.mubr.bf16.gmra.mxu0 %v1584
    %v3977 = vpop.f32.mrf.mxu0
    %v3978 = vadd.f32 %v3769, %v3977
    %v3979 = vpop.f32.mrf.mxu0
    %v3980 = vpop.f32.mrf.mxu0
    %v3981 = vadd.f32 %v3772, %v3980
    %v3982 = vpop.f32.mrf.mxu0
    %3983 = vmatprep.mubr.bf16.mxu0 0
    %3984 = vmatmul.mubr.bf16.gmra.mxu0 %v1585
    %v3985 = vpop.f32.mrf.mxu0
    %v3986 = vadd.f32 %v3777, %v3985
    %v3987 = vpop.f32.mrf.mxu0
    %v3988 = vpop.f32.mrf.mxu0
    %v3989 = vadd.f32 %v3780, %v3988
    %v3990 = vpop.f32.mrf.mxu0
    %3991 = vdwg.mxu0
    %v3992 = vld [vmem:[%s16] sm:$0x1]
    %v3994 = vlaneseq
    %v3995 = vshrl.u32 %v3994, 7
    %v3996 = vsub.s32 0, %v3995
    %v3997 = vrot.slane %v3992, %v3996
    %v3999 = vadd.f32 %v3866, %v3997
    %v4000 = vadd.f32 %v3869, %v3997
    %v4001 = vadd.f32 %v3874, %v3997
    %v4002 = vadd.f32 %v3877, %v3997
    %v4003 = vadd.f32 %v3882, %v3997
    %v4004 = vadd.f32 %v3885, %v3997
    %v4005 = vadd.f32 %v3890, %v3997
    %v4006 = vadd.f32 %v3893, %v3997
    %v4007 = vadd.f32 %v3898, %v3997
    %v4008 = vadd.f32 %v3901, %v3997
    %v4009 = vadd.f32 %v3906, %v3997
    %v4010 = vadd.f32 %v3909, %v3997
    %v4011 = vadd.f32 %v3914, %v3997
    %v4012 = vadd.f32 %v3917, %v3997
    %v4013 = vadd.f32 %v3922, %v3997
    %v4014 = vadd.f32 %v3925, %v3997
    %v4015 = vadd.f32 %v3930, %v3997
    %v4016 = vadd.f32 %v3933, %v3997
    %v4017 = vadd.f32 %v3938, %v3997
    %v4018 = vadd.f32 %v3941, %v3997
    %v4019 = vadd.f32 %v3946, %v3997
    %v4020 = vadd.f32 %v3949, %v3997
    %v4021 = vadd.f32 %v3954, %v3997
    %v4022 = vadd.f32 %v3957, %v3997
    %v4023 = vadd.f32 %v3962, %v3997
    %v4024 = vadd.f32 %v3965, %v3997
    %v4025 = vadd.f32 %v3970, %v3997
    %v4026 = vadd.f32 %v3973, %v3997
    %v4027 = vadd.f32 %v3978, %v3997
    %v4028 = vadd.f32 %v3981, %v3997
    %v4029 = vadd.f32 %v3986, %v3997
    %v4030 = vadd.f32 %v3989, %v3997
    %v4031 = vmul.f32 %v3999, 0.5
    %v4032 = vmul.f32 %v4000, 0.5
    %v4033 = vmul.f32 %v4001, 0.5
    %v4034 = vmul.f32 %v4002, 0.5
    %v4035 = vmul.f32 %v4003, 0.5
    %v4036 = vmul.f32 %v4004, 0.5
    %v4037 = vmul.f32 %v4005, 0.5
    %v4038 = vmul.f32 %v4006, 0.5
    %v4039 = vmul.f32 %v4007, 0.5
    %v4040 = vmul.f32 %v4008, 0.5
    %v4041 = vmul.f32 %v4009, 0.5
    %v4042 = vmul.f32 %v4010, 0.5
    %v4043 = vmul.f32 %v4011, 0.5
    %v4044 = vmul.f32 %v4012, 0.5
    %v4045 = vmul.f32 %v4013, 0.5
    %v4046 = vmul.f32 %v4014, 0.5
    %v4047 = vmul.f32 %v4015, 0.5
    %v4048 = vmul.f32 %v4016, 0.5
    %v4049 = vmul.f32 %v4017, 0.5
    %v4050 = vmul.f32 %v4018, 0.5
    %v4051 = vmul.f32 %v4019, 0.5
    %v4052 = vmul.f32 %v4020, 0.5
    %v4053 = vmul.f32 %v4021, 0.5
    %v4054 = vmul.f32 %v4022, 0.5
    %v4055 = vmul.f32 %v4023, 0.5
    %v4056 = vmul.f32 %v4024, 0.5
    %v4057 = vmul.f32 %v4025, 0.5
    %v4058 = vmul.f32 %v4026, 0.5
    %v4059 = vmul.f32 %v4027, 0.5
    %v4060 = vmul.f32 %v4028, 0.5
    %v4061 = vmul.f32 %v4029, 0.5
    %v4062 = vmul.f32 %v4030, 0.5
    %v4063 = vmul.f32 %v3999, 0.044715
    %v4064 = vmul.f32 %v4000, 0.044715
    %v4065 = vmul.f32 %v4001, 0.044715
    %v4066 = vmul.f32 %v4002, 0.044715
    %v4067 = vmul.f32 %v4003, 0.044715
    %v4068 = vmul.f32 %v4004, 0.044715
    %v4069 = vmul.f32 %v4005, 0.044715
    %v4070 = vmul.f32 %v4006, 0.044715
    %v4071 = vmul.f32 %v4007, 0.044715
    %v4072 = vmul.f32 %v4008, 0.044715
    %v4073 = vmul.f32 %v4009, 0.044715
    %v4074 = vmul.f32 %v4010, 0.044715
    %v4075 = vmul.f32 %v4011, 0.044715
    %v4076 = vmul.f32 %v4012, 0.044715
    %v4077 = vmul.f32 %v4013, 0.044715
    %v4078 = vmul.f32 %v4014, 0.044715
    %v4079 = vmul.f32 %v4015, 0.044715
    %v4080 = vmul.f32 %v4016, 0.044715
    %v4081 = vmul.f32 %v4017, 0.044715
    %v4082 = vmul.f32 %v4018, 0.044715
    %v4083 = vmul.f32 %v4019, 0.044715
    %v4084 = vmul.f32 %v4020, 0.044715
    %v4085 = vmul.f32 %v4021, 0.044715
    %v4086 = vmul.f32 %v4022, 0.044715
    %v4087 = vmul.f32 %v4023, 0.044715
    %v4088 = vmul.f32 %v4024, 0.044715
    %v4089 = vmul.f32 %v4025, 0.044715
    %v4090 = vmul.f32 %v4026, 0.044715
    %v4091 = vmul.f32 %v4027, 0.044715
    %v4092 = vmul.f32 %v4028, 0.044715
    %v4093 = vmul.f32 %v4029, 0.044715
    %v4094 = vmul.f32 %v4030, 0.044715
    %v4095 = vmul.f32 %v4063, %v3999
    %v4096 = vmul.f32 %v4064, %v4000
    %v4097 = vmul.f32 %v4065, %v4001
    %v4098 = vmul.f32 %v4066, %v4002
    %v4099 = vmul.f32 %v4067, %v4003
    %v4100 = vmul.f32 %v4068, %v4004
    %v4101 = vmul.f32 %v4069, %v4005
    %v4102 = vmul.f32 %v4070, %v4006
    %v4103 = vmul.f32 %v4071, %v4007
    %v4104 = vmul.f32 %v4072, %v4008
    %v4105 = vmul.f32 %v4073, %v4009
    %v4106 = vmul.f32 %v4074, %v4010
    %v4107 = vmul.f32 %v4075, %v4011
    %v4108 = vmul.f32 %v4076, %v4012
    %v4109 = vmul.f32 %v4077, %v4013
    %v4110 = vmul.f32 %v4078, %v4014
    %v4111 = vmul.f32 %v4079, %v4015
    %v4112 = vmul.f32 %v4080, %v4016
    %v4113 = vmul.f32 %v4081, %v4017
    %v4114 = vmul.f32 %v4082, %v4018
    %v4115 = vmul.f32 %v4083, %v4019
    %v4116 = vmul.f32 %v4084, %v4020
    %v4117 = vmul.f32 %v4085, %v4021
    %v4118 = vmul.f32 %v4086, %v4022
    %v4119 = vmul.f32 %v4087, %v4023
    %v4120 = vmul.f32 %v4088, %v4024
    %v4121 = vmul.f32 %v4089, %v4025
    %v4122 = vmul.f32 %v4090, %v4026
    %v4123 = vmul.f32 %v4091, %v4027
    %v4124 = vmul.f32 %v4092, %v4028
    %v4125 = vmul.f32 %v4093, %v4029
    %v4126 = vmul.f32 %v4094, %v4030
    %v4127 = vmul.f32 %v4095, %v3999
    %v4128 = vmul.f32 %v4096, %v4000
    %v4129 = vmul.f32 %v4097, %v4001
    %v4130 = vmul.f32 %v4098, %v4002
    %v4131 = vmul.f32 %v4099, %v4003
    %v4132 = vmul.f32 %v4100, %v4004
    %v4133 = vmul.f32 %v4101, %v4005
    %v4134 = vmul.f32 %v4102, %v4006
    %v4135 = vmul.f32 %v4103, %v4007
    %v4136 = vmul.f32 %v4104, %v4008
    %v4137 = vmul.f32 %v4105, %v4009
    %v4138 = vmul.f32 %v4106, %v4010
    %v4139 = vmul.f32 %v4107, %v4011
    %v4140 = vmul.f32 %v4108, %v4012
    %v4141 = vmul.f32 %v4109, %v4013
    %v4142 = vmul.f32 %v4110, %v4014
    %v4143 = vmul.f32 %v4111, %v4015
    %v4144 = vmul.f32 %v4112, %v4016
    %v4145 = vmul.f32 %v4113, %v4017
    %v4146 = vmul.f32 %v4114, %v4018
    %v4147 = vmul.f32 %v4115, %v4019
    %v4148 = vmul.f32 %v4116, %v4020
    %v4149 = vmul.f32 %v4117, %v4021
    %v4150 = vmul.f32 %v4118, %v4022
    %v4151 = vmul.f32 %v4119, %v4023
    %v4152 = vmul.f32 %v4120, %v4024
    %v4153 = vmul.f32 %v4121, %v4025
    %v4154 = vmul.f32 %v4122, %v4026
    %v4155 = vmul.f32 %v4123, %v4027
    %v4156 = vmul.f32 %v4124, %v4028
    %v4157 = vmul.f32 %v4125, %v4029
    %v4158 = vmul.f32 %v4126, %v4030
    %v4159 = vadd.f32 %v3999, %v4127
    %v4160 = vadd.f32 %v4000, %v4128
    %v4161 = vadd.f32 %v4001, %v4129
    %v4162 = vadd.f32 %v4002, %v4130
    %v4163 = vadd.f32 %v4003, %v4131
    %v4164 = vadd.f32 %v4004, %v4132
    %v4165 = vadd.f32 %v4005, %v4133
    %v4166 = vadd.f32 %v4006, %v4134
    %v4167 = vadd.f32 %v4007, %v4135
    %v4168 = vadd.f32 %v4008, %v4136
    %v4169 = vadd.f32 %v4009, %v4137
    %v4170 = vadd.f32 %v4010, %v4138
    %v4171 = vadd.f32 %v4011, %v4139
    %v4172 = vadd.f32 %v4012, %v4140
    %v4173 = vadd.f32 %v4013, %v4141
    %v4174 = vadd.f32 %v4014, %v4142
    %v4175 = vadd.f32 %v4015, %v4143
    %v4176 = vadd.f32 %v4016, %v4144
    %v4177 = vadd.f32 %v4017, %v4145
    %v4178 = vadd.f32 %v4018, %v4146
    %v4179 = vadd.f32 %v4019, %v4147
    %v4180 = vadd.f32 %v4020, %v4148
    %v4181 = vadd.f32 %v4021, %v4149
    %v4182 = vadd.f32 %v4022, %v4150
    %v4183 = vadd.f32 %v4023, %v4151
    %v4184 = vadd.f32 %v4024, %v4152
    %v4185 = vadd.f32 %v4025, %v4153
    %v4186 = vadd.f32 %v4026, %v4154
    %v4187 = vadd.f32 %v4027, %v4155
    %v4188 = vadd.f32 %v4028, %v4156
    %v4189 = vadd.f32 %v4029, %v4157
    %v4190 = vadd.f32 %v4030, %v4158
    %v4191 = vmul.f32 %v4159, 0.7978846
    %v4192 = vmul.f32 %v4160, 0.7978846
    %v4193 = vmul.f32 %v4161, 0.7978846
    %v4194 = vmul.f32 %v4162, 0.7978846
    %v4195 = vmul.f32 %v4163, 0.7978846
    %v4196 = vmul.f32 %v4164, 0.7978846
    %v4197 = vmul.f32 %v4165, 0.7978846
    %v4198 = vmul.f32 %v4166, 0.7978846
    %v4199 = vmul.f32 %v4167, 0.7978846
    %v4200 = vmul.f32 %v4168, 0.7978846
    %v4201 = vmul.f32 %v4169, 0.7978846
    %v4202 = vmul.f32 %v4170, 0.7978846
    %v4203 = vmul.f32 %v4171, 0.7978846
    %v4204 = vmul.f32 %v4172, 0.7978846
    %v4205 = vmul.f32 %v4173, 0.7978846
    %v4206 = vmul.f32 %v4174, 0.7978846
    %v4207 = vmul.f32 %v4175, 0.7978846
    %v4208 = vmul.f32 %v4176, 0.7978846
    %v4209 = vmul.f32 %v4177, 0.7978846
    %v4210 = vmul.f32 %v4178, 0.7978846
    %v4211 = vmul.f32 %v4179, 0.7978846
    %v4212 = vmul.f32 %v4180, 0.7978846
    %v4213 = vmul.f32 %v4181, 0.7978846
    %v4214 = vmul.f32 %v4182, 0.7978846
    %v4215 = vmul.f32 %v4183, 0.7978846
    %v4216 = vmul.f32 %v4184, 0.7978846
    %v4217 = vmul.f32 %v4185, 0.7978846
    %v4218 = vmul.f32 %v4186, 0.7978846
    %v4219 = vmul.f32 %v4187, 0.7978846
    %v4220 = vmul.f32 %v4188, 0.7978846
    %v4221 = vmul.f32 %v4189, 0.7978846
    %v4222 = vmul.f32 %v4190, 0.7978846
    %v4223 = vtanh.pop %v4191
    %v4224 = vtanh.pop %v4192
    %v4225 = vtanh.pop %v4193
    %v4226 = vtanh.pop %v4194
    %v4227 = vtanh.pop %v4195
    %v4228 = vtanh.pop %v4196
    %v4229 = vtanh.pop %v4197
    %v4230 = vtanh.pop %v4198
    %v4231 = vtanh.pop %v4199
    %v4232 = vtanh.pop %v4200
    %v4233 = vtanh.pop %v4201
    %v4234 = vtanh.pop %v4202
    %v4235 = vtanh.pop %v4203
    %v4236 = vtanh.pop %v4204
    %v4237 = vtanh.pop %v4205
    %v4238 = vtanh.pop %v4206
    %v4239 = vtanh.pop %v4207
    %v4240 = vtanh.pop %v4208
    %v4241 = vtanh.pop %v4209
    %v4242 = vtanh.pop %v4210
    %v4243 = vtanh.pop %v4211
    %v4244 = vtanh.pop %v4212
    %v4245 = vtanh.pop %v4213
    %v4246 = vtanh.pop %v4214
    %v4247 = vtanh.pop %v4215
    %v4248 = vtanh.pop %v4216
    %v4249 = vtanh.pop %v4217
    %v4250 = vtanh.pop %v4218
    %v4251 = vtanh.pop %v4219
    %v4252 = vtanh.pop %v4220
    %v4253 = vtanh.pop %v4221
    %v4254 = vtanh.pop %v4222
    %v4255 = vadd.f32 %v4223, 1.0
    %v4256 = vadd.f32 %v4224, 1.0
    %v4257 = vadd.f32 %v4225, 1.0
    %v4258 = vadd.f32 %v4226, 1.0
    %v4259 = vadd.f32 %v4227, 1.0
    %v4260 = vadd.f32 %v4228, 1.0
    %v4261 = vadd.f32 %v4229, 1.0
    %v4262 = vadd.f32 %v4230, 1.0
    %v4263 = vadd.f32 %v4231, 1.0
    %v4264 = vadd.f32 %v4232, 1.0
    %v4265 = vadd.f32 %v4233, 1.0
    %v4266 = vadd.f32 %v4234, 1.0
    %v4267 = vadd.f32 %v4235, 1.0
    %v4268 = vadd.f32 %v4236, 1.0
    %v4269 = vadd.f32 %v4237, 1.0
    %v4270 = vadd.f32 %v4238, 1.0
    %v4271 = vadd.f32 %v4239, 1.0
    %v4272 = vadd.f32 %v4240, 1.0
    %v4273 = vadd.f32 %v4241, 1.0
    %v4274 = vadd.f32 %v4242, 1.0
    %v4275 = vadd.f32 %v4243, 1.0
    %v4276 = vadd.f32 %v4244, 1.0
    %v4277 = vadd.f32 %v4245, 1.0
    %v4278 = vadd.f32 %v4246, 1.0
    %v4279 = vadd.f32 %v4247, 1.0
    %v4280 = vadd.f32 %v4248, 1.0
    %v4281 = vadd.f32 %v4249, 1.0
    %v4282 = vadd.f32 %v4250, 1.0
    %v4283 = vadd.f32 %v4251, 1.0
    %v4284 = vadd.f32 %v4252, 1.0
    %v4285 = vadd.f32 %v4253, 1.0
    %v4286 = vadd.f32 %v4254, 1.0
    %v4287 = vmul.f32 %v4031, %v4255
    %v4288 = vmul.f32 %v4032, %v4256
    %v4289 = vmul.f32 %v4033, %v4257
    %v4290 = vmul.f32 %v4034, %v4258
    %v4291 = vmul.f32 %v4035, %v4259
    %v4292 = vmul.f32 %v4036, %v4260
    %v4293 = vmul.f32 %v4037, %v4261
    %v4294 = vmul.f32 %v4038, %v4262
    %v4295 = vmul.f32 %v4039, %v4263
    %v4296 = vmul.f32 %v4040, %v4264
    %v4297 = vmul.f32 %v4041, %v4265
    %v4298 = vmul.f32 %v4042, %v4266
    %v4299 = vmul.f32 %v4043, %v4267
    %v4300 = vmul.f32 %v4044, %v4268
    %v4301 = vmul.f32 %v4045, %v4269
    %v4302 = vmul.f32 %v4046, %v4270
    %v4303 = vmul.f32 %v4047, %v4271
    %v4304 = vmul.f32 %v4048, %v4272
    %v4305 = vmul.f32 %v4049, %v4273
    %v4306 = vmul.f32 %v4050, %v4274
    %v4307 = vmul.f32 %v4051, %v4275
    %v4308 = vmul.f32 %v4052, %v4276
    %v4309 = vmul.f32 %v4053, %v4277
    %v4310 = vmul.f32 %v4054, %v4278
    %v4311 = vmul.f32 %v4055, %v4279
    %v4312 = vmul.f32 %v4056, %v4280
    %v4313 = vmul.f32 %v4057, %v4281
    %v4314 = vmul.f32 %v4058, %v4282
    %v4315 = vmul.f32 %v4059, %v4283
    %v4316 = vmul.f32 %v4060, %v4284
    %v4317 = vmul.f32 %v4061, %v4285
    %v4318 = vmul.f32 %v4062, %v4286
    %v4319 = vld [vmem:[%s17] sm:$0x1]
    %v4321 = vlaneseq
    %v4322 = vshrl.u32 %v4321, 7
    %v4323 = vsub.s32 0, %v4322
    %v4324 = vrot.slane %v4319, %v4323
    %v4326 = vmul.f32 %v4287, %v4324
    %v4327 = vmul.f32 %v4288, %v4324
    %v4328 = vmul.f32 %v4289, %v4324
    %v4329 = vmul.f32 %v4290, %v4324
    %v4330 = vmul.f32 %v4291, %v4324
    %v4331 = vmul.f32 %v4292, %v4324
    %v4332 = vmul.f32 %v4293, %v4324
    %v4333 = vmul.f32 %v4294, %v4324
    %v4334 = vmul.f32 %v4295, %v4324
    %v4335 = vmul.f32 %v4296, %v4324
    %v4336 = vmul.f32 %v4297, %v4324
    %v4337 = vmul.f32 %v4298, %v4324
    %v4338 = vmul.f32 %v4299, %v4324
    %v4339 = vmul.f32 %v4300, %v4324
    %v4340 = vmul.f32 %v4301, %v4324
    %v4341 = vmul.f32 %v4302, %v4324
    %v4342 = vmul.f32 %v4303, %v4324
    %v4343 = vmul.f32 %v4304, %v4324
    %v4344 = vmul.f32 %v4305, %v4324
    %v4345 = vmul.f32 %v4306, %v4324
    %v4346 = vmul.f32 %v4307, %v4324
    %v4347 = vmul.f32 %v4308, %v4324
    %v4348 = vmul.f32 %v4309, %v4324
    %v4349 = vmul.f32 %v4310, %v4324
    %v4350 = vmul.f32 %v4311, %v4324
    %v4351 = vmul.f32 %v4312, %v4324
    %v4352 = vmul.f32 %v4313, %v4324
    %v4353 = vmul.f32 %v4314, %v4324
    %v4354 = vmul.f32 %v4315, %v4324
    %v4355 = vmul.f32 %v4316, %v4324
    %v4356 = vmul.f32 %v4317, %v4324
    %v4357 = vmul.f32 %v4318, %v4324
    %4358 = vadd.xlane.f32.xlu0 %v4326
    %v4359 = vpop.xlane.xlu0 %4358
    %4360 = vadd.xlane.f32.xlu0 %v4327
    %v4361 = vpop.xlane.xlu0 %4360
    %4362 = vadd.xlane.f32.xlu0 %v4328
    %v4363 = vpop.xlane.xlu0 %4362
    %4364 = vadd.xlane.f32.xlu0 %v4329
    %v4365 = vpop.xlane.xlu0 %4364
    %4366 = vadd.xlane.f32.xlu0 %v4330
    %v4367 = vpop.xlane.xlu0 %4366
    %4368 = vadd.xlane.f32.xlu0 %v4331
    %v4369 = vpop.xlane.xlu0 %4368
    %4370 = vadd.xlane.f32.xlu0 %v4332
    %v4371 = vpop.xlane.xlu0 %4370
    %4372 = vadd.xlane.f32.xlu0 %v4333
    %v4373 = vpop.xlane.xlu0 %4372
    %4374 = vadd.xlane.f32.xlu0 %v4334
    %v4375 = vpop.xlane.xlu0 %4374
    %4376 = vadd.xlane.f32.xlu0 %v4335
    %v4377 = vpop.xlane.xlu0 %4376
    %4378 = vadd.xlane.f32.xlu0 %v4336
    %v4379 = vpop.xlane.xlu0 %4378
    %4380 = vadd.xlane.f32.xlu0 %v4337
    %v4381 = vpop.xlane.xlu0 %4380
    %4382 = vadd.xlane.f32.xlu0 %v4338
    %v4383 = vpop.xlane.xlu0 %4382
    %4384 = vadd.xlane.f32.xlu0 %v4339
    %v4385 = vpop.xlane.xlu0 %4384
    %4386 = vadd.xlane.f32.xlu0 %v4340
    %v4387 = vpop.xlane.xlu0 %4386
    %4388 = vadd.xlane.f32.xlu0 %v4341
    %v4389 = vpop.xlane.xlu0 %4388
    %4390 = vadd.xlane.f32.xlu0 %v4342
    %v4391 = vpop.xlane.xlu0 %4390
    %4392 = vadd.xlane.f32.xlu0 %v4343
    %v4393 = vpop.xlane.xlu0 %4392
    %4394 = vadd.xlane.f32.xlu0 %v4344
    %v4395 = vpop.xlane.xlu0 %4394
    %4396 = vadd.xlane.f32.xlu0 %v4345
    %v4397 = vpop.xlane.xlu0 %4396
    %4398 = vadd.xlane.f32.xlu0 %v4346
    %v4399 = vpop.xlane.xlu0 %4398
    %4400 = vadd.xlane.f32.xlu0 %v4347
    %v4401 = vpop.xlane.xlu0 %4400
    %4402 = vadd.xlane.f32.xlu0 %v4348
    %v4403 = vpop.xlane.xlu0 %4402
    %4404 = vadd.xlane.f32.xlu0 %v4349
    %v4405 = vpop.xlane.xlu0 %4404
    %4406 = vadd.xlane.f32.xlu0 %v4350
    %v4407 = vpop.xlane.xlu0 %4406
    %4408 = vadd.xlane.f32.xlu0 %v4351
    %v4409 = vpop.xlane.xlu0 %4408
    %4410 = vadd.xlane.f32.xlu0 %v4352
    %v4411 = vpop.xlane.xlu0 %4410
    %4412 = vadd.xlane.f32.xlu0 %v4353
    %v4413 = vpop.xlane.xlu0 %4412
    %4414 = vadd.xlane.f32.xlu0 %v4354
    %v4415 = vpop.xlane.xlu0 %4414
    %4416 = vadd.xlane.f32.xlu0 %v4355
    %v4417 = vpop.xlane.xlu0 %4416
    %4418 = vadd.xlane.f32.xlu0 %v4356
    %v4419 = vpop.xlane.xlu0 %4418
    %4420 = vadd.xlane.f32.xlu0 %v4357
    %v4421 = vpop.xlane.xlu0 %4420
    %v4422 = vld [vmem:[#allocation4] sm:$0x1]
    %v4424 = vlaneseq
    %v4425 = vshrl.u32 %v4424, 7
    %v4426 = vsub.s32 0, %v4425
    %v4427 = vrot.slane %v4422, %v4426
    %v4429 = vadd.f32 %v4359, %v4427
    %v4430 = vadd.f32 %v4361, %v4427
    %v4431 = vadd.f32 %v4363, %v4427
    %v4432 = vadd.f32 %v4365, %v4427
    %v4433 = vadd.f32 %v4367, %v4427
    %v4434 = vadd.f32 %v4369, %v4427
    %v4435 = vadd.f32 %v4371, %v4427
    %v4436 = vadd.f32 %v4373, %v4427
    %v4437 = vadd.f32 %v4375, %v4427
    %v4438 = vadd.f32 %v4377, %v4427
    %v4439 = vadd.f32 %v4379, %v4427
    %v4440 = vadd.f32 %v4381, %v4427
    %v4441 = vadd.f32 %v4383, %v4427
    %v4442 = vadd.f32 %v4385, %v4427
    %v4443 = vadd.f32 %v4387, %v4427
    %v4444 = vadd.f32 %v4389, %v4427
    %v4445 = vadd.f32 %v4391, %v4427
    %v4446 = vadd.f32 %v4393, %v4427
    %v4447 = vadd.f32 %v4395, %v4427
    %v4448 = vadd.f32 %v4397, %v4427
    %v4449 = vadd.f32 %v4399, %v4427
    %v4450 = vadd.f32 %v4401, %v4427
    %v4451 = vadd.f32 %v4403, %v4427
    %v4452 = vadd.f32 %v4405, %v4427
    %v4453 = vadd.f32 %v4407, %v4427
    %v4454 = vadd.f32 %v4409, %v4427
    %v4455 = vadd.f32 %v4411, %v4427
    %v4456 = vadd.f32 %v4413, %v4427
    %v4457 = vadd.f32 %v4415, %v4427
    %v4458 = vadd.f32 %v4417, %v4427
    %v4459 = vadd.f32 %v4419, %v4427
    %v4460 = vadd.f32 %v4421, %v4427
    %4461 = vxpose.xlu0.b32.start [1/16] %v4429, 128
    %4462 = vxpose.xlu0.b32.cont [2/16] %v4430, 128
    %4463 = vxpose.xlu0.b32.cont [3/16] %v4431, 128
    %4464 = vxpose.xlu0.b32.cont [4/16] %v4432, 128
    %4465 = vxpose.xlu0.b32.cont [5/16] %v4433, 128
    %4466 = vxpose.xlu0.b32.cont [6/16] %v4434, 128
    %4467 = vxpose.xlu0.b32.cont [7/16] %v4435, 128
    %4468 = vxpose.xlu0.b32.cont [8/16] %v4436, 128
    %4469 = vxpose.xlu0.b32.cont [9/16] %v4437, 128
    %4470 = vxpose.xlu0.b32.cont [10/16] %v4438, 128
    %4471 = vxpose.xlu0.b32.cont [11/16] %v4439, 128
    %4472 = vxpose.xlu0.b32.cont [12/16] %v4440, 128
    %4473 = vxpose.xlu0.b32.cont [13/16] %v4441, 128
    %4474 = vxpose.xlu0.b32.cont [14/16] %v4442, 128
    %4475 = vxpose.xlu0.b32.cont [15/16] %v4443, 128
    %4476 = vxpose.xlu0.b32.end [16/16] %v4444, 128
    %v4477 = vpop.trf.xlu0
    %v4478 = vpop.trf.xlu0
    %v4479 = vpop.trf.xlu0
    %v4480 = vpop.trf.xlu0
    %v4481 = vpop.trf.xlu0
    %v4482 = vpop.trf.xlu0
    %v4483 = vpop.trf.xlu0
    %v4484 = vpop.trf.xlu0
    %v4485 = vpop.trf.xlu0
    %v4486 = vpop.trf.xlu0
    %v4487 = vpop.trf.xlu0
    %v4488 = vpop.trf.xlu0
    %v4489 = vpop.trf.xlu0
    %v4490 = vpop.trf.xlu0
    %v4491 = vpop.trf.xlu0
    %v4492 = vpop.trf.xlu0
    %4493 = vxpose.xlu0.b32.start [1/16] %v4445, 128
    %4494 = vxpose.xlu0.b32.cont [2/16] %v4446, 128
    %4495 = vxpose.xlu0.b32.cont [3/16] %v4447, 128
    %4496 = vxpose.xlu0.b32.cont [4/16] %v4448, 128
    %4497 = vxpose.xlu0.b32.cont [5/16] %v4449, 128
    %4498 = vxpose.xlu0.b32.cont [6/16] %v4450, 128
    %4499 = vxpose.xlu0.b32.cont [7/16] %v4451, 128
    %4500 = vxpose.xlu0.b32.cont [8/16] %v4452, 128
    %4501 = vxpose.xlu0.b32.cont [9/16] %v4453, 128
    %4502 = vxpose.xlu0.b32.cont [10/16] %v4454, 128
    %4503 = vxpose.xlu0.b32.cont [11/16] %v4455, 128
    %4504 = vxpose.xlu0.b32.cont [12/16] %v4456, 128
    %4505 = vxpose.xlu0.b32.cont [13/16] %v4457, 128
    %4506 = vxpose.xlu0.b32.cont [14/16] %v4458, 128
    %4507 = vxpose.xlu0.b32.cont [15/16] %v4459, 128
    %4508 = vxpose.xlu0.b32.end [16/16] %v4460, 128
    %v4509 = vpop.trf.xlu0
    %v4510 = vpop.trf.xlu0
    %v4511 = vpop.trf.xlu0
    %v4512 = vpop.trf.xlu0
    %v4513 = vpop.trf.xlu0
    %v4514 = vpop.trf.xlu0
    %v4515 = vpop.trf.xlu0
    %v4516 = vpop.trf.xlu0
    %v4517 = vpop.trf.xlu0
    %v4518 = vpop.trf.xlu0
    %v4519 = vpop.trf.xlu0
    %v4520 = vpop.trf.xlu0
    %v4521 = vpop.trf.xlu0
    %v4522 = vpop.trf.xlu0
    %v4523 = vpop.trf.xlu0
    %v4524 = vpop.trf.xlu0
    %v4527 = vcombine.low %v4477, %v4509
    %v4529 = vunpack.c.l.s4 1966171168
    %v4530 = vunpack.c.0.s8 %v4529
    %v4531 = vlaneseq
    %v4532 = vshrl.u32 %v4531, 7
    %v4533 = vsub.s32 %v4530, %v4532
    %v4534 = vrot.slane %v4527, %v4533
    %v4536 = vunpack.c.l.s4 1966171168
    %v4537 = vunpack.c.0.s8 %v4536
    %v4538 = vlaneseq
    %v4539 = vshrl.u32 %v4538, 7
    %v4540 = vsub.s32 %v4537, %v4539
    %v4541 = vrot.slane %v4534, %v4540
    %v4543 = vlaneseq
    %vm4544 = vcmp.ge.s32.totalorder %v4543, 0
    %vm4545 = vcmp.lt.s32.totalorder %v4543, 256
    %vm4546 = vmand %vm4544, %vm4545
    %4547 = vst.msk [vmem:[#allocation8] sm:$0x3] %vm4546, %v4541
    // Predicated region
    $region82: #{tpu_custom_call.1} parent=1 // pred_check
      _
    $region83: #{tpu_custom_call.1} parent=1 // pred_check_branch
      %4549 = sbr.rel (0) target = $region85
    $region84: #{tpu_custom_call.1} parent=1 // pred_region
      _
    $region85: #{tpu_custom_call.1} parent=1 // pred_fallthru
      _
    // Predicated region
    $region86: #{tpu_custom_call.1} parent=1 // pred_check
      _
    $region87: #{tpu_custom_call.1} parent=1 // pred_check_branch
      %4551 = sbr.rel (0) target = $region89
    $region88: #{tpu_custom_call.1} parent=1 // pred_region
      %s4553 = ssub.s32 32, 32
      %4554 = vsyncadd [#allocation7], %s4553
      %s4556 = sshll.u32 [#allocation8], 4
      %s4557 = int_to_ptr.vmem [resolvable:$true] %s4556
      %4559 = dma.vmem_to_hbm [thread:$0]  %s4557, 32, %s20, [#allocation7]
    $region89: #{tpu_custom_call.1} parent=1 // pred_fallthru
      _
    // Predicated region
    $region90: #{tpu_custom_call.1} parent=1 // pred_check
      _
    $region91: #{tpu_custom_call.1} parent=1 // pred_check_branch
      %4561 = sbr.rel (0) target = $region93
    $region92: #{tpu_custom_call.1} parent=1 // pred_region
      _
    $region93: #{tpu_custom_call.1} parent=1 // pred_fallthru
      _
    // Predicated region
    $region94: #{tpu_custom_call.1} parent=1 // pred_check
      _
    $region95: #{tpu_custom_call.1} parent=1 // pred_check_branch
      %4563 = sbr.rel (0) target = $region97
    $region96: #{tpu_custom_call.1} parent=1 // pred_region
      %4564 = dma.done [#allocation7], 32
    $region97: #{tpu_custom_call.1} parent=1 // pred_fallthru
      _
    %4565 = vsyncpa [#allocation6], 1
    %4566 = vsyncpa [#allocation7], 1

</llo_original>
